<compile_context>
chip_gen: v5e
topology: v5e:2x2
jax: 0.10.0
libtpu: 0.0.40
codegen_flags: <defaults>
</compile_context>

<pallas_src>
import functools

import jax
import jax.numpy as jnp
import numpy as np
from jax.experimental import pallas as pl
from jax.experimental.pallas import tpu as pltpu


# ----------------------------------------------------------------------------
# Pallas kernel: per-(step, object, channel) partial statistics
# ----------------------------------------------------------------------------
def _stats_kernel(src_ref, tgt_ref, ones_ref, stats_ref, tsum_ref, *,
                  alpha, gamma, nsteps, nobj, nmask):
    # src_ref  : (1, S*N*M, F, TILE)       mask logits (any float dtype)
    # tgt_ref  : (1, N, F, TILE)           binary targets (f32)
    # ones_ref : (TILE, 128)               ones matrix (resident, constant idx)
    # stats_ref: (1, 5, S*N*M*F, 128)      f32 accumulator, resident over tiles
    #              channels: [focal, p*t, p, (pred>0)*t, (pred>0)]
    # tsum_ref : (1, N*F, 128)             f32 accumulator (sum of targets)
    @pl.when(pl.program_id(1) == 0)
    def _():
        stats_ref[...] = jnp.zeros_like(stats_ref)
        tsum_ref[...] = jnp.zeros_like(tsum_ref)

    snm, fold, tile = src_ref.shape[1:]
    x = src_ref[0].astype(jnp.float32).reshape(nsteps, nobj, nmask, fold, tile)
    t = tgt_ref[0].astype(jnp.float32)                # (N, F, TILE)
    tb = t[None, :, None]                             # (1, N, 1, F, TILE)

    p = jax.nn.sigmoid(x)
    # softplus(-|x|) = -log(sigmoid(|x|)); sigmoid(|x|) = max(p, 1-p) >= 0.5,
    # so the log argument never underflows (2 EUP ops total).
    sp = -jnp.log(jnp.maximum(p, 1.0 - p))
    # BCE with logits: max(x,0) - x*t + softplus(-|x|)
    ce = jnp.maximum(x, 0.0) - x * tb + sp

    pt = p * tb                                       # reused as dice numerator
    one_m_pt = (p - pt) + (tb - pt)                   # 1 - p_t = p + t - 2*p*t
    if gamma == 2:
        mod = one_m_pt * one_m_pt
    elif gamma == 0:
        mod = None
    else:
        mod = one_m_pt ** gamma
    fl = ce
    if alpha >= 0:
        # alpha_t = alpha*t + (1-alpha)*(1-t) = (1-alpha) + (2*alpha-1)*t
        fl = fl * ((1.0 - alpha) + (2.0 * alpha - 1.0) * tb)
    if mod is not None:
        fl = fl * mod

    pos = (x > 0.0).astype(jnp.float32)               # predicted-mask indicator
    pos_t = pos * tb                                  # intersection integrand

    gf = snm * fold
    ones = ones_ref[...]                              # (TILE, 128)
    # Offload the lane-axis reductions to the (otherwise idle) MXU: contract
    # the TILE lanes against ones.  All 128 result lanes carry the same partial
    # sum; lane 0 is consumed by the host-side finalization.  The reshapes are
    # pure leading-dim collapses (F is the full sublane block), so no relayout.
    for i, v in enumerate((fl, pt, p, pos_t, pos)):
        part = jnp.dot(v.reshape(gf, tile), ones,
                       preferred_element_type=jnp.float32,
                       precision=jax.lax.Precision.HIGHEST)
        stats_ref[0, i] += part
    tsum_ref[0] += jnp.dot(t.reshape(nobj * fold, tile), ones,
                           preferred_element_type=jnp.float32,
                           precision=jax.lax.Precision.HIGHEST)


# ----------------------------------------------------------------------------
# Layout selection (dtype-matched sublane fold, generation-aware tile cap)
# ----------------------------------------------------------------------------
def _choose_layout(HW, S, N, M, src_dtype):
    itemsize = jnp.dtype(src_dtype).itemsize
    F = 16 if itemsize <= 2 else 8                     # dense vregs on load
    try:
        vmem_bytes = int(pltpu.get_tpu_info().vmem_capacity_bytes)
    except Exception:
        vmem_bytes = 64 * 1024 * 1024                  # conservative (v7x-like)
    # Bigger src blocks on v5e/v6e (128 MiB VMEM), tighter on v7x (64 MiB/TC).
    cap = (4 << 20) if vmem_bytes >= (100 << 20) else (2 << 20)
    bytes_per_lane = S * N * M * F * itemsize + N * F * 4
    tile_cap = max(128, ((cap // bytes_per_lane) // 128) * 128)

    hwf = -(-HW // F)                                  # ceil(HW / F)
    tile = None
    if HW % F == 0 and hwf % 128 == 0:
        # Prefer the largest capped tile that exactly divides the lane axis
        # (no padding copy needed).
        d = min(tile_cap, hwf)
        while d >= 128:
            if hwf % d == 0:
                tile = d
                break
            d -= 128
    if tile is None:
        # Non-aligned resolution: pad the flattened spatial axis in the wrapper
        # (zero-contribution padding) so the aligned, capped path is taken.
        tile = min(tile_cap, ((hwf + 127) // 128) * 128)
    hwf_pad = ((hwf + tile - 1) // tile) * tile
    hw_pad = hwf_pad * F
    nh = hwf_pad // tile
    return F, tile, hwf_pad, hw_pad, nh, vmem_bytes


# ----------------------------------------------------------------------------
# Wrapper: full MultiStepMultiMasksAndIous forward
# ----------------------------------------------------------------------------
def multistep_multimask_losses(src_all, ious_all, targets_batch, weight_dict,
                               focal_alpha=0.25, focal_gamma=2,
                               supervise_all_iou=False):
    """
    src_all:       (T, S, N, M, H, W) predicted multimask logits
    ious_all:      (T, S, N, M)       predicted IoU scores
    targets_batch: (T, N, H, W)       binary ground-truth masks
    Returns a dict of scalar losses (summed over frames / steps) + core loss.
    """
    T, S, N, M, H, W = src_all.shape
    HW = H * W
    num_objects = float(max(N, 1))  # clamp(N / world_size, min=1), world_size=1
    # TODO(synk): distributed all_reduce of num_objects (world_size > 1) and the
    # pred_obj_scores=True object-score loss branch are not modeled here.

    F, tile, hwf_pad, hw_pad, nh, vmem_bytes = _choose_layout(
        HW, S, N, M, src_all.dtype)
    GF, NF = S * N * M * F, N * F

    src_flat = src_all.reshape(T, S * N * M, HW)
    tgt_flat = targets_batch.reshape(T, N, HW).astype(jnp.float32)
    pad = hw_pad - HW
    if pad:
        # Padded logits are very negative and padded targets zero, so every
        # per-pixel statistic contributes exactly 0 for padded elements.
        src_flat = jnp.pad(src_flat, ((0, 0), (0, 0), (0, pad)),
                           constant_values=-1e9)
        tgt_flat = jnp.pad(tgt_flat, ((0, 0), (0, 0), (0, pad)))
    src_r = src_flat.reshape(T, S * N * M, F, hwf_pad)
    tgt_r = tgt_flat.reshape(T, N, F, hwf_pad)
    ones_rhs = jnp.ones((tile, 128), jnp.float32)

    itemsize = jnp.dtype(src_all.dtype).itemsize
    needed = (2 * (S * N * M * F * tile * itemsize
                   + N * F * tile * 4 + tile * 128 * 4)
              + 2 * (5 * GF + NF) * 128 * 4 + (4 << 20))
    vmem_limit = int(min(vmem_bytes, max(needed, 32 << 20)))

    kernel = functools.partial(_stats_kernel, alpha=focal_alpha,
                               gamma=focal_gamma, nsteps=S, nobj=N, nmask=M)

    stats_col, tsum_col = pl.pallas_call(
        kernel,
        grid=(T, nh),
        in_specs=[
            pl.BlockSpec((1, S * N * M, F, tile), lambda t, h: (t, 0, 0, h)),
            pl.BlockSpec((1, N, F, tile), lambda t, h: (t, 0, 0, h)),
            pl.BlockSpec((tile, 128), lambda t, h: (0, 0)),
        ],
        out_specs=(
            pl.BlockSpec((1, 5, GF, 128), lambda t, h: (t, 0, 0, 0)),
            pl.BlockSpec((1, NF, 128), lambda t, h: (t, 0, 0)),
        ),
        out_shape=(
            jax.ShapeDtypeStruct((T, 5, GF, 128), jnp.float32),
            jax.ShapeDtypeStruct((T, NF, 128), jnp.float32),
        ),
        compiler_params=pltpu.CompilerParams(
            dimension_semantics=("parallel", "arbitrary"),
            vmem_limit_bytes=vmem_limit),
    )(src_r, tgt_r, ones_rhs)

    # ---- tiny glue: finalize losses from raw sums (plain JAX) --------------
    stats = stats_col[..., 0].reshape(T, 5, S, N, M, F).sum(axis=-1)  # (T,5,S,N,M)
    s_fl = stats[:, 0]                                 # sum focal
    s_pt = stats[:, 1]                                 # sum p*t
    s_p = stats[:, 2]                                  # sum p
    s_i = stats[:, 3]                                  # |pred ∩ gt|
    s_pos = stats[:, 4]                                # |pred|
    s_t = tsum_col[..., 0].reshape(T, N, F).sum(axis=-1)[:, None, :, None]

    inv_no = 1.0 / num_objects
    loss_multimask = (s_fl / float(HW)) * inv_no       # mean over ORIGINAL H*W
    loss_multidice = (1.0 - (2.0 * s_pt + 1.0) / (s_p + s_t + 1.0)) * inv_no
    area_u = s_t + s_pos - s_i                         # |pred ∪ gt| (binary t)
    actual_iou = s_i / jnp.maximum(area_u, 1.0)
    ious = ious_all.astype(jnp.float32)
    loss_multiiou = (ious - actual_iou) ** 2 * inv_no  # MSE (iou_use_l1_loss=False)

    # ---- best-channel selection + reductions --------------------------------
    if M > 1:
        combo = (loss_multimask * weight_dict['loss_mask']
                 + loss_multidice * weight_dict['loss_dice'])
        best = jnp.argmin(combo, axis=-1)              # (T, S, N)

        def select(a):
            return jnp.take_along_axis(a, best[..., None], axis=-1)[..., 0]

        loss_mask = select(loss_multimask)
        loss_dice = select(loss_multidice)
        loss_iou = (jnp.mean(loss_multiiou, axis=-1) if supervise_all_iou
                    else select(loss_multiiou))
    else:
        loss_mask = loss_multimask[..., 0]
        loss_dice = loss_multidice[..., 0]
        loss_iou = loss_multiiou[..., 0]

    # pred_obj_scores=False -> target_obj == 1, loss_class == 0
    weight_dict = dict(weight_dict)
    weight_dict.setdefault('loss_class', 0.0)
    losses = {
        'loss_mask': jnp.sum(loss_mask),
        'loss_dice': jnp.sum(loss_dice),
        'loss_iou': jnp.sum(loss_iou),
        'loss_class': jnp.zeros((), jnp.float32),
    }
    core = jnp.zeros((), jnp.float32)
    for k, wgt in weight_dict.items():
        if wgt != 0:
            core = core + losses[k] * wgt
    losses['core_loss'] = core
    return losses


# ----------------------------------------------------------------------------
# Pure-JAX reference (direct translation of the PyTorch code) for verification
# ----------------------------------------------------------------------------
def _ref_losses(src_all, ious_all, targets_batch, weight_dict,
                focal_alpha=0.25, focal_gamma=2):
    T, S, N, M, H, W = src_all.shape
    num_objects = float(max(N, 1))
    acc = {'loss_mask': 0.0, 'loss_dice': 0.0, 'loss_iou': 0.0,
           'loss_class': 0.0}
    for t in range(T):
        tm = jnp.broadcast_to(targets_batch[t][:, None].astype(jnp.float32),
                              (N, M, H, W))
        for s in range(S):
            x = src_all[t, s].astype(jnp.float32)
            p = jax.nn.sigmoid(x)
            ce = jnp.maximum(x, 0.0) - x * tm + jnp.log1p(jnp.exp(-jnp.abs(x)))
            p_t = p * tm + (1 - p) * (1 - tm)
            fl = ce * (1 - p_t) ** focal_gamma
            fl = (focal_alpha * tm + (1 - focal_alpha) * (1 - tm)) * fl
            loss_mm = fl.reshape(N, M, -1).mean(-1) / num_objects

            pi = p.reshape(N, M, -1)
            ti = tm.reshape(N, M, -1)
            numer = 2 * (pi * ti).sum(-1)
            denom = pi.sum(-1) + ti.sum(-1)
            loss_md = (1 - (numer + 1) / (denom + 1)) / num_objects

            pm = x.reshape(N, M, -1) > 0
            gm = tm.reshape(N, M, -1) > 0
            ai = (pm & gm).sum(-1).astype(jnp.float32)
            au = (pm | gm).sum(-1).astype(jnp.float32)
            actual = ai / jnp.maximum(au, 1.0)
            loss_mi = (ious_all[t, s].astype(jnp.float32) - actual) ** 2 / num_objects

            combo = (loss_mm * weight_dict['loss_mask']
                     + loss_md * weight_dict['loss_dice'])
            best = jnp.argmin(combo, -1)
            bi = jnp.arange(N)
            acc['loss_mask'] += loss_mm[bi, best].sum()
            acc['loss_dice'] += loss_md[bi, best].sum()
            acc['loss_iou'] += loss_mi[bi, best].sum()
    core = 0.0
    for k, wgt in weight_dict.items():
        if wgt != 0:
            core = core + acc[k] * wgt
    acc['core_loss'] = core
    return acc


# ----------------------------------------------------------------------------
if __name__ == "__main__":
    # Small shapes: T frames, S multistep predictions, N objects, M masks, HxW
    T, S, N, M, H, W = 2, 2, 2, 3, 16, 16
    weight_dict = {'loss_mask': 20.0, 'loss_dice': 1.0,
                   'loss_iou': 1.0, 'loss_class': 1.0}

    key = jax.random.PRNGKey(0)
    k1, k2, k3 = jax.random.split(key, 3)
    src_all = jax.random.normal(k1, (T, S, N, M, H, W), dtype=jnp.float32)
    ious_all = jax.random.uniform(k2, (T, S, N, M), dtype=jnp.float32)
    targets_batch = (jax.random.uniform(k3, (T, N, H, W)) > 0.5).astype(jnp.float32)

    run = jax.jit(functools.partial(multistep_multimask_losses,
                                    weight_dict=weight_dict))
    losses = run(src_all, ious_all, targets_batch)
    losses = jax.tree_util.tree_map(jax.block_until_ready, losses)

    ref = _ref_losses(src_all, ious_all, targets_batch, weight_dict)
    for k in ('loss_mask', 'loss_dice', 'loss_iou', 'loss_class', 'core_loss'):
        np.testing.assert_allclose(np.asarray(losses[k]), np.asarray(ref[k]),
                                   rtol=2e-4, atol=1e-5)

    print("KERNEL_OK")
</pallas_src>

<mosaic_0001>
module attributes {stable_mosaic.version = 11 : i64} {
  func.func @_stats_kernel(%arg0: i32, %arg1: i32, %arg2: memref<1x12x8x128xf32, #tpu.memory_space<vmem>>, %arg3: memref<1x2x8x128xf32, #tpu.memory_space<vmem>>, %arg4: memref<128x128xf32, #tpu.memory_space<vmem>>, %arg5: memref<1x5x96x128xf32, #tpu.memory_space<vmem>>, %arg6: memref<1x16x128xf32, #tpu.memory_space<vmem>>) attributes {dimension_semantics = [#tpu.dimension_semantics<parallel>, #tpu.dimension_semantics<arbitrary>], iteration_bounds = array<i64: 2, 1>, scalar_prefetch = 0 : i64, scratch_operands = 0 : i64, tpu.core_type = #tpu.core_type<tc>, window_params = [{transform_indices = @transform_0, window_bounds = array<i64: 1, 12, 8, 128>}, {transform_indices = @transform_1, window_bounds = array<i64: 1, 2, 8, 128>}, {pipeline_mode = #tpu.pipeline_mode<synchronous>, transform_indices = @transform_2, window_bounds = array<i64: 128, 128>}, {transform_indices = @transform_3, window_bounds = array<i64: 1, 5, 96, 128>}, {transform_indices = @transform_4, window_bounds = array<i64: 1, 16, 128>}]} {
    %c0_i32 = arith.constant 0 : i32
    %0 = arith.cmpi eq, %arg1, %c0_i32 : i32
    %1 = arith.extui %0 : i1 to i32
    %c0_i32_0 = arith.constant 0 : i32
    %2 = arith.cmpi ne, %1, %c0_i32_0 : i32
    scf.if %2 {
      %cst_64 = arith.constant 0.000000e+00 : f32
      %95 = vector.broadcast %cst_64 : f32 to vector<1x5x96x128xf32>
      %c0_65 = arith.constant 0 : index
      %c0_66 = arith.constant 0 : index
      %c0_67 = arith.constant 0 : index
      %c0_68 = arith.constant 0 : index
      %96 = vector.load %arg5[%c0_65, %c0_66, %c0_67, %c0_68] : memref<1x5x96x128xf32, #tpu.memory_space<vmem>>, vector<1x5x96x128xf32>
      tpu.vector_store %arg5[%c0_65, %c0_66, %c0_67, %c0_68], %95 {strides = array<i32>} : memref<1x5x96x128xf32, #tpu.memory_space<vmem>>, vector<1x5x96x128xf32>,
      %cst_69 = arith.constant 0.000000e+00 : f32
      %97 = vector.broadcast %cst_69 : f32 to vector<1x16x128xf32>
      %c0_70 = arith.constant 0 : index
      %c0_71 = arith.constant 0 : index
      %c0_72 = arith.constant 0 : index
      %98 = vector.load %arg6[%c0_70, %c0_71, %c0_72] : memref<1x16x128xf32, #tpu.memory_space<vmem>>, vector<1x16x128xf32>
      tpu.vector_store %arg6[%c0_70, %c0_71, %c0_72], %97 {strides = array<i32>} : memref<1x16x128xf32, #tpu.memory_space<vmem>>, vector<1x16x128xf32>,
    } else {
    }
    %c0 = arith.constant 0 : index
    %c0_1 = arith.constant 0 : index
    %c0_2 = arith.constant 0 : index
    %c0_3 = arith.constant 0 : index
    %3 = vector.load %arg2[%c0, %c0_1, %c0_2, %c0_3] : memref<1x12x8x128xf32, #tpu.memory_space<vmem>>, vector<1x12x8x128xf32>
    %4 = vector.shape_cast %3 : vector<1x12x8x128xf32> to vector<12x8x128xf32>
    %5 = vector.shape_cast %4 : vector<12x8x128xf32> to vector<2x2x3x8x128xf32>
    %c0_4 = arith.constant 0 : index
    %c0_5 = arith.constant 0 : index
    %c0_6 = arith.constant 0 : index
    %c0_7 = arith.constant 0 : index
    %6 = vector.load %arg3[%c0_4, %c0_5, %c0_6, %c0_7] : memref<1x2x8x128xf32, #tpu.memory_space<vmem>>, vector<1x2x8x128xf32>
    %7 = vector.shape_cast %6 : vector<1x2x8x128xf32> to vector<2x8x128xf32>
    %8 = vector.shape_cast %7 : vector<2x8x128xf32> to vector<1x2x1x8x128xf32>
    %9 = arith.negf %5 : vector<2x2x3x8x128xf32>
    %10 = math.exp %9 : vector<2x2x3x8x128xf32>
    %cst = arith.constant 1.000000e+00 : f32
    %11 = vector.broadcast %cst : f32 to vector<2x2x3x8x128xf32>
    %12 = arith.addf %11, %10 : vector<2x2x3x8x128xf32>
    %13 = arith.divf %11, %12 : vector<2x2x3x8x128xf32>
    %cst_8 = arith.constant 1.000000e+00 : f32
    %14 = vector.broadcast %cst_8 : f32 to vector<2x2x3x8x128xf32>
    %15 = arith.subf %14, %13 : vector<2x2x3x8x128xf32>
    %16 = arith.maximumf %13, %15 : vector<2x2x3x8x128xf32>
    %17 = math.log %16 : vector<2x2x3x8x128xf32>
    %cst_9 = arith.constant 0.000000e+00 : f32
    %18 = vector.broadcast %cst_9 : f32 to vector<2x2x3x8x128xf32>
    %19 = arith.subf %18, %17 : vector<2x2x3x8x128xf32>
    %cst_10 = arith.constant 0.000000e+00 : f32
    %20 = vector.broadcast %cst_10 : f32 to vector<2x2x3x8x128xf32>
    %21 = arith.maximumf %5, %20 : vector<2x2x3x8x128xf32>
    %22 = vector.broadcast %8 : vector<1x2x1x8x128xf32> to vector<2x2x3x8x128xf32>
    %23 = arith.mulf %5, %22 : vector<2x2x3x8x128xf32>
    %24 = arith.subf %21, %23 : vector<2x2x3x8x128xf32>
    %25 = arith.addf %24, %19 : vector<2x2x3x8x128xf32>
    %26 = vector.broadcast %8 : vector<1x2x1x8x128xf32> to vector<2x2x3x8x128xf32>
    %27 = arith.mulf %13, %26 : vector<2x2x3x8x128xf32>
    %28 = arith.subf %13, %27 : vector<2x2x3x8x128xf32>
    %29 = vector.broadcast %8 : vector<1x2x1x8x128xf32> to vector<2x2x3x8x128xf32>
    %30 = arith.subf %29, %27 : vector<2x2x3x8x128xf32>
    %31 = arith.addf %28, %30 : vector<2x2x3x8x128xf32>
    %32 = arith.mulf %31, %31 : vector<2x2x3x8x128xf32>
    %cst_11 = arith.constant -5.000000e-01 : f32
    %33 = vector.broadcast %cst_11 : f32 to vector<1x2x1x8x128xf32>
    %34 = arith.mulf %33, %8 : vector<1x2x1x8x128xf32>
    %cst_12 = arith.constant 7.500000e-01 : f32
    %35 = vector.broadcast %cst_12 : f32 to vector<1x2x1x8x128xf32>
    %36 = arith.addf %35, %34 : vector<1x2x1x8x128xf32>
    %37 = vector.broadcast %36 : vector<1x2x1x8x128xf32> to vector<2x2x3x8x128xf32>
    %38 = arith.mulf %25, %37 : vector<2x2x3x8x128xf32>
    %39 = arith.mulf %38, %32 : vector<2x2x3x8x128xf32>
    %cst_13 = arith.constant 0.000000e+00 : f32
    %40 = vector.broadcast %cst_13 : f32 to vector<2x2x3x8x128xf32>
    %41 = arith.cmpf ogt, %5, %40 : vector<2x2x3x8x128xf32>
    %42 = arith.extui %41 : vector<2x2x3x8x128xi1> to vector<2x2x3x8x128xi32>
    %43 = arith.sitofp %42 : vector<2x2x3x8x128xi32> to vector<2x2x3x8x128xf32>
    %44 = vector.broadcast %8 : vector<1x2x1x8x128xf32> to vector<2x2x3x8x128xf32>
    %45 = arith.mulf %43, %44 : vector<2x2x3x8x128xf32>
    %c0_14 = arith.constant 0 : index
    %c0_15 = arith.constant 0 : index
    %46 = vector.load %arg4[%c0_14, %c0_15] : memref<128x128xf32, #tpu.memory_space<vmem>>, vector<128x128xf32>
    %47 = vector.shape_cast %39 : vector<2x2x3x8x128xf32> to vector<96x128xf32>
    %cst_16 = arith.constant dense<0.000000e+00> : vector<96x128xf32>
    %48 = tpu.matmul %47, %46, %cst_16 {dimension_numbers = #tpu.dot_dimension_numbers<[1], [0], [0], [1], [0, 0, 1, 1], [], []>, precision = #tpu.contract_precision<fp32>} : vector<96x128xf32>, vector<128x128xf32>, vector<96x128xf32> -> vector<96x128xf32>
    %c0_17 = arith.constant 0 : index
    %c0_18 = arith.constant 0 : index
    %c0_19 = arith.constant 0 : index
    %c0_20 = arith.constant 0 : index
    %49 = vector.load %arg5[%c0_17, %c0_18, %c0_19, %c0_20] : memref<1x5x96x128xf32, #tpu.memory_space<vmem>>, vector<1x1x96x128xf32>
    %50 = vector.shape_cast %49 : vector<1x1x96x128xf32> to vector<96x128xf32>
    %51 = arith.addf %50, %48 : vector<96x128xf32>
    %c0_21 = arith.constant 0 : index
    %c0_22 = arith.constant 0 : index
    %c0_23 = arith.constant 0 : index
    %c0_24 = arith.constant 0 : index
    %52 = vector.load %arg5[%c0_21, %c0_22, %c0_23, %c0_24] : memref<1x5x96x128xf32, #tpu.memory_space<vmem>>, vector<1x1x96x128xf32>
    %53 = vector.shape_cast %52 : vector<1x1x96x128xf32> to vector<96x128xf32>
    %54 = vector.shape_cast %51 : vector<96x128xf32> to vector<1x1x96x128xf32>
    tpu.vector_store %arg5[%c0_21, %c0_22, %c0_23, %c0_24], %54 {strides = array<i32>} : memref<1x5x96x128xf32, #tpu.memory_space<vmem>>, vector<1x1x96x128xf32>,
    %55 = vector.shape_cast %27 : vector<2x2x3x8x128xf32> to vector<96x128xf32>
    %cst_25 = arith.constant dense<0.000000e+00> : vector<96x128xf32>
    %56 = tpu.matmul %55, %46, %cst_25 {dimension_numbers = #tpu.dot_dimension_numbers<[1], [0], [0], [1], [0, 0, 1, 1], [], []>, precision = #tpu.contract_precision<fp32>} : vector<96x128xf32>, vector<128x128xf32>, vector<96x128xf32> -> vector<96x128xf32>
    %c0_26 = arith.constant 0 : index
    %c1 = arith.constant 1 : index
    %c0_27 = arith.constant 0 : index
    %c0_28 = arith.constant 0 : index
    %57 = vector.load %arg5[%c0_26, %c1, %c0_27, %c0_28] : memref<1x5x96x128xf32, #tpu.memory_space<vmem>>, vector<1x1x96x128xf32>
    %58 = vector.shape_cast %57 : vector<1x1x96x128xf32> to vector<96x128xf32>
    %59 = arith.addf %58, %56 : vector<96x128xf32>
    %c0_29 = arith.constant 0 : index
    %c1_30 = arith.constant 1 : index
    %c0_31 = arith.constant 0 : index
    %c0_32 = arith.constant 0 : index
    %60 = vector.load %arg5[%c0_29, %c1_30, %c0_31, %c0_32] : memref<1x5x96x128xf32, #tpu.memory_space<vmem>>, vector<1x1x96x128xf32>
    %61 = vector.shape_cast %60 : vector<1x1x96x128xf32> to vector<96x128xf32>
    %62 = vector.shape_cast %59 : vector<96x128xf32> to vector<1x1x96x128xf32>
    tpu.vector_store %arg5[%c0_29, %c1_30, %c0_31, %c0_32], %62 {strides = array<i32>} : memref<1x5x96x128xf32, #tpu.memory_space<vmem>>, vector<1x1x96x128xf32>,
    %63 = vector.shape_cast %13 : vector<2x2x3x8x128xf32> to vector<96x128xf32>
    %cst_33 = arith.constant dense<0.000000e+00> : vector<96x128xf32>
    %64 = tpu.matmul %63, %46, %cst_33 {dimension_numbers = #tpu.dot_dimension_numbers<[1], [0], [0], [1], [0, 0, 1, 1], [], []>, precision = #tpu.contract_precision<fp32>} : vector<96x128xf32>, vector<128x128xf32>, vector<96x128xf32> -> vector<96x128xf32>
    %c0_34 = arith.constant 0 : index
    %c2 = arith.constant 2 : index
    %c0_35 = arith.constant 0 : index
    %c0_36 = arith.constant 0 : index
    %65 = vector.load %arg5[%c0_34, %c2, %c0_35, %c0_36] : memref<1x5x96x128xf32, #tpu.memory_space<vmem>>, vector<1x1x96x128xf32>
    %66 = vector.shape_cast %65 : vector<1x1x96x128xf32> to vector<96x128xf32>
    %67 = arith.addf %66, %64 : vector<96x128xf32>
    %c0_37 = arith.constant 0 : index
    %c2_38 = arith.constant 2 : index
    %c0_39 = arith.constant 0 : index
    %c0_40 = arith.constant 0 : index
    %68 = vector.load %arg5[%c0_37, %c2_38, %c0_39, %c0_40] : memref<1x5x96x128xf32, #tpu.memory_space<vmem>>, vector<1x1x96x128xf32>
    %69 = vector.shape_cast %68 : vector<1x1x96x128xf32> to vector<96x128xf32>
    %70 = vector.shape_cast %67 : vector<96x128xf32> to vector<1x1x96x128xf32>
    tpu.vector_store %arg5[%c0_37, %c2_38, %c0_39, %c0_40], %70 {strides = array<i32>} : memref<1x5x96x128xf32, #tpu.memory_space<vmem>>, vector<1x1x96x128xf32>,
    %71 = vector.shape_cast %45 : vector<2x2x3x8x128xf32> to vector<96x128xf32>
    %cst_41 = arith.constant dense<0.000000e+00> : vector<96x128xf32>
    %72 = tpu.matmul %71, %46, %cst_41 {dimension_numbers = #tpu.dot_dimension_numbers<[1], [0], [0], [1], [0, 0, 1, 1], [], []>, precision = #tpu.contract_precision<fp32>} : vector<96x128xf32>, vector<128x128xf32>, vector<96x128xf32> -> vector<96x128xf32>
    %c0_42 = arith.constant 0 : index
    %c3 = arith.constant 3 : index
    %c0_43 = arith.constant 0 : index
    %c0_44 = arith.constant 0 : index
    %73 = vector.load %arg5[%c0_42, %c3, %c0_43, %c0_44] : memref<1x5x96x128xf32, #tpu.memory_space<vmem>>, vector<1x1x96x128xf32>
    %74 = vector.shape_cast %73 : vector<1x1x96x128xf32> to vector<96x128xf32>
    %75 = arith.addf %74, %72 : vector<96x128xf32>
    %c0_45 = arith.constant 0 : index
    %c3_46 = arith.constant 3 : index
    %c0_47 = arith.constant 0 : index
    %c0_48 = arith.constant 0 : index
    %76 = vector.load %arg5[%c0_45, %c3_46, %c0_47, %c0_48] : memref<1x5x96x128xf32, #tpu.memory_space<vmem>>, vector<1x1x96x128xf32>
    %77 = vector.shape_cast %76 : vector<1x1x96x128xf32> to vector<96x128xf32>
    %78 = vector.shape_cast %75 : vector<96x128xf32> to vector<1x1x96x128xf32>
    tpu.vector_store %arg5[%c0_45, %c3_46, %c0_47, %c0_48], %78 {strides = array<i32>} : memref<1x5x96x128xf32, #tpu.memory_space<vmem>>, vector<1x1x96x128xf32>,
    %79 = vector.shape_cast %43 : vector<2x2x3x8x128xf32> to vector<96x128xf32>
    %cst_49 = arith.constant dense<0.000000e+00> : vector<96x128xf32>
    %80 = tpu.matmul %79, %46, %cst_49 {dimension_numbers = #tpu.dot_dimension_numbers<[1], [0], [0], [1], [0, 0, 1, 1], [], []>, precision = #tpu.contract_precision<fp32>} : vector<96x128xf32>, vector<128x128xf32>, vector<96x128xf32> -> vector<96x128xf32>
    %c0_50 = arith.constant 0 : index
    %c4 = arith.constant 4 : index
    %c0_51 = arith.constant 0 : index
    %c0_52 = arith.constant 0 : index
    %81 = vector.load %arg5[%c0_50, %c4, %c0_51, %c0_52] : memref<1x5x96x128xf32, #tpu.memory_space<vmem>>, vector<1x1x96x128xf32>
    %82 = vector.shape_cast %81 : vector<1x1x96x128xf32> to vector<96x128xf32>
    %83 = arith.addf %82, %80 : vector<96x128xf32>
    %c0_53 = arith.constant 0 : index
    %c4_54 = arith.constant 4 : index
    %c0_55 = arith.constant 0 : index
    %c0_56 = arith.constant 0 : index
    %84 = vector.load %arg5[%c0_53, %c4_54, %c0_55, %c0_56] : memref<1x5x96x128xf32, #tpu.memory_space<vmem>>, vector<1x1x96x128xf32>
    %85 = vector.shape_cast %84 : vector<1x1x96x128xf32> to vector<96x128xf32>
    %86 = vector.shape_cast %83 : vector<96x128xf32> to vector<1x1x96x128xf32>
    tpu.vector_store %arg5[%c0_53, %c4_54, %c0_55, %c0_56], %86 {strides = array<i32>} : memref<1x5x96x128xf32, #tpu.memory_space<vmem>>, vector<1x1x96x128xf32>,
    %c0_57 = arith.constant 0 : index
    %c0_58 = arith.constant 0 : index
    %c0_59 = arith.constant 0 : index
    %87 = vector.load %arg6[%c0_57, %c0_58, %c0_59] : memref<1x16x128xf32, #tpu.memory_space<vmem>>, vector<1x16x128xf32>
    %88 = vector.shape_cast %87 : vector<1x16x128xf32> to vector<16x128xf32>
    %89 = vector.shape_cast %7 : vector<2x8x128xf32> to vector<16x128xf32>
    %cst_60 = arith.constant dense<0.000000e+00> : vector<16x128xf32>
    %90 = tpu.matmul %89, %46, %cst_60 {dimension_numbers = #tpu.dot_dimension_numbers<[1], [0], [0], [1], [0, 0, 1, 1], [], []>, precision = #tpu.contract_precision<fp32>} : vector<16x128xf32>, vector<128x128xf32>, vector<16x128xf32> -> vector<16x128xf32>
    %91 = arith.addf %88, %90 : vector<16x128xf32>
    %c0_61 = arith.constant 0 : index
    %c0_62 = arith.constant 0 : index
    %c0_63 = arith.constant 0 : index
    %92 = vector.load %arg6[%c0_61, %c0_62, %c0_63] : memref<1x16x128xf32, #tpu.memory_space<vmem>>, vector<1x16x128xf32>
    %93 = vector.shape_cast %92 : vector<1x16x128xf32> to vector<16x128xf32>
    %94 = vector.shape_cast %91 : vector<16x128xf32> to vector<1x16x128xf32>
    tpu.vector_store %arg6[%c0_61, %c0_62, %c0_63], %94 {strides = array<i32>} : memref<1x16x128xf32, #tpu.memory_space<vmem>>, vector<1x16x128xf32>,
    return
  }
  func.func @transform_0(%arg0: i32, %arg1: i32) -> (i32, i32, i32, i32) {
    %c0_i32 = arith.constant 0 : i32
    %c0_i32_0 = arith.constant 0 : i32
    %c0_i32_1 = arith.constant 0 : i32
    return %arg0, %c0_i32, %c0_i32_0, %arg1 : i32, i32, i32, i32
  }
  func.func @transform_1(%arg0: i32, %arg1: i32) -> (i32, i32, i32, i32) {
    %c0_i32 = arith.constant 0 : i32
    %c0_i32_0 = arith.constant 0 : i32
    %c0_i32_1 = arith.constant 0 : i32
    return %arg0, %c0_i32, %c0_i32_0, %arg1 : i32, i32, i32, i32
  }
  func.func @transform_2(%arg0: i32, %arg1: i32) -> (i32, i32) {
    %c0_i32 = arith.constant 0 : i32
    %c0_i32_0 = arith.constant 0 : i32
    %c0_i32_1 = arith.constant 0 : i32
    return %c0_i32, %c0_i32_0 : i32, i32
  }
  func.func @transform_3(%arg0: i32, %arg1: i32) -> (i32, i32, i32, i32) {
    %c0_i32 = arith.constant 0 : i32
    %c0_i32_0 = arith.constant 0 : i32
    %c0_i32_1 = arith.constant 0 : i32
    %c0_i32_2 = arith.constant 0 : i32
    return %arg0, %c0_i32, %c0_i32_0, %c0_i32_1 : i32, i32, i32, i32
  }
  func.func @transform_4(%arg0: i32, %arg1: i32) -> (i32, i32, i32) {
    %c0_i32 = arith.constant 0 : i32
    %c0_i32_0 = arith.constant 0 : i32
    %c0_i32_1 = arith.constant 0 : i32
    return %arg0, %c0_i32, %c0_i32_0 : i32, i32, i32
  }
}

</mosaic_0001>

<llo_original>
// kernel: squeeze.10
$region0: #{squeeze.10}
  %s0 = inlined_call_operand.vmem [shape: f32[2,5,96,1], index: 0, kind: input, shape index: {}]
  %s1 = inlined_call_operand.vmem [shape: f32[2,5,2,2,3,8], index: 1, kind: output, shape index: {}]
  $region1: #{squeeze.10} parent=0
    #allocation0 [shape = 'u8[163840]{0}', space=vmem, size = 0x28000, scoped, tag = 'scoped mem for output reshape']
    #allocation1 [shape = 'u8[20480]{0}', space=vmem, size = 0x5000, scoped, tag = 'scoped mem for input reshape']
    %s3 = ssub.s32 4, 1
    %s4 = scalar_lea.vmem %s0, 8
    %v5 = vld [vmem:[%s4] sm:%s3]
    %s6 = scalar_lea.vmem [#allocation1], 32
    %7 = vst [vmem:[%s6] sm:%s3] %v5
    %s8 = scalar_lea.vmem %s0, 6
    %v9 = vld [vmem:[%s8] sm:%s3]
    %s10 = scalar_lea.vmem [#allocation1], 24
    %11 = vst [vmem:[%s10] sm:%s3] %v9
    %s12 = scalar_lea.vmem %s0, 4
    %v13 = vld [vmem:[%s12] sm:%s3]
    %s14 = scalar_lea.vmem [#allocation1], 16
    %15 = vst [vmem:[%s14] sm:%s3] %v13
    %s16 = scalar_lea.vmem %s0, 2
    %v17 = vld [vmem:[%s16] sm:%s3]
    %s18 = scalar_lea.vmem [#allocation1], 8
    %19 = vst [vmem:[%s18] sm:%s3] %v17
    %v20 = vld [vmem:[%s0] sm:%s3]
    %21 = vst [vmem:[#allocation1] sm:%s3] %v20
    %v22 = vld [vmem:[#allocation1] sm:$0x3]
    %vm23 = vcmask 64512
    %24 = vst.msk [vmem:[#allocation0] sm:$0x1] %vm23, %v22
    %s25 = scalar_lea.vmem [#allocation0], 31
    %26 = vst.msk [vmem:[%s25] sm:$0x2] %vm23, %v22
    %s27 = scalar_lea.vmem [#allocation1], 8
    %v28 = vld [vmem:[%s27] sm:$0x3]
    %vm29 = vcmask 64512
    %s30 = scalar_lea.vmem [#allocation0], 64
    %31 = vst.msk [vmem:[%s30] sm:$0x1] %vm29, %v28
    %s32 = scalar_lea.vmem [#allocation0], 95
    %33 = vst.msk [vmem:[%s32] sm:$0x2] %vm29, %v28
    %s34 = scalar_lea.vmem [#allocation1], 16
    %v35 = vld [vmem:[%s34] sm:$0x3]
    %vm36 = vcmask 64512
    %s37 = scalar_lea.vmem [#allocation0], 128
    %38 = vst.msk [vmem:[%s37] sm:$0x1] %vm36, %v35
    %s39 = scalar_lea.vmem [#allocation0], 159
    %40 = vst.msk [vmem:[%s39] sm:$0x2] %vm36, %v35
    %s41 = scalar_lea.vmem [#allocation1], 24
    %v42 = vld [vmem:[%s41] sm:$0x3]
    %vm43 = vcmask 64512
    %s44 = scalar_lea.vmem [#allocation0], 192
    %45 = vst.msk [vmem:[%s44] sm:$0x1] %vm43, %v42
    %s46 = scalar_lea.vmem [#allocation0], 223
    %47 = vst.msk [vmem:[%s46] sm:$0x2] %vm43, %v42
    %s48 = scalar_lea.vmem [#allocation1], 32
    %v49 = vld [vmem:[%s48] sm:$0x3]
    %vm50 = vcmask 64512
    %s51 = scalar_lea.vmem [#allocation0], 256
    %52 = vst.msk [vmem:[%s51] sm:$0x1] %vm50, %v49
    %s53 = scalar_lea.vmem [#allocation0], 287
    %54 = vst.msk [vmem:[%s53] sm:$0x2] %vm50, %v49
    %v55 = vld.sshfl [vmem:[#allocation1] sm:$0xff pattern:$0x99999810]
    %s56 = scalar_lea.vmem [#allocation1], 16
    %v57 = vld.sshfl [vmem:[%s56] sm:$0xff pattern:$0x98100000]
    %vm58 = vcmask 1047556
    %v59 = vsel %vm58, %v57, %v55
    %60 = vrot.lane.b32.xlu0 %v59, 120
    %v61 = vpop.permute.xlu0 %60
    %vm62 = vcmask 64512
    %s63 = scalar_lea.vmem [#allocation0], 1
    %64 = vst.msk [vmem:[%s63] sm:$0x1] %vm62, %v61
    %s65 = scalar_lea.vmem [#allocation0], 32
    %66 = vst.msk [vmem:[%s65] sm:$0x2] %vm62, %v61
    %s67 = scalar_lea.vmem [#allocation0], 63
    %68 = vst.msk [vmem:[%s67] sm:$0x4] %vm62, %v61
    %s69 = scalar_lea.vmem [#allocation0], 94
    %70 = vst.msk [vmem:[%s69] sm:$0x8] %vm62, %v61
    %s71 = scalar_lea.vmem [#allocation0], 125
    %72 = vst.msk [vmem:[%s71] sm:$0x10] %vm62, %v61
    %s73 = scalar_lea.vmem [#allocation0], 156
    %74 = vst.msk [vmem:[%s73] sm:$0x20] %vm62, %v61
    %s75 = scalar_lea.vmem [#allocation0], 187
    %76 = vst.msk [vmem:[%s75] sm:$0x40] %vm62, %v61
    %s77 = scalar_lea.vmem [#allocation0], 218
    %78 = vst.msk [vmem:[%s77] sm:$0x80] %vm62, %v61
    %s79 = scalar_lea.vmem [#allocation1], 32
    %v80 = vld [vmem:[%s79] sm:$0x3]
    %81 = vrot.lane.b32.xlu0 %v80, 120
    %v82 = vpop.permute.xlu0 %81
    %vm83 = vcmask 64512
    %s84 = scalar_lea.vmem [#allocation0], 257
    %85 = vst.msk [vmem:[%s84] sm:$0x1] %vm83, %v82
    %s86 = scalar_lea.vmem [#allocation0], 288
    %87 = vst.msk [vmem:[%s86] sm:$0x2] %vm83, %v82
    %v88 = vld.sshfl [vmem:[#allocation1] sm:$0xff pattern:$0x99999810]
    %s89 = scalar_lea.vmem [#allocation1], 16
    %v90 = vld.sshfl [vmem:[%s89] sm:$0xff pattern:$0x98100000]
    %vm91 = vcmask 1047556
    %v92 = vsel %vm91, %v90, %v88
    %93 = vrot.lane.b32.xlu0 %v92, 112
    %v94 = vpop.permute.xlu0 %93
    %vm95 = vcmask 64512
    %s96 = scalar_lea.vmem [#allocation0], 2
    %97 = vst.msk [vmem:[%s96] sm:$0x1] %vm95, %v94
    %s98 = scalar_lea.vmem [#allocation0], 33
    %99 = vst.msk [vmem:[%s98] sm:$0x2] %vm95, %v94
    %s100 = scalar_lea.vmem [#allocation0], 64
    %101 = vst.msk [vmem:[%s100] sm:$0x4] %vm95, %v94
    %s102 = scalar_lea.vmem [#allocation0], 95
    %103 = vst.msk [vmem:[%s102] sm:$0x8] %vm95, %v94
    %s104 = scalar_lea.vmem [#allocation0], 126
    %105 = vst.msk [vmem:[%s104] sm:$0x10] %vm95, %v94
    %s106 = scalar_lea.vmem [#allocation0], 157
    %107 = vst.msk [vmem:[%s106] sm:$0x20] %vm95, %v94
    %s108 = scalar_lea.vmem [#allocation0], 188
    %109 = vst.msk [vmem:[%s108] sm:$0x40] %vm95, %v94
    %s110 = scalar_lea.vmem [#allocation0], 219
    %111 = vst.msk [vmem:[%s110] sm:$0x80] %vm95, %v94
    %s112 = scalar_lea.vmem [#allocation1], 32
    %v113 = vld [vmem:[%s112] sm:$0x3]
    %114 = vrot.lane.b32.xlu0 %v113, 112
    %v115 = vpop.permute.xlu0 %114
    %vm116 = vcmask 64512
    %s117 = scalar_lea.vmem [#allocation0], 258
    %118 = vst.msk [vmem:[%s117] sm:$0x1] %vm116, %v115
    %s119 = scalar_lea.vmem [#allocation0], 289
    %120 = vst.msk [vmem:[%s119] sm:$0x2] %vm116, %v115
    %v121 = vld.sshfl [vmem:[#allocation1] sm:$0xff pattern:$0x99999810]
    %s122 = scalar_lea.vmem [#allocation1], 16
    %v123 = vld.sshfl [vmem:[%s122] sm:$0xff pattern:$0x98100000]
    %vm124 = vcmask 1047556
    %v125 = vsel %vm124, %v123, %v121
    %126 = vrot.lane.b32.xlu0 %v125, 104
    %v127 = vpop.permute.xlu0 %126
    %vm128 = vcmask 64512
    %s129 = scalar_lea.vmem [#allocation0], 8
    %130 = vst.msk [vmem:[%s129] sm:$0x1] %vm128, %v127
    %s131 = scalar_lea.vmem [#allocation0], 39
    %132 = vst.msk [vmem:[%s131] sm:$0x2] %vm128, %v127
    %s133 = scalar_lea.vmem [#allocation0], 70
    %134 = vst.msk [vmem:[%s133] sm:$0x4] %vm128, %v127
    %s135 = scalar_lea.vmem [#allocation0], 101
    %136 = vst.msk [vmem:[%s135] sm:$0x8] %vm128, %v127
    %s137 = scalar_lea.vmem [#allocation0], 132
    %138 = vst.msk [vmem:[%s137] sm:$0x10] %vm128, %v127
    %s139 = scalar_lea.vmem [#allocation0], 163
    %140 = vst.msk [vmem:[%s139] sm:$0x20] %vm128, %v127
    %s141 = scalar_lea.vmem [#allocation0], 194
    %142 = vst.msk [vmem:[%s141] sm:$0x40] %vm128, %v127
    %s143 = scalar_lea.vmem [#allocation0], 225
    %144 = vst.msk [vmem:[%s143] sm:$0x80] %vm128, %v127
    %s145 = scalar_lea.vmem [#allocation1], 32
    %v146 = vld [vmem:[%s145] sm:$0x3]
    %147 = vrot.lane.b32.xlu0 %v146, 104
    %v148 = vpop.permute.xlu0 %147
    %vm149 = vcmask 64512
    %s150 = scalar_lea.vmem [#allocation0], 264
    %151 = vst.msk [vmem:[%s150] sm:$0x1] %vm149, %v148
    %s152 = scalar_lea.vmem [#allocation0], 295
    %153 = vst.msk [vmem:[%s152] sm:$0x2] %vm149, %v148
    %v154 = vld.sshfl [vmem:[#allocation1] sm:$0xff pattern:$0x99999810]
    %s155 = scalar_lea.vmem [#allocation1], 16
    %v156 = vld.sshfl [vmem:[%s155] sm:$0xff pattern:$0x98100000]
    %vm157 = vcmask 1047556
    %v158 = vsel %vm157, %v156, %v154
    %159 = vrot.lane.b32.xlu0 %v158, 96
    %v160 = vpop.permute.xlu0 %159
    %vm161 = vcmask 64512
    %s162 = scalar_lea.vmem [#allocation0], 9
    %163 = vst.msk [vmem:[%s162] sm:$0x1] %vm161, %v160
    %s164 = scalar_lea.vmem [#allocation0], 40
    %165 = vst.msk [vmem:[%s164] sm:$0x2] %vm161, %v160
    %s166 = scalar_lea.vmem [#allocation0], 71
    %167 = vst.msk [vmem:[%s166] sm:$0x4] %vm161, %v160
    %s168 = scalar_lea.vmem [#allocation0], 102
    %169 = vst.msk [vmem:[%s168] sm:$0x8] %vm161, %v160
    %s170 = scalar_lea.vmem [#allocation0], 133
    %171 = vst.msk [vmem:[%s170] sm:$0x10] %vm161, %v160
    %s172 = scalar_lea.vmem [#allocation0], 164
    %173 = vst.msk [vmem:[%s172] sm:$0x20] %vm161, %v160
    %s174 = scalar_lea.vmem [#allocation0], 195
    %175 = vst.msk [vmem:[%s174] sm:$0x40] %vm161, %v160
    %s176 = scalar_lea.vmem [#allocation0], 226
    %177 = vst.msk [vmem:[%s176] sm:$0x80] %vm161, %v160
    %s178 = scalar_lea.vmem [#allocation1], 32
    %v179 = vld [vmem:[%s178] sm:$0x3]
    %180 = vrot.lane.b32.xlu0 %v179, 96
    %v181 = vpop.permute.xlu0 %180
    %vm182 = vcmask 64512
    %s183 = scalar_lea.vmem [#allocation0], 265
    %184 = vst.msk [vmem:[%s183] sm:$0x1] %vm182, %v181
    %s185 = scalar_lea.vmem [#allocation0], 296
    %186 = vst.msk [vmem:[%s185] sm:$0x2] %vm182, %v181
    %v187 = vld.sshfl [vmem:[#allocation1] sm:$0xff pattern:$0x99999810]
    %s188 = scalar_lea.vmem [#allocation1], 16
    %v189 = vld.sshfl [vmem:[%s188] sm:$0xff pattern:$0x98100000]
    %vm190 = vcmask 1047556
    %v191 = vsel %vm190, %v189, %v187
    %192 = vrot.lane.b32.xlu0 %v191, 88
    %v193 = vpop.permute.xlu0 %192
    %vm194 = vcmask 64512
    %s195 = scalar_lea.vmem [#allocation0], 10
    %196 = vst.msk [vmem:[%s195] sm:$0x1] %vm194, %v193
    %s197 = scalar_lea.vmem [#allocation0], 41
    %198 = vst.msk [vmem:[%s197] sm:$0x2] %vm194, %v193
    %s199 = scalar_lea.vmem [#allocation0], 72
    %200 = vst.msk [vmem:[%s199] sm:$0x4] %vm194, %v193
    %s201 = scalar_lea.vmem [#allocation0], 103
    %202 = vst.msk [vmem:[%s201] sm:$0x8] %vm194, %v193
    %s203 = scalar_lea.vmem [#allocation0], 134
    %204 = vst.msk [vmem:[%s203] sm:$0x10] %vm194, %v193
    %s205 = scalar_lea.vmem [#allocation0], 165
    %206 = vst.msk [vmem:[%s205] sm:$0x20] %vm194, %v193
    %s207 = scalar_lea.vmem [#allocation0], 196
    %208 = vst.msk [vmem:[%s207] sm:$0x40] %vm194, %v193
    %s209 = scalar_lea.vmem [#allocation0], 227
    %210 = vst.msk [vmem:[%s209] sm:$0x80] %vm194, %v193
    %s211 = scalar_lea.vmem [#allocation1], 32
    %v212 = vld [vmem:[%s211] sm:$0x3]
    %213 = vrot.lane.b32.xlu0 %v212, 88
    %v214 = vpop.permute.xlu0 %213
    %vm215 = vcmask 64512
    %s216 = scalar_lea.vmem [#allocation0], 266
    %217 = vst.msk [vmem:[%s216] sm:$0x1] %vm215, %v214
    %s218 = scalar_lea.vmem [#allocation0], 297
    %219 = vst.msk [vmem:[%s218] sm:$0x2] %vm215, %v214
    %v220 = vld.sshfl [vmem:[#allocation1] sm:$0xff pattern:$0x99999810]
    %s221 = scalar_lea.vmem [#allocation1], 16
    %v222 = vld.sshfl [vmem:[%s221] sm:$0xff pattern:$0x98100000]
    %vm223 = vcmask 1047556
    %v224 = vsel %vm223, %v222, %v220
    %225 = vrot.lane.b32.xlu0 %v224, 80
    %v226 = vpop.permute.xlu0 %225
    %vm227 = vcmask 64512
    %s228 = scalar_lea.vmem [#allocation0], 16
    %229 = vst.msk [vmem:[%s228] sm:$0x1] %vm227, %v226
    %s230 = scalar_lea.vmem [#allocation0], 47
    %231 = vst.msk [vmem:[%s230] sm:$0x2] %vm227, %v226
    %s232 = scalar_lea.vmem [#allocation0], 78
    %233 = vst.msk [vmem:[%s232] sm:$0x4] %vm227, %v226
    %s234 = scalar_lea.vmem [#allocation0], 109
    %235 = vst.msk [vmem:[%s234] sm:$0x8] %vm227, %v226
    %s236 = scalar_lea.vmem [#allocation0], 140
    %237 = vst.msk [vmem:[%s236] sm:$0x10] %vm227, %v226
    %s238 = scalar_lea.vmem [#allocation0], 171
    %239 = vst.msk [vmem:[%s238] sm:$0x20] %vm227, %v226
    %s240 = scalar_lea.vmem [#allocation0], 202
    %241 = vst.msk [vmem:[%s240] sm:$0x40] %vm227, %v226
    %s242 = scalar_lea.vmem [#allocation0], 233
    %243 = vst.msk [vmem:[%s242] sm:$0x80] %vm227, %v226
    %s244 = scalar_lea.vmem [#allocation1], 32
    %v245 = vld [vmem:[%s244] sm:$0x3]
    %246 = vrot.lane.b32.xlu0 %v245, 80
    %v247 = vpop.permute.xlu0 %246
    %vm248 = vcmask 64512
    %s249 = scalar_lea.vmem [#allocation0], 272
    %250 = vst.msk [vmem:[%s249] sm:$0x1] %vm248, %v247
    %s251 = scalar_lea.vmem [#allocation0], 303
    %252 = vst.msk [vmem:[%s251] sm:$0x2] %vm248, %v247
    %v253 = vld.sshfl [vmem:[#allocation1] sm:$0xff pattern:$0x99999810]
    %s254 = scalar_lea.vmem [#allocation1], 16
    %v255 = vld.sshfl [vmem:[%s254] sm:$0xff pattern:$0x98100000]
    %vm256 = vcmask 1047556
    %v257 = vsel %vm256, %v255, %v253
    %258 = vrot.lane.b32.xlu0 %v257, 72
    %v259 = vpop.permute.xlu0 %258
    %vm260 = vcmask 64512
    %s261 = scalar_lea.vmem [#allocation0], 17
    %262 = vst.msk [vmem:[%s261] sm:$0x1] %vm260, %v259
    %s263 = scalar_lea.vmem [#allocation0], 48
    %264 = vst.msk [vmem:[%s263] sm:$0x2] %vm260, %v259
    %s265 = scalar_lea.vmem [#allocation0], 79
    %266 = vst.msk [vmem:[%s265] sm:$0x4] %vm260, %v259
    %s267 = scalar_lea.vmem [#allocation0], 110
    %268 = vst.msk [vmem:[%s267] sm:$0x8] %vm260, %v259
    %s269 = scalar_lea.vmem [#allocation0], 141
    %270 = vst.msk [vmem:[%s269] sm:$0x10] %vm260, %v259
    %s271 = scalar_lea.vmem [#allocation0], 172
    %272 = vst.msk [vmem:[%s271] sm:$0x20] %vm260, %v259
    %s273 = scalar_lea.vmem [#allocation0], 203
    %274 = vst.msk [vmem:[%s273] sm:$0x40] %vm260, %v259
    %s275 = scalar_lea.vmem [#allocation0], 234
    %276 = vst.msk [vmem:[%s275] sm:$0x80] %vm260, %v259
    %s277 = scalar_lea.vmem [#allocation1], 32
    %v278 = vld [vmem:[%s277] sm:$0x3]
    %279 = vrot.lane.b32.xlu0 %v278, 72
    %v280 = vpop.permute.xlu0 %279
    %vm281 = vcmask 64512
    %s282 = scalar_lea.vmem [#allocation0], 273
    %283 = vst.msk [vmem:[%s282] sm:$0x1] %vm281, %v280
    %s284 = scalar_lea.vmem [#allocation0], 304
    %285 = vst.msk [vmem:[%s284] sm:$0x2] %vm281, %v280
    %v286 = vld.sshfl [vmem:[#allocation1] sm:$0xff pattern:$0x99999810]
    %s287 = scalar_lea.vmem [#allocation1], 16
    %v288 = vld.sshfl [vmem:[%s287] sm:$0xff pattern:$0x98100000]
    %vm289 = vcmask 1047556
    %v290 = vsel %vm289, %v288, %v286
    %291 = vrot.lane.b32.xlu0 %v290, 64
    %v292 = vpop.permute.xlu0 %291
    %vm293 = vcmask 64512
    %s294 = scalar_lea.vmem [#allocation0], 18
    %295 = vst.msk [vmem:[%s294] sm:$0x1] %vm293, %v292
    %s296 = scalar_lea.vmem [#allocation0], 49
    %297 = vst.msk [vmem:[%s296] sm:$0x2] %vm293, %v292
    %s298 = scalar_lea.vmem [#allocation0], 80
    %299 = vst.msk [vmem:[%s298] sm:$0x4] %vm293, %v292
    %s300 = scalar_lea.vmem [#allocation0], 111
    %301 = vst.msk [vmem:[%s300] sm:$0x8] %vm293, %v292
    %s302 = scalar_lea.vmem [#allocation0], 142
    %303 = vst.msk [vmem:[%s302] sm:$0x10] %vm293, %v292
    %s304 = scalar_lea.vmem [#allocation0], 173
    %305 = vst.msk [vmem:[%s304] sm:$0x20] %vm293, %v292
    %s306 = scalar_lea.vmem [#allocation0], 204
    %307 = vst.msk [vmem:[%s306] sm:$0x40] %vm293, %v292
    %s308 = scalar_lea.vmem [#allocation0], 235
    %309 = vst.msk [vmem:[%s308] sm:$0x80] %vm293, %v292
    %s310 = scalar_lea.vmem [#allocation1], 32
    %v311 = vld [vmem:[%s310] sm:$0x3]
    %312 = vrot.lane.b32.xlu0 %v311, 64
    %v313 = vpop.permute.xlu0 %312
    %vm314 = vcmask 64512
    %s315 = scalar_lea.vmem [#allocation0], 274
    %316 = vst.msk [vmem:[%s315] sm:$0x1] %vm314, %v313
    %s317 = scalar_lea.vmem [#allocation0], 305
    %318 = vst.msk [vmem:[%s317] sm:$0x2] %vm314, %v313
    %v319 = vld.sshfl [vmem:[#allocation1] sm:$0xff pattern:$0x99999810]
    %s320 = scalar_lea.vmem [#allocation1], 16
    %v321 = vld.sshfl [vmem:[%s320] sm:$0xff pattern:$0x98100000]
    %vm322 = vcmask 1047556
    %v323 = vsel %vm322, %v321, %v319
    %324 = vrot.lane.b32.xlu0 %v323, 56
    %v325 = vpop.permute.xlu0 %324
    %vm326 = vcmask 64512
    %s327 = scalar_lea.vmem [#allocation0], 24
    %328 = vst.msk [vmem:[%s327] sm:$0x1] %vm326, %v325
    %s329 = scalar_lea.vmem [#allocation0], 55
    %330 = vst.msk [vmem:[%s329] sm:$0x2] %vm326, %v325
    %s331 = scalar_lea.vmem [#allocation0], 86
    %332 = vst.msk [vmem:[%s331] sm:$0x4] %vm326, %v325
    %s333 = scalar_lea.vmem [#allocation0], 117
    %334 = vst.msk [vmem:[%s333] sm:$0x8] %vm326, %v325
    %s335 = scalar_lea.vmem [#allocation0], 148
    %336 = vst.msk [vmem:[%s335] sm:$0x10] %vm326, %v325
    %s337 = scalar_lea.vmem [#allocation0], 179
    %338 = vst.msk [vmem:[%s337] sm:$0x20] %vm326, %v325
    %s339 = scalar_lea.vmem [#allocation0], 210
    %340 = vst.msk [vmem:[%s339] sm:$0x40] %vm326, %v325
    %s341 = scalar_lea.vmem [#allocation0], 241
    %342 = vst.msk [vmem:[%s341] sm:$0x80] %vm326, %v325
    %s343 = scalar_lea.vmem [#allocation1], 32
    %v344 = vld [vmem:[%s343] sm:$0x3]
    %345 = vrot.lane.b32.xlu0 %v344, 56
    %v346 = vpop.permute.xlu0 %345
    %vm347 = vcmask 64512
    %s348 = scalar_lea.vmem [#allocation0], 280
    %349 = vst.msk [vmem:[%s348] sm:$0x1] %vm347, %v346
    %s350 = scalar_lea.vmem [#allocation0], 311
    %351 = vst.msk [vmem:[%s350] sm:$0x2] %vm347, %v346
    %v352 = vld.sshfl [vmem:[#allocation1] sm:$0xff pattern:$0x99999810]
    %s353 = scalar_lea.vmem [#allocation1], 16
    %v354 = vld.sshfl [vmem:[%s353] sm:$0xff pattern:$0x98100000]
    %vm355 = vcmask 1047556
    %v356 = vsel %vm355, %v354, %v352
    %357 = vrot.lane.b32.xlu0 %v356, 48
    %v358 = vpop.permute.xlu0 %357
    %vm359 = vcmask 64512
    %s360 = scalar_lea.vmem [#allocation0], 25
    %361 = vst.msk [vmem:[%s360] sm:$0x1] %vm359, %v358
    %s362 = scalar_lea.vmem [#allocation0], 56
    %363 = vst.msk [vmem:[%s362] sm:$0x2] %vm359, %v358
    %s364 = scalar_lea.vmem [#allocation0], 87
    %365 = vst.msk [vmem:[%s364] sm:$0x4] %vm359, %v358
    %s366 = scalar_lea.vmem [#allocation0], 118
    %367 = vst.msk [vmem:[%s366] sm:$0x8] %vm359, %v358
    %s368 = scalar_lea.vmem [#allocation0], 149
    %369 = vst.msk [vmem:[%s368] sm:$0x10] %vm359, %v358
    %s370 = scalar_lea.vmem [#allocation0], 180
    %371 = vst.msk [vmem:[%s370] sm:$0x20] %vm359, %v358
    %s372 = scalar_lea.vmem [#allocation0], 211
    %373 = vst.msk [vmem:[%s372] sm:$0x40] %vm359, %v358
    %s374 = scalar_lea.vmem [#allocation0], 242
    %375 = vst.msk [vmem:[%s374] sm:$0x80] %vm359, %v358
    %s376 = scalar_lea.vmem [#allocation1], 32
    %v377 = vld [vmem:[%s376] sm:$0x3]
    %378 = vrot.lane.b32.xlu0 %v377, 48
    %v379 = vpop.permute.xlu0 %378
    %vm380 = vcmask 64512
    %s381 = scalar_lea.vmem [#allocation0], 281
    %382 = vst.msk [vmem:[%s381] sm:$0x1] %vm380, %v379
    %s383 = scalar_lea.vmem [#allocation0], 312
    %384 = vst.msk [vmem:[%s383] sm:$0x2] %vm380, %v379
    %v385 = vld.sshfl [vmem:[#allocation1] sm:$0xff pattern:$0x99999810]
    %s386 = scalar_lea.vmem [#allocation1], 16
    %v387 = vld.sshfl [vmem:[%s386] sm:$0xff pattern:$0x98100000]
    %vm388 = vcmask 1047556
    %v389 = vsel %vm388, %v387, %v385
    %390 = vrot.lane.b32.xlu0 %v389, 40
    %v391 = vpop.permute.xlu0 %390
    %vm392 = vcmask 64512
    %s393 = scalar_lea.vmem [#allocation0], 26
    %394 = vst.msk [vmem:[%s393] sm:$0x1] %vm392, %v391
    %s395 = scalar_lea.vmem [#allocation0], 57
    %396 = vst.msk [vmem:[%s395] sm:$0x2] %vm392, %v391
    %s397 = scalar_lea.vmem [#allocation0], 88
    %398 = vst.msk [vmem:[%s397] sm:$0x4] %vm392, %v391
    %s399 = scalar_lea.vmem [#allocation0], 119
    %400 = vst.msk [vmem:[%s399] sm:$0x8] %vm392, %v391
    %s401 = scalar_lea.vmem [#allocation0], 150
    %402 = vst.msk [vmem:[%s401] sm:$0x10] %vm392, %v391
    %s403 = scalar_lea.vmem [#allocation0], 181
    %404 = vst.msk [vmem:[%s403] sm:$0x20] %vm392, %v391
    %s405 = scalar_lea.vmem [#allocation0], 212
    %406 = vst.msk [vmem:[%s405] sm:$0x40] %vm392, %v391
    %s407 = scalar_lea.vmem [#allocation0], 243
    %408 = vst.msk [vmem:[%s407] sm:$0x80] %vm392, %v391
    %s409 = scalar_lea.vmem [#allocation1], 32
    %v410 = vld [vmem:[%s409] sm:$0x3]
    %411 = vrot.lane.b32.xlu0 %v410, 40
    %v412 = vpop.permute.xlu0 %411
    %vm413 = vcmask 64512
    %s414 = scalar_lea.vmem [#allocation0], 282
    %415 = vst.msk [vmem:[%s414] sm:$0x1] %vm413, %v412
    %s416 = scalar_lea.vmem [#allocation0], 313
    %417 = vst.msk [vmem:[%s416] sm:$0x2] %vm413, %v412
    %s419 = ssub.s32 16, 1
    %v420 = vld [vmem:[#allocation0] sm:%s419]
    %s422 = ssub.s32 16, 1
    %423 = vst [vmem:[%s1] sm:%s422] %v420
    %s424 = scalar_lea.vmem [#allocation0], 8
    %v425 = vld [vmem:[%s424] sm:%s419]
    %s427 = ssub.s32 16, 1
    %s428 = scalar_lea.vmem %s1, 4
    %429 = vst [vmem:[%s428] sm:%s427] %v425
    %s430 = scalar_lea.vmem [#allocation0], 16
    %v431 = vld [vmem:[%s430] sm:%s419]
    %s433 = ssub.s32 16, 1
    %s434 = scalar_lea.vmem %s1, 8
    %435 = vst [vmem:[%s434] sm:%s433] %v431
    %s436 = scalar_lea.vmem [#allocation0], 24
    %v437 = vld [vmem:[%s436] sm:%s419]
    %s439 = ssub.s32 16, 1
    %s440 = scalar_lea.vmem %s1, 12
    %441 = vst [vmem:[%s440] sm:%s439] %v437
    %s442 = scalar_lea.vmem [#allocation0], 32
    %v443 = vld [vmem:[%s442] sm:%s419]
    %s445 = ssub.s32 16, 1
    %s446 = scalar_lea.vmem %s1, 16
    %447 = vst [vmem:[%s446] sm:%s445] %v443
    %s448 = scalar_lea.vmem [#allocation0], 40
    %v449 = vld [vmem:[%s448] sm:%s419]
    %s451 = ssub.s32 16, 1
    %s452 = scalar_lea.vmem %s1, 20
    %453 = vst [vmem:[%s452] sm:%s451] %v449
    %s454 = scalar_lea.vmem [#allocation0], 48
    %v455 = vld [vmem:[%s454] sm:%s419]
    %s457 = ssub.s32 16, 1
    %s458 = scalar_lea.vmem %s1, 24
    %459 = vst [vmem:[%s458] sm:%s457] %v455
    %s460 = scalar_lea.vmem [#allocation0], 56
    %v461 = vld [vmem:[%s460] sm:%s419]
    %s463 = ssub.s32 16, 1
    %s464 = scalar_lea.vmem %s1, 28
    %465 = vst [vmem:[%s464] sm:%s463] %v461
    %s466 = scalar_lea.vmem [#allocation0], 64
    %v467 = vld [vmem:[%s466] sm:%s419]
    %s469 = ssub.s32 16, 1
    %s470 = scalar_lea.vmem %s1, 32
    %471 = vst [vmem:[%s470] sm:%s469] %v467
    %s472 = scalar_lea.vmem [#allocation0], 72
    %v473 = vld [vmem:[%s472] sm:%s419]
    %s475 = ssub.s32 16, 1
    %s476 = scalar_lea.vmem %s1, 36
    %477 = vst [vmem:[%s476] sm:%s475] %v473
    %s478 = scalar_lea.vmem [#allocation0], 80
    %v479 = vld [vmem:[%s478] sm:%s419]
    %s481 = ssub.s32 16, 1
    %s482 = scalar_lea.vmem %s1, 40
    %483 = vst [vmem:[%s482] sm:%s481] %v479
    %s484 = scalar_lea.vmem [#allocation0], 88
    %v485 = vld [vmem:[%s484] sm:%s419]
    %s487 = ssub.s32 16, 1
    %s488 = scalar_lea.vmem %s1, 44
    %489 = vst [vmem:[%s488] sm:%s487] %v485
    %s490 = scalar_lea.vmem [#allocation0], 96
    %v491 = vld [vmem:[%s490] sm:%s419]
    %s493 = ssub.s32 16, 1
    %s494 = scalar_lea.vmem %s1, 48
    %495 = vst [vmem:[%s494] sm:%s493] %v491
    %s496 = scalar_lea.vmem [#allocation0], 104
    %v497 = vld [vmem:[%s496] sm:%s419]
    %s499 = ssub.s32 16, 1
    %s500 = scalar_lea.vmem %s1, 52
    %501 = vst [vmem:[%s500] sm:%s499] %v497
    %s502 = scalar_lea.vmem [#allocation0], 112
    %v503 = vld [vmem:[%s502] sm:%s419]
    %s505 = ssub.s32 16, 1
    %s506 = scalar_lea.vmem %s1, 56
    %507 = vst [vmem:[%s506] sm:%s505] %v503
    %s508 = scalar_lea.vmem [#allocation0], 120
    %v509 = vld [vmem:[%s508] sm:%s419]
    %s511 = ssub.s32 16, 1
    %s512 = scalar_lea.vmem %s1, 60
    %513 = vst [vmem:[%s512] sm:%s511] %v509
    %s514 = scalar_lea.vmem [#allocation0], 128
    %v515 = vld [vmem:[%s514] sm:%s419]
    %s517 = ssub.s32 16, 1
    %s518 = scalar_lea.vmem %s1, 64
    %519 = vst [vmem:[%s518] sm:%s517] %v515
    %s520 = scalar_lea.vmem [#allocation0], 136
    %v521 = vld [vmem:[%s520] sm:%s419]
    %s523 = ssub.s32 16, 1
    %s524 = scalar_lea.vmem %s1, 68
    %525 = vst [vmem:[%s524] sm:%s523] %v521
    %s526 = scalar_lea.vmem [#allocation0], 144
    %v527 = vld [vmem:[%s526] sm:%s419]
    %s529 = ssub.s32 16, 1
    %s530 = scalar_lea.vmem %s1, 72
    %531 = vst [vmem:[%s530] sm:%s529] %v527
    %s532 = scalar_lea.vmem [#allocation0], 152
    %v533 = vld [vmem:[%s532] sm:%s419]
    %s535 = ssub.s32 16, 1
    %s536 = scalar_lea.vmem %s1, 76
    %537 = vst [vmem:[%s536] sm:%s535] %v533
    %s538 = scalar_lea.vmem [#allocation0], 160
    %v539 = vld [vmem:[%s538] sm:%s419]
    %s541 = ssub.s32 16, 1
    %s542 = scalar_lea.vmem %s1, 80
    %543 = vst [vmem:[%s542] sm:%s541] %v539
    %s544 = scalar_lea.vmem [#allocation0], 168
    %v545 = vld [vmem:[%s544] sm:%s419]
    %s547 = ssub.s32 16, 1
    %s548 = scalar_lea.vmem %s1, 84
    %549 = vst [vmem:[%s548] sm:%s547] %v545
    %s550 = scalar_lea.vmem [#allocation0], 176
    %v551 = vld [vmem:[%s550] sm:%s419]
    %s553 = ssub.s32 16, 1
    %s554 = scalar_lea.vmem %s1, 88
    %555 = vst [vmem:[%s554] sm:%s553] %v551
    %s556 = scalar_lea.vmem [#allocation0], 184
    %v557 = vld [vmem:[%s556] sm:%s419]
    %s559 = ssub.s32 16, 1
    %s560 = scalar_lea.vmem %s1, 92
    %561 = vst [vmem:[%s560] sm:%s559] %v557
    %s562 = scalar_lea.vmem [#allocation0], 192
    %v563 = vld [vmem:[%s562] sm:%s419]
    %s565 = ssub.s32 16, 1
    %s566 = scalar_lea.vmem %s1, 96
    %567 = vst [vmem:[%s566] sm:%s565] %v563
    %s568 = scalar_lea.vmem [#allocation0], 200
    %v569 = vld [vmem:[%s568] sm:%s419]
    %s571 = ssub.s32 16, 1
    %s572 = scalar_lea.vmem %s1, 100
    %573 = vst [vmem:[%s572] sm:%s571] %v569
    %s574 = scalar_lea.vmem [#allocation0], 208
    %v575 = vld [vmem:[%s574] sm:%s419]
    %s577 = ssub.s32 16, 1
    %s578 = scalar_lea.vmem %s1, 104
    %579 = vst [vmem:[%s578] sm:%s577] %v575
    %s580 = scalar_lea.vmem [#allocation0], 216
    %v581 = vld [vmem:[%s580] sm:%s419]
    %s583 = ssub.s32 16, 1
    %s584 = scalar_lea.vmem %s1, 108
    %585 = vst [vmem:[%s584] sm:%s583] %v581
    %s586 = scalar_lea.vmem [#allocation0], 224
    %v587 = vld [vmem:[%s586] sm:%s419]
    %s589 = ssub.s32 16, 1
    %s590 = scalar_lea.vmem %s1, 112
    %591 = vst [vmem:[%s590] sm:%s589] %v587
    %s592 = scalar_lea.vmem [#allocation0], 232
    %v593 = vld [vmem:[%s592] sm:%s419]
    %s595 = ssub.s32 16, 1
    %s596 = scalar_lea.vmem %s1, 116
    %597 = vst [vmem:[%s596] sm:%s595] %v593
    %s598 = scalar_lea.vmem [#allocation0], 240
    %v599 = vld [vmem:[%s598] sm:%s419]
    %s601 = ssub.s32 16, 1
    %s602 = scalar_lea.vmem %s1, 120
    %603 = vst [vmem:[%s602] sm:%s601] %v599
    %s604 = scalar_lea.vmem [#allocation0], 248
    %v605 = vld [vmem:[%s604] sm:%s419]
    %s607 = ssub.s32 16, 1
    %s608 = scalar_lea.vmem %s1, 124
    %609 = vst [vmem:[%s608] sm:%s607] %v605
    %s610 = scalar_lea.vmem [#allocation0], 256
    %v611 = vld [vmem:[%s610] sm:%s419]
    %s613 = ssub.s32 16, 1
    %s614 = scalar_lea.vmem %s1, 128
    %615 = vst [vmem:[%s614] sm:%s613] %v611
    %s616 = scalar_lea.vmem [#allocation0], 264
    %v617 = vld [vmem:[%s616] sm:%s419]
    %s619 = ssub.s32 16, 1
    %s620 = scalar_lea.vmem %s1, 132
    %621 = vst [vmem:[%s620] sm:%s619] %v617
    %s622 = scalar_lea.vmem [#allocation0], 272
    %v623 = vld [vmem:[%s622] sm:%s419]
    %s625 = ssub.s32 16, 1
    %s626 = scalar_lea.vmem %s1, 136
    %627 = vst [vmem:[%s626] sm:%s625] %v623
    %s628 = scalar_lea.vmem [#allocation0], 280
    %v629 = vld [vmem:[%s628] sm:%s419]
    %s631 = ssub.s32 16, 1
    %s632 = scalar_lea.vmem %s1, 140
    %633 = vst [vmem:[%s632] sm:%s631] %v629
    %s634 = scalar_lea.vmem [#allocation0], 288
    %v635 = vld [vmem:[%s634] sm:%s419]
    %s637 = ssub.s32 16, 1
    %s638 = scalar_lea.vmem %s1, 144
    %639 = vst [vmem:[%s638] sm:%s637] %v635
    %s640 = scalar_lea.vmem [#allocation0], 296
    %v641 = vld [vmem:[%s640] sm:%s419]
    %s643 = ssub.s32 16, 1
    %s644 = scalar_lea.vmem %s1, 148
    %645 = vst [vmem:[%s644] sm:%s643] %v641
    %s646 = scalar_lea.vmem [#allocation0], 304
    %v647 = vld [vmem:[%s646] sm:%s419]
    %s649 = ssub.s32 16, 1
    %s650 = scalar_lea.vmem %s1, 152
    %651 = vst [vmem:[%s650] sm:%s649] %v647
    %s652 = scalar_lea.vmem [#allocation0], 312
    %v653 = vld [vmem:[%s652] sm:%s419]
    %s655 = ssub.s32 16, 1
    %s656 = scalar_lea.vmem %s1, 156
    %657 = vst [vmem:[%s656] sm:%s655] %v653

// kernel: squeeze.16
$region0: #{squeeze.16}
  %s0 = inlined_call_operand.vmem [shape: f32[2,16], index: 0, kind: input, shape index: {}]
  %s1 = inlined_call_operand.vmem [shape: f32[2,2,8], index: 1, kind: output, shape index: {}]
  $region1: #{squeeze.16} parent=0
    #allocation0 [shape = 'u8[8192]{0}', space=vmem, size = 0x2000, scoped, tag = 'scoped mem for output reshape']
    #allocation1 [shape = 'u8[4096]{0}', space=vmem, size = 0x1000, scoped, tag = 'scoped mem for input reshape']
    %s3 = ssub.s32 4, 1
    %v4 = vld [vmem:[%s0] sm:%s3]
    %5 = vst [vmem:[#allocation1] sm:%s3] %v4
    %v6 = vld [vmem:[#allocation1] sm:$0x3]
    %vm7 = vcmask 64512
    %8 = vst.msk [vmem:[#allocation0] ss:$8 sm:$0x3] %vm7, %v6
    %v9 = vld [vmem:[#allocation1] sm:$0x3]
    %10 = vrot.lane.b32.xlu0 %v9, 120
    %v11 = vpop.permute.xlu0 %10
    %vm12 = vcmask 64512
    %s13 = scalar_lea.vmem [#allocation0], 1
    %14 = vst.msk [vmem:[%s13] ss:$8 sm:$0x3] %vm12, %v11
    %s16 = ssub.s32 4, 1
    %v17 = vld [vmem:[#allocation0] sm:%s16]
    %s19 = ssub.s32 4, 1
    %20 = vst [vmem:[%s1] sm:%s19] %v17
    %s21 = scalar_lea.vmem [#allocation0], 8
    %v22 = vld [vmem:[%s21] sm:%s16]
    %s24 = ssub.s32 4, 1
    %s25 = scalar_lea.vmem %s1, 2
    %26 = vst [vmem:[%s25] sm:%s24] %v22

// kernel: multistep_multimask_losses.1
$region0: #{multistep_multimask_losses.1}
  #allocation0 [shape = 'u32[]', space=smem, size = 0x4, offset = 0x4, fixed_abs, tag = 'smem constant byte address 0x4 - core index']
  #allocation1 [shape = 'u32[72,128]{1,0:T(1,128)}', space=vmem, size = 0x9000, scoped, tag = 'internal scratch']
  %s0 = inlined_call_operand.vmem [shape: f32[2,12,8,128], index: 0, kind: input, shape index: {}]
  %s1 = inlined_call_operand.vmem [shape: f32[2,2,8,128], index: 1, kind: input, shape index: {}]
  %s2 = inlined_call_operand.vmem [shape: f32[128,128], index: 2, kind: input, shape index: {}]
  %s3 = inlined_call_operand.vmem [shape: f32[2,5,96,128], index: 3, kind: output, shape index: {0}]
  %s4 = inlined_call_operand.vmem [shape: f32[2,16,128], index: 4, kind: output, shape index: {1}]
  %5 = xla_tuple %s3, %s4
  %s6 = sld [smem:[#allocation0]]
  $region57: #{multistep_multimask_losses.1} parent=0
    _
  %s8 = ssub.s32 1, %s6
  %s9 = scalar_select 0, %s8, %s6
  loop: start=0, step=1, limit=4
  $region2: #{multistep_multimask_losses.1} parent=0 // loop_pre_header
    _
  $region3: #{multistep_multimask_losses.1} parent=0 // loop_header
    %s11 = sphi 0, %s15
    %p12 = scmp.ge.s32.totalorder %s11, 4
    %s18 = sphi 0, %s30
    %s19 = sphi 0, %s26
    %s20 = sphi 0, %s18
    %s21 = sphi 0, %s19
    %s22 = sphi 0, %s20
    %s23 = sphi 0, %s21
    %s35 = sphi 0, %s37
    %s38 = sphi 0, %s35
    %s39 = sphi 0, %s38
    %s55 = sphi 0, %s39
    %s63 = sphi 0, %s65
    %s66 = sphi 0, %s63
    %s67 = sphi 0, %s66
    %s83 = sphi 0, %s67
    %s87 = sphi 0, %s87
    %s89 = sphi 0, %s87
    %s90 = sphi 0, %s89
    %s104 = sphi 0, %s90
    %s110 = sphi 0, %s112
    %s113 = sphi 0, %s110
    %s114 = sphi 0, %s113
    %s130 = sphi 0, %s114
    %s136 = sphi 0, %s138
    %s139 = sphi 0, %s136
    %s140 = sphi 0, %s139
    %s156 = sphi 0, %s140
  $region4: #{multistep_multimask_losses.1} parent=0 // loop_header_branch
    %14 = sbr.rel (%p12) target = $region8
  $region5: #{multistep_multimask_losses.1} parent=0 // loop_body
    %s16 = ssub.s32 %s11, 1
    %s17 = ssub.s32 %s11, 2
    %s24 = sadd.s32 1, %s19
    %p25 = scmp.ge.s32.totalorder %s24, 1
    %s26 = scalar_select %p25, 0, %s24
    %s27 = sadd.s32 1, %s18
    %s28 = scalar_select %p25, %s27, %s18
    %p29 = scmp.ge.s32.totalorder %s28, 2
    %s30 = scalar_select %p29, 0, %s28
    %s31 = ssub.s32 %s18, %s30
    %s32 = ssub.s32 %s19, %s26
    %s33 = sor.u32 %s31, %s32
    %p34 = scmp.eq.s32.totalorder %s33, 0
    %s36 = sadd.s32 %s35, 1
    %s37 = scalar_select %p34, %s35, %s36
    %p40 = pneg %p34
    %p41 = scmp.eq.s32.totalorder %s11, 1
    %p42 = por %p40, %p41
    %p43 = scmp.ne.s32.totalorder %s35, %s38
    %p44 = scmp.eq.s32.totalorder %s11, 0
    %p45 = por %p43, %p44
    %p46 = scmp.ne.s32.totalorder %s35, %s38
    %p47 = scmp.eq.s32.totalorder %s16, 1
    %p48 = por %p46, %p47
    %p49 = scmp.ne.s32.totalorder %s38, %s39
    %p50 = scmp.eq.s32.totalorder %s16, 0
    %p51 = por %p49, %p50
    %p52 = scmp.ne.s32.totalorder %s38, %s39
    %p53 = scmp.eq.s32.totalorder %s17, 1
    %p54 = por %p52, %p53
    %p56 = scmp.ne.s32.totalorder %s39, %s55
    %p57 = scmp.eq.s32.totalorder %s17, 0
    %p58 = por %p56, %p57
    %s59 = ssub.s32 %s18, %s30
    %s60 = ssub.s32 %s19, %s26
    %s61 = sor.u32 %s59, %s60
    %p62 = scmp.eq.s32.totalorder %s61, 0
    %s64 = sadd.s32 %s63, 1
    %s65 = scalar_select %p62, %s63, %s64
    %p68 = pneg %p62
    %p69 = scmp.eq.s32.totalorder %s11, 1
    %p70 = por %p68, %p69
    %p71 = scmp.ne.s32.totalorder %s63, %s66
    %p72 = scmp.eq.s32.totalorder %s11, 0
    %p73 = por %p71, %p72
    %p74 = scmp.ne.s32.totalorder %s63, %s66
    %p75 = scmp.eq.s32.totalorder %s16, 1
    %p76 = por %p74, %p75
    %p77 = scmp.ne.s32.totalorder %s66, %s67
    %p78 = scmp.eq.s32.totalorder %s16, 0
    %p79 = por %p77, %p78
    %p80 = scmp.ne.s32.totalorder %s66, %s67
    %p81 = scmp.eq.s32.totalorder %s17, 1
    %p82 = por %p80, %p81
    %p84 = scmp.ne.s32.totalorder %s67, %s83
    %p85 = scmp.eq.s32.totalorder %s17, 0
    %p86 = por %p84, %p85
    %s88 = sadd.s32 %s87, 1
    %p91 = scmp.eq.s32.totalorder %s11, 1
    %p92 = scmp.ne.s32.totalorder %s87, %s89
    %p93 = scmp.eq.s32.totalorder %s11, 0
    %p94 = por %p92, %p93
    %p95 = scmp.ne.s32.totalorder %s87, %s89
    %p96 = scmp.eq.s32.totalorder %s16, 1
    %p97 = por %p95, %p96
    %p98 = scmp.ne.s32.totalorder %s89, %s90
    %p99 = scmp.eq.s32.totalorder %s16, 0
    %p100 = por %p98, %p99
    %p101 = scmp.ne.s32.totalorder %s89, %s90
    %p102 = scmp.eq.s32.totalorder %s17, 1
    %p103 = por %p101, %p102
    %p105 = scmp.ne.s32.totalorder %s90, %s104
    %p106 = scmp.eq.s32.totalorder %s17, 0
    %p107 = por %p105, %p106
    %s108 = ssub.s32 %s18, %s30
    %p109 = scmp.eq.s32.totalorder %s108, 0
    %s111 = sadd.s32 %s110, 1
    %s112 = scalar_select %p109, %s110, %s111
    %p115 = pneg %p109
    %p116 = scmp.eq.s32.totalorder %s11, 1
    %p117 = por %p115, %p116
    %p118 = scmp.ne.s32.totalorder %s110, %s113
    %p119 = scmp.eq.s32.totalorder %s11, 0
    %p120 = por %p118, %p119
    %p121 = scmp.ne.s32.totalorder %s110, %s113
    %p122 = scmp.eq.s32.totalorder %s16, 1
    %p123 = por %p121, %p122
    %p124 = scmp.ne.s32.totalorder %s113, %s114
    %p125 = scmp.eq.s32.totalorder %s16, 0
    %p126 = por %p124, %p125
    %p127 = scmp.ne.s32.totalorder %s113, %s114
    %p128 = scmp.eq.s32.totalorder %s17, 1
    %p129 = por %p127, %p128
    %p131 = scmp.ne.s32.totalorder %s114, %s130
    %p132 = scmp.eq.s32.totalorder %s17, 0
    %p133 = por %p131, %p132
    %s134 = ssub.s32 %s18, %s30
    %p135 = scmp.eq.s32.totalorder %s134, 0
    %s137 = sadd.s32 %s136, 1
    %s138 = scalar_select %p135, %s136, %s137
    %p141 = pneg %p135
    %p142 = scmp.eq.s32.totalorder %s11, 1
    %p143 = por %p141, %p142
    %p144 = scmp.ne.s32.totalorder %s136, %s139
    %p145 = scmp.eq.s32.totalorder %s11, 0
    %p146 = por %p144, %p145
    %p147 = scmp.ne.s32.totalorder %s136, %s139
    %p148 = scmp.eq.s32.totalorder %s16, 1
    %p149 = por %p147, %p148
    %p150 = scmp.ne.s32.totalorder %s139, %s140
    %p151 = scmp.eq.s32.totalorder %s16, 0
    %p152 = por %p150, %p151
    %p153 = scmp.ne.s32.totalorder %s139, %s140
    %p154 = scmp.eq.s32.totalorder %s17, 1
    %p155 = por %p153, %p154
    %p157 = scmp.ne.s32.totalorder %s140, %s156
    %p158 = scmp.eq.s32.totalorder %s17, 0
    %p159 = por %p157, %p158
    %p160 = scmp.le.s32.totalorder 1, %s11
    %p161 = scmp.lt.s32.totalorder %s11, 3
    %p162 = pnand %p160, %p161
    %p163 = pneg %p162
    // Predicated region
    $region9: #{multistep_multimask_losses.1} parent=5 // pred_check
      _
    $region10: #{multistep_multimask_losses.1} parent=5 // pred_check_branch
      %165 = sbr.rel (%p162) target = $region12
    $region11: #{multistep_multimask_losses.1} parent=5 // pred_region
      %s166 = ssub.s32 %s11, 1
      // Predicated region
      $region13: #{multistep_multimask_losses.1} parent=11 // pred_check
        %p167 = pneg %p100
      $region14: #{multistep_multimask_losses.1} parent=11 // pred_check_branch
        %169 = sbr.rel (%p167) target = $region16
      $region15: #{multistep_multimask_losses.1} parent=11 // pred_region
        _
      $region16: #{multistep_multimask_losses.1} parent=11 // pred_fallthru
        _
    $region12: #{multistep_multimask_losses.1} parent=5 // pred_fallthru
      _
    %p170 = scmp.lt.s32.totalorder %s11, 2
    // Predicated region
    $region17: #{multistep_multimask_losses.1} parent=5 // pred_check
      %p171 = pneg %p170
    $region18: #{multistep_multimask_losses.1} parent=5 // pred_check_branch
      %173 = sbr.rel (%p171) target = $region20
    $region19: #{multistep_multimask_losses.1} parent=5 // pred_region
      // Predicated region
      $region21: #{multistep_multimask_losses.1} parent=19 // pred_check
        %p174 = pneg %p45
      $region22: #{multistep_multimask_losses.1} parent=19 // pred_check_branch
        %176 = sbr.rel (%p174) target = $region24
      $region23: #{multistep_multimask_losses.1} parent=19 // pred_region
        %p177 = scmp.lt.s32.totalorder %s18, 1
        %s178 = scalar_select %p177, %s18, 1
        %p179 = scmp.lt.s32.totalorder %s19, 0
        %s180 = scalar_select %p179, %s19, 0
        %s181 = smul.addr %s178, 12
        %s182 = sadd.s32 %s180, %s181
        %s183 = smul.addr %s182, 8
        %s184 = scalar_lea.vmem %s0, %s183
      $region24: #{multistep_multimask_losses.1} parent=19 // pred_fallthru
        _
      // Predicated region
      $region25: #{multistep_multimask_losses.1} parent=19 // pred_check
        %p185 = pneg %p73
      $region26: #{multistep_multimask_losses.1} parent=19 // pred_check_branch
        %187 = sbr.rel (%p185) target = $region28
      $region27: #{multistep_multimask_losses.1} parent=19 // pred_region
        %p188 = scmp.lt.s32.totalorder %s18, 1
        %s189 = scalar_select %p188, %s18, 1
        %p190 = scmp.lt.s32.totalorder %s19, 0
        %s191 = scalar_select %p190, %s19, 0
        %s192 = smul.addr %s189, 2
        %s193 = sadd.s32 %s191, %s192
        %s194 = smul.addr %s193, 8
        %s195 = scalar_lea.vmem %s1, %s194
      $region28: #{multistep_multimask_losses.1} parent=19 // pred_fallthru
        _
    $region20: #{multistep_multimask_losses.1} parent=5 // pred_fallthru
      _
    %p196 = scmp.le.s32.totalorder 1, %s11
    %p197 = scmp.lt.s32.totalorder %s11, 3
    %p198 = pnand %p196, %p197
    %p199 = pneg %p198
    // Predicated region
    $region29: #{multistep_multimask_losses.1} parent=5 // pred_check
      _
    $region30: #{multistep_multimask_losses.1} parent=5 // pred_check_branch
      %201 = sbr.rel (%p198) target = $region32
    $region31: #{multistep_multimask_losses.1} parent=5 // pred_region
      %s202 = ssub.s32 %s11, 1
      %p203 = scmp.lt.s32.totalorder %s20, 1
      %s204 = scalar_select %p203, %s20, 1
      %p205 = scmp.lt.s32.totalorder %s21, 0
      %s206 = scalar_select %p205, %s21, 0
      %s207 = smul.addr %s204, 12
      %s208 = sadd.s32 %s206, %s207
      %s209 = smul.addr %s208, 8
      %s210 = scalar_lea.vmem %s0, %s209
      %p211 = pneg %p51
      %p212 = pneg %p48
      %p213 = scmp.lt.s32.totalorder %s20, 1
      %s214 = scalar_select %p213, %s20, 1
      %p215 = scmp.lt.s32.totalorder %s21, 0
      %s216 = scalar_select %p215, %s21, 0
      %s217 = smul.addr %s214, 2
      %s218 = sadd.s32 %s216, %s217
      %s219 = smul.addr %s218, 8
      %s220 = scalar_lea.vmem %s1, %s219
      %p221 = pneg %p79
      %p222 = pneg %p76
      %p223 = pneg %p100
      %p224 = pneg %p97
      %p225 = pneg %p126
      %p226 = pneg %p123
      %p227 = scmp.lt.s32.totalorder %s20, 1
      %s228 = scalar_select %p227, %s20, 1
      %s229 = smul.addr %s228, 60
      %s230 = smul.addr %s229, 8
      %s231 = scalar_lea.vmem %s3, %s230
      %p232 = pneg %p152
      %p233 = pneg %p149
      %p234 = scmp.lt.s32.totalorder %s20, 1
      %s235 = scalar_select %p234, %s20, 1
      %s236 = smul.addr %s235, 2
      %s237 = smul.addr %s236, 8
      %s238 = scalar_lea.vmem %s4, %s237
      %p239 = scmp.lt.s32.totalorder %s20, 1
      %s240 = scalar_select %p239, %s20, 1
      %p241 = scmp.lt.s32.totalorder %s21, 0
      %s242 = scalar_select %p241, %s21, 0
      %s243 = smul.addr %s240, 12
      %s244 = sadd.s32 %s242, %s243
      %s245 = smul.addr %s244, 8
      %s246 = scalar_lea.vmem %s0, %s245
      %p247 = scmp.lt.s32.totalorder %s20, 1
      %s248 = scalar_select %p247, %s20, 1
      %p249 = scmp.lt.s32.totalorder %s21, 0
      %s250 = scalar_select %p249, %s21, 0
      %s251 = smul.addr %s248, 2
      %s252 = sadd.s32 %s250, %s251
      %s253 = smul.addr %s252, 8
      %s254 = scalar_lea.vmem %s1, %s253
      %p255 = scmp.lt.s32.totalorder %s20, 1
      %s256 = scalar_select %p255, %s20, 1
      %s257 = smul.addr %s256, 60
      %s258 = smul.addr %s257, 8
      %s259 = scalar_lea.vmem %s3, %s258
      %p260 = scmp.lt.s32.totalorder %s20, 1
      %s261 = scalar_select %p260, %s20, 1
      %s262 = smul.addr %s261, 2
      %s263 = smul.addr %s262, 8
      %s264 = scalar_lea.vmem %s4, %s263
      %p265 = scmp.eq.s32.totalorder %s21, 0
      // Predicated region
      $region33: #{multistep_multimask_losses.1} parent=31 // pred_check
        %p266 = pneg %p265
      $region34: #{multistep_multimask_losses.1} parent=31 // pred_check_branch
        %268 = sbr.rel (%p266) target = $region36
      $region35: #{multistep_multimask_losses.1} parent=31 // pred_region
        %269 = vst [vmem:[%s259] sm:$0xff] 0.0
        %270 = vst [vmem:[%s259 + $0x8] sm:$0xff] 0.0
        %271 = vst [vmem:[%s259 + $0x10] sm:$0xff] 0.0
        %272 = vst [vmem:[%s259 + $0x18] sm:$0xff] 0.0
        %273 = vst [vmem:[%s259 + $0x20] sm:$0xff] 0.0
        %274 = vst [vmem:[%s259 + $0x28] sm:$0xff] 0.0
        %275 = vst [vmem:[%s259 + $0x30] sm:$0xff] 0.0
        %276 = vst [vmem:[%s259 + $0x38] sm:$0xff] 0.0
        %277 = vst [vmem:[%s259 + $0x40] sm:$0xff] 0.0
        %278 = vst [vmem:[%s259 + $0x48] sm:$0xff] 0.0
        %279 = vst [vmem:[%s259 + $0x50] sm:$0xff] 0.0
        %280 = vst [vmem:[%s259 + $0x58] sm:$0xff] 0.0
        %281 = vst [vmem:[%s259 + $0x60] sm:$0xff] 0.0
        %282 = vst [vmem:[%s259 + $0x68] sm:$0xff] 0.0
        %283 = vst [vmem:[%s259 + $0x70] sm:$0xff] 0.0
        %284 = vst [vmem:[%s259 + $0x78] sm:$0xff] 0.0
        %285 = vst [vmem:[%s259 + $0x80] sm:$0xff] 0.0
        %286 = vst [vmem:[%s259 + $0x88] sm:$0xff] 0.0
        %287 = vst [vmem:[%s259 + $0x90] sm:$0xff] 0.0
        %288 = vst [vmem:[%s259 + $0x98] sm:$0xff] 0.0
        %289 = vst [vmem:[%s259 + $0xa0] sm:$0xff] 0.0
        %290 = vst [vmem:[%s259 + $0xa8] sm:$0xff] 0.0
        %291 = vst [vmem:[%s259 + $0xb0] sm:$0xff] 0.0
        %292 = vst [vmem:[%s259 + $0xb8] sm:$0xff] 0.0
        %293 = vst [vmem:[%s259 + $0xc0] sm:$0xff] 0.0
        %294 = vst [vmem:[%s259 + $0xc8] sm:$0xff] 0.0
        %295 = vst [vmem:[%s259 + $0xd0] sm:$0xff] 0.0
        %296 = vst [vmem:[%s259 + $0xd8] sm:$0xff] 0.0
        %297 = vst [vmem:[%s259 + $0xe0] sm:$0xff] 0.0
        %298 = vst [vmem:[%s259 + $0xe8] sm:$0xff] 0.0
        %299 = vst [vmem:[%s259 + $0xf0] sm:$0xff] 0.0
        %300 = vst [vmem:[%s259 + $0xf8] sm:$0xff] 0.0
        %301 = vst [vmem:[%s259 + $0x100] sm:$0xff] 0.0
        %302 = vst [vmem:[%s259 + $0x108] sm:$0xff] 0.0
        %303 = vst [vmem:[%s259 + $0x110] sm:$0xff] 0.0
        %304 = vst [vmem:[%s259 + $0x118] sm:$0xff] 0.0
        %305 = vst [vmem:[%s259 + $0x120] sm:$0xff] 0.0
        %306 = vst [vmem:[%s259 + $0x128] sm:$0xff] 0.0
        %307 = vst [vmem:[%s259 + $0x130] sm:$0xff] 0.0
        %308 = vst [vmem:[%s259 + $0x138] sm:$0xff] 0.0
        %309 = vst [vmem:[%s259 + $0x140] sm:$0xff] 0.0
        %310 = vst [vmem:[%s259 + $0x148] sm:$0xff] 0.0
        %311 = vst [vmem:[%s259 + $0x150] sm:$0xff] 0.0
        %312 = vst [vmem:[%s259 + $0x158] sm:$0xff] 0.0
        %313 = vst [vmem:[%s259 + $0x160] sm:$0xff] 0.0
        %314 = vst [vmem:[%s259 + $0x168] sm:$0xff] 0.0
        %315 = vst [vmem:[%s259 + $0x170] sm:$0xff] 0.0
        %316 = vst [vmem:[%s259 + $0x178] sm:$0xff] 0.0
        %317 = vst [vmem:[%s259 + $0x180] sm:$0xff] 0.0
        %318 = vst [vmem:[%s259 + $0x188] sm:$0xff] 0.0
        %319 = vst [vmem:[%s259 + $0x190] sm:$0xff] 0.0
        %320 = vst [vmem:[%s259 + $0x198] sm:$0xff] 0.0
        %321 = vst [vmem:[%s259 + $0x1a0] sm:$0xff] 0.0
        %322 = vst [vmem:[%s259 + $0x1a8] sm:$0xff] 0.0
        %323 = vst [vmem:[%s259 + $0x1b0] sm:$0xff] 0.0
        %324 = vst [vmem:[%s259 + $0x1b8] sm:$0xff] 0.0
        %325 = vst [vmem:[%s259 + $0x1c0] sm:$0xff] 0.0
        %326 = vst [vmem:[%s259 + $0x1c8] sm:$0xff] 0.0
        %327 = vst [vmem:[%s259 + $0x1d0] sm:$0xff] 0.0
        %328 = vst [vmem:[%s259 + $0x1d8] sm:$0xff] 0.0
        %329 = vst [vmem:[%s264] sm:$0xff] 0.0
        %330 = vst [vmem:[%s264 + $0x8] sm:$0xff] 0.0
      $region36: #{multistep_multimask_losses.1} parent=31 // pred_fallthru
        _
      %v331 = vld [vmem:[%s246] sm:$0xff]
      %v332 = vld [vmem:[%s246 + $0x8] sm:$0xff]
      %v333 = vld [vmem:[%s246 + $0x10] sm:$0xff]
      %v334 = vld [vmem:[%s246 + $0x18] sm:$0xff]
      %v335 = vld [vmem:[%s246 + $0x20] sm:$0xff]
      %v336 = vld [vmem:[%s246 + $0x28] sm:$0xff]
      %v337 = vld [vmem:[%s246 + $0x30] sm:$0xff]
      %v338 = vld [vmem:[%s246 + $0x38] sm:$0xff]
      %v339 = vld [vmem:[%s246 + $0x40] sm:$0xff]
      %v340 = vld [vmem:[%s246 + $0x48] sm:$0xff]
      %v341 = vld [vmem:[%s246 + $0x50] sm:$0xff]
      %v342 = vld [vmem:[%s246 + $0x58] sm:$0xff]
      %v343 = vld [vmem:[%s254] sm:$0xff]
      %v344 = vld [vmem:[%s254 + $0x8] sm:$0xff]
      %v345 = vxor.u32 %v331, 2147483648
      %v346 = vxor.u32 %v332, 2147483648
      %v347 = vxor.u32 %v333, 2147483648
      %v348 = vxor.u32 %v334, 2147483648
      %v349 = vxor.u32 %v335, 2147483648
      %v350 = vxor.u32 %v336, 2147483648
      %v351 = vxor.u32 %v337, 2147483648
      %v352 = vxor.u32 %v338, 2147483648
      %v353 = vxor.u32 %v339, 2147483648
      %v354 = vxor.u32 %v340, 2147483648
      %v355 = vxor.u32 %v341, 2147483648
      %v356 = vxor.u32 %v342, 2147483648
      %v357 = vmul.f32 %v345, 1.442695
      %v358 = vpow.pop %v357
      %v359 = vmul.f32 %v346, 1.442695
      %v360 = vpow.pop %v359
      %v361 = vmul.f32 %v347, 1.442695
      %v362 = vpow.pop %v361
      %v363 = vmul.f32 %v348, 1.442695
      %v364 = vpow.pop %v363
      %v365 = vmul.f32 %v349, 1.442695
      %v366 = vpow.pop %v365
      %v367 = vmul.f32 %v350, 1.442695
      %v368 = vpow.pop %v367
      %v369 = vmul.f32 %v351, 1.442695
      %v370 = vpow.pop %v369
      %v371 = vmul.f32 %v352, 1.442695
      %v372 = vpow.pop %v371
      %v373 = vmul.f32 %v353, 1.442695
      %v374 = vpow.pop %v373
      %v375 = vmul.f32 %v354, 1.442695
      %v376 = vpow.pop %v375
      %v377 = vmul.f32 %v355, 1.442695
      %v378 = vpow.pop %v377
      %v379 = vmul.f32 %v356, 1.442695
      %v380 = vpow.pop %v379
      %v381 = vadd.f32 %v358, 1.0
      %v382 = vadd.f32 %v360, 1.0
      %v383 = vadd.f32 %v362, 1.0
      %v384 = vadd.f32 %v364, 1.0
      %v385 = vadd.f32 %v366, 1.0
      %v386 = vadd.f32 %v368, 1.0
      %v387 = vadd.f32 %v370, 1.0
      %v388 = vadd.f32 %v372, 1.0
      %v389 = vadd.f32 %v374, 1.0
      %v390 = vadd.f32 %v376, 1.0
      %v391 = vadd.f32 %v378, 1.0
      %v392 = vadd.f32 %v380, 1.0
      %v393 = vrcp.pop %v381
      %v394 = vmul.f32 %v381, %v393
      %v395 = vsub.f32 1.0, %v394
      %v396 = vmul.f32 %v393, %v395
      %v397 = vadd.f32 %v393, %v396
      %vm398 = vweird.f32 %v381
      %vm399 = vweird.f32 %v393
      %vm400 = vmor %vm398, %vm399
      %v401 = vsel %vm400, %v393, %v397
      %v402 = vand.u32 2147483647, %v381
      %vm403 = vcmp.eq.f32.partialorder %v402, 8.507059e+37
      %v404 = vand.u32 %v381, 2147483648
      %v405 = vor.u32 1.1754944e-38, %v404
      %v406 = vsel %vm403, %v405, %v401
      %v407 = vmul.f32 1.0, %v406
      %v408 = vrcp.pop %v382
      %v409 = vmul.f32 %v382, %v408
      %v410 = vsub.f32 1.0, %v409
      %v411 = vmul.f32 %v408, %v410
      %v412 = vadd.f32 %v408, %v411
      %vm413 = vweird.f32 %v382
      %vm414 = vweird.f32 %v408
      %vm415 = vmor %vm413, %vm414
      %v416 = vsel %vm415, %v408, %v412
      %v417 = vand.u32 2147483647, %v382
      %vm418 = vcmp.eq.f32.partialorder %v417, 8.507059e+37
      %v419 = vand.u32 %v382, 2147483648
      %v420 = vor.u32 1.1754944e-38, %v419
      %v421 = vsel %vm418, %v420, %v416
      %v422 = vmul.f32 1.0, %v421
      %v423 = vrcp.pop %v383
      %v424 = vmul.f32 %v383, %v423
      %v425 = vsub.f32 1.0, %v424
      %v426 = vmul.f32 %v423, %v425
      %v427 = vadd.f32 %v423, %v426
      %vm428 = vweird.f32 %v383
      %vm429 = vweird.f32 %v423
      %vm430 = vmor %vm428, %vm429
      %v431 = vsel %vm430, %v423, %v427
      %v432 = vand.u32 2147483647, %v383
      %vm433 = vcmp.eq.f32.partialorder %v432, 8.507059e+37
      %v434 = vand.u32 %v383, 2147483648
      %v435 = vor.u32 1.1754944e-38, %v434
      %v436 = vsel %vm433, %v435, %v431
      %v437 = vmul.f32 1.0, %v436
      %v438 = vrcp.pop %v384
      %v439 = vmul.f32 %v384, %v438
      %v440 = vsub.f32 1.0, %v439
      %v441 = vmul.f32 %v438, %v440
      %v442 = vadd.f32 %v438, %v441
      %vm443 = vweird.f32 %v384
      %vm444 = vweird.f32 %v438
      %vm445 = vmor %vm443, %vm444
      %v446 = vsel %vm445, %v438, %v442
      %v447 = vand.u32 2147483647, %v384
      %vm448 = vcmp.eq.f32.partialorder %v447, 8.507059e+37
      %v449 = vand.u32 %v384, 2147483648
      %v450 = vor.u32 1.1754944e-38, %v449
      %v451 = vsel %vm448, %v450, %v446
      %v452 = vmul.f32 1.0, %v451
      %v453 = vrcp.pop %v385
      %v454 = vmul.f32 %v385, %v453
      %v455 = vsub.f32 1.0, %v454
      %v456 = vmul.f32 %v453, %v455
      %v457 = vadd.f32 %v453, %v456
      %vm458 = vweird.f32 %v385
      %vm459 = vweird.f32 %v453
      %vm460 = vmor %vm458, %vm459
      %v461 = vsel %vm460, %v453, %v457
      %v462 = vand.u32 2147483647, %v385
      %vm463 = vcmp.eq.f32.partialorder %v462, 8.507059e+37
      %v464 = vand.u32 %v385, 2147483648
      %v465 = vor.u32 1.1754944e-38, %v464
      %v466 = vsel %vm463, %v465, %v461
      %v467 = vmul.f32 1.0, %v466
      %v468 = vrcp.pop %v386
      %v469 = vmul.f32 %v386, %v468
      %v470 = vsub.f32 1.0, %v469
      %v471 = vmul.f32 %v468, %v470
      %v472 = vadd.f32 %v468, %v471
      %vm473 = vweird.f32 %v386
      %vm474 = vweird.f32 %v468
      %vm475 = vmor %vm473, %vm474
      %v476 = vsel %vm475, %v468, %v472
      %v477 = vand.u32 2147483647, %v386
      %vm478 = vcmp.eq.f32.partialorder %v477, 8.507059e+37
      %v479 = vand.u32 %v386, 2147483648
      %v480 = vor.u32 1.1754944e-38, %v479
      %v481 = vsel %vm478, %v480, %v476
      %v482 = vmul.f32 1.0, %v481
      %v483 = vrcp.pop %v387
      %v484 = vmul.f32 %v387, %v483
      %v485 = vsub.f32 1.0, %v484
      %v486 = vmul.f32 %v483, %v485
      %v487 = vadd.f32 %v483, %v486
      %vm488 = vweird.f32 %v387
      %vm489 = vweird.f32 %v483
      %vm490 = vmor %vm488, %vm489
      %v491 = vsel %vm490, %v483, %v487
      %v492 = vand.u32 2147483647, %v387
      %vm493 = vcmp.eq.f32.partialorder %v492, 8.507059e+37
      %v494 = vand.u32 %v387, 2147483648
      %v495 = vor.u32 1.1754944e-38, %v494
      %v496 = vsel %vm493, %v495, %v491
      %v497 = vmul.f32 1.0, %v496
      %v498 = vrcp.pop %v388
      %v499 = vmul.f32 %v388, %v498
      %v500 = vsub.f32 1.0, %v499
      %v501 = vmul.f32 %v498, %v500
      %v502 = vadd.f32 %v498, %v501
      %vm503 = vweird.f32 %v388
      %vm504 = vweird.f32 %v498
      %vm505 = vmor %vm503, %vm504
      %v506 = vsel %vm505, %v498, %v502
      %v507 = vand.u32 2147483647, %v388
      %vm508 = vcmp.eq.f32.partialorder %v507, 8.507059e+37
      %v509 = vand.u32 %v388, 2147483648
      %v510 = vor.u32 1.1754944e-38, %v509
      %v511 = vsel %vm508, %v510, %v506
      %v512 = vmul.f32 1.0, %v511
      %v513 = vrcp.pop %v389
      %v514 = vmul.f32 %v389, %v513
      %v515 = vsub.f32 1.0, %v514
      %v516 = vmul.f32 %v513, %v515
      %v517 = vadd.f32 %v513, %v516
      %vm518 = vweird.f32 %v389
      %vm519 = vweird.f32 %v513
      %vm520 = vmor %vm518, %vm519
      %v521 = vsel %vm520, %v513, %v517
      %v522 = vand.u32 2147483647, %v389
      %vm523 = vcmp.eq.f32.partialorder %v522, 8.507059e+37
      %v524 = vand.u32 %v389, 2147483648
      %v525 = vor.u32 1.1754944e-38, %v524
      %v526 = vsel %vm523, %v525, %v521
      %v527 = vmul.f32 1.0, %v526
      %v528 = vrcp.pop %v390
      %v529 = vmul.f32 %v390, %v528
      %v530 = vsub.f32 1.0, %v529
      %v531 = vmul.f32 %v528, %v530
      %v532 = vadd.f32 %v528, %v531
      %vm533 = vweird.f32 %v390
      %vm534 = vweird.f32 %v528
      %vm535 = vmor %vm533, %vm534
      %v536 = vsel %vm535, %v528, %v532
      %v537 = vand.u32 2147483647, %v390
      %vm538 = vcmp.eq.f32.partialorder %v537, 8.507059e+37
      %v539 = vand.u32 %v390, 2147483648
      %v540 = vor.u32 1.1754944e-38, %v539
      %v541 = vsel %vm538, %v540, %v536
      %v542 = vmul.f32 1.0, %v541
      %v543 = vrcp.pop %v391
      %v544 = vmul.f32 %v391, %v543
      %v545 = vsub.f32 1.0, %v544
      %v546 = vmul.f32 %v543, %v545
      %v547 = vadd.f32 %v543, %v546
      %vm548 = vweird.f32 %v391
      %vm549 = vweird.f32 %v543
      %vm550 = vmor %vm548, %vm549
      %v551 = vsel %vm550, %v543, %v547
      %v552 = vand.u32 2147483647, %v391
      %vm553 = vcmp.eq.f32.partialorder %v552, 8.507059e+37
      %v554 = vand.u32 %v391, 2147483648
      %v555 = vor.u32 1.1754944e-38, %v554
      %v556 = vsel %vm553, %v555, %v551
      %v557 = vmul.f32 1.0, %v556
      %v558 = vrcp.pop %v392
      %v559 = vmul.f32 %v392, %v558
      %v560 = vsub.f32 1.0, %v559
      %v561 = vmul.f32 %v558, %v560
      %v562 = vadd.f32 %v558, %v561
      %vm563 = vweird.f32 %v392
      %vm564 = vweird.f32 %v558
      %vm565 = vmor %vm563, %vm564
      %v566 = vsel %vm565, %v558, %v562
      %v567 = vand.u32 2147483647, %v392
      %vm568 = vcmp.eq.f32.partialorder %v567, 8.507059e+37
      %v569 = vand.u32 %v392, 2147483648
      %v570 = vor.u32 1.1754944e-38, %v569
      %v571 = vsel %vm568, %v570, %v566
      %v572 = vmul.f32 1.0, %v571
      %v573 = vsub.f32 1.0, %v407
      %v574 = vsub.f32 1.0, %v422
      %v575 = vsub.f32 1.0, %v437
      %v576 = vsub.f32 1.0, %v452
      %v577 = vsub.f32 1.0, %v467
      %v578 = vsub.f32 1.0, %v482
      %v579 = vsub.f32 1.0, %v497
      %v580 = vsub.f32 1.0, %v512
      %v581 = vsub.f32 1.0, %v527
      %v582 = vsub.f32 1.0, %v542
      %v583 = vsub.f32 1.0, %v557
      %v584 = vsub.f32 1.0, %v572
      %v585 = vmax.f32 %v407, %v573
      %v586 = vmax.f32 %v422, %v574
      %v587 = vmax.f32 %v437, %v575
      %v588 = vmax.f32 %v452, %v576
      %v589 = vmax.f32 %v467, %v577
      %v590 = vmax.f32 %v482, %v578
      %v591 = vmax.f32 %v497, %v579
      %v592 = vmax.f32 %v512, %v580
      %v593 = vmax.f32 %v527, %v581
      %v594 = vmax.f32 %v542, %v582
      %v595 = vmax.f32 %v557, %v583
      %v596 = vmax.f32 %v572, %v584
      %v597 = vlog2.pop %v585
      %v598 = vmul.f32 %v597, 0.6931472
      %v599 = vlog2.pop %v586
      %v600 = vmul.f32 %v599, 0.6931472
      %v601 = vlog2.pop %v587
      %v602 = vmul.f32 %v601, 0.6931472
      %v603 = vlog2.pop %v588
      %v604 = vmul.f32 %v603, 0.6931472
      %v605 = vlog2.pop %v589
      %v606 = vmul.f32 %v605, 0.6931472
      %v607 = vlog2.pop %v590
      %v608 = vmul.f32 %v607, 0.6931472
      %v609 = vlog2.pop %v591
      %v610 = vmul.f32 %v609, 0.6931472
      %v611 = vlog2.pop %v592
      %v612 = vmul.f32 %v611, 0.6931472
      %v613 = vlog2.pop %v593
      %v614 = vmul.f32 %v613, 0.6931472
      %v615 = vlog2.pop %v594
      %v616 = vmul.f32 %v615, 0.6931472
      %v617 = vlog2.pop %v595
      %v618 = vmul.f32 %v617, 0.6931472
      %v619 = vlog2.pop %v596
      %v620 = vmul.f32 %v619, 0.6931472
      %v621 = vsub.f32 0.0, %v598
      %v622 = vsub.f32 0.0, %v600
      %v623 = vsub.f32 0.0, %v602
      %v624 = vsub.f32 0.0, %v604
      %v625 = vsub.f32 0.0, %v606
      %v626 = vsub.f32 0.0, %v608
      %v627 = vsub.f32 0.0, %v610
      %v628 = vsub.f32 0.0, %v612
      %v629 = vsub.f32 0.0, %v614
      %v630 = vsub.f32 0.0, %v616
      %v631 = vsub.f32 0.0, %v618
      %v632 = vsub.f32 0.0, %v620
      %v633 = vmax.f32 %v331, 0.0
      %v634 = vmax.f32 %v332, 0.0
      %v635 = vmax.f32 %v333, 0.0
      %v636 = vmax.f32 %v334, 0.0
      %v637 = vmax.f32 %v335, 0.0
      %v638 = vmax.f32 %v336, 0.0
      %v639 = vmax.f32 %v337, 0.0
      %v640 = vmax.f32 %v338, 0.0
      %v641 = vmax.f32 %v339, 0.0
      %v642 = vmax.f32 %v340, 0.0
      %v643 = vmax.f32 %v341, 0.0
      %v644 = vmax.f32 %v342, 0.0
      %v645 = vmul.f32 %v331, %v343
      %v646 = vmul.f32 %v332, %v343
      %v647 = vmul.f32 %v333, %v343
      %v648 = vmul.f32 %v334, %v344
      %v649 = vmul.f32 %v335, %v344
      %v650 = vmul.f32 %v336, %v344
      %v651 = vmul.f32 %v337, %v343
      %v652 = vmul.f32 %v338, %v343
      %v653 = vmul.f32 %v339, %v343
      %v654 = vmul.f32 %v340, %v344
      %v655 = vmul.f32 %v341, %v344
      %v656 = vmul.f32 %v342, %v344
      %v657 = vsub.f32 %v633, %v645
      %v658 = vsub.f32 %v634, %v646
      %v659 = vsub.f32 %v635, %v647
      %v660 = vsub.f32 %v636, %v648
      %v661 = vsub.f32 %v637, %v649
      %v662 = vsub.f32 %v638, %v650
      %v663 = vsub.f32 %v639, %v651
      %v664 = vsub.f32 %v640, %v652
      %v665 = vsub.f32 %v641, %v653
      %v666 = vsub.f32 %v642, %v654
      %v667 = vsub.f32 %v643, %v655
      %v668 = vsub.f32 %v644, %v656
      %v669 = vadd.f32 %v657, %v621
      %v670 = vadd.f32 %v658, %v622
      %v671 = vadd.f32 %v659, %v623
      %v672 = vadd.f32 %v660, %v624
      %v673 = vadd.f32 %v661, %v625
      %v674 = vadd.f32 %v662, %v626
      %v675 = vadd.f32 %v663, %v627
      %v676 = vadd.f32 %v664, %v628
      %v677 = vadd.f32 %v665, %v629
      %v678 = vadd.f32 %v666, %v630
      %v679 = vadd.f32 %v667, %v631
      %v680 = vadd.f32 %v668, %v632
      %v681 = vmul.f32 %v407, %v343
      %v682 = vmul.f32 %v422, %v343
      %v683 = vmul.f32 %v437, %v343
      %v684 = vmul.f32 %v452, %v344
      %v685 = vmul.f32 %v467, %v344
      %v686 = vmul.f32 %v482, %v344
      %v687 = vmul.f32 %v497, %v343
      %v688 = vmul.f32 %v512, %v343
      %v689 = vmul.f32 %v527, %v343
      %v690 = vmul.f32 %v542, %v344
      %v691 = vmul.f32 %v557, %v344
      %v692 = vmul.f32 %v572, %v344
      %v693 = vsub.f32 %v407, %v681
      %v694 = vsub.f32 %v422, %v682
      %v695 = vsub.f32 %v437, %v683
      %v696 = vsub.f32 %v452, %v684
      %v697 = vsub.f32 %v467, %v685
      %v698 = vsub.f32 %v482, %v686
      %v699 = vsub.f32 %v497, %v687
      %v700 = vsub.f32 %v512, %v688
      %v701 = vsub.f32 %v527, %v689
      %v702 = vsub.f32 %v542, %v690
      %v703 = vsub.f32 %v557, %v691
      %v704 = vsub.f32 %v572, %v692
      %v705 = vsub.f32 %v343, %v681
      %v706 = vsub.f32 %v343, %v682
      %v707 = vsub.f32 %v343, %v683
      %v708 = vsub.f32 %v344, %v684
      %v709 = vsub.f32 %v344, %v685
      %v710 = vsub.f32 %v344, %v686
      %v711 = vsub.f32 %v343, %v687
      %v712 = vsub.f32 %v343, %v688
      %v713 = vsub.f32 %v343, %v689
      %v714 = vsub.f32 %v344, %v690
      %v715 = vsub.f32 %v344, %v691
      %v716 = vsub.f32 %v344, %v692
      %v717 = vadd.f32 %v693, %v705
      %v718 = vadd.f32 %v694, %v706
      %v719 = vadd.f32 %v695, %v707
      %v720 = vadd.f32 %v696, %v708
      %v721 = vadd.f32 %v697, %v709
      %v722 = vadd.f32 %v698, %v710
      %v723 = vadd.f32 %v699, %v711
      %v724 = vadd.f32 %v700, %v712
      %v725 = vadd.f32 %v701, %v713
      %v726 = vadd.f32 %v702, %v714
      %v727 = vadd.f32 %v703, %v715
      %v728 = vadd.f32 %v704, %v716
      %v729 = vmul.f32 %v717, %v717
      %v730 = vmul.f32 %v718, %v718
      %v731 = vmul.f32 %v719, %v719
      %v732 = vmul.f32 %v720, %v720
      %v733 = vmul.f32 %v721, %v721
      %v734 = vmul.f32 %v722, %v722
      %v735 = vmul.f32 %v723, %v723
      %v736 = vmul.f32 %v724, %v724
      %v737 = vmul.f32 %v725, %v725
      %v738 = vmul.f32 %v726, %v726
      %v739 = vmul.f32 %v727, %v727
      %v740 = vmul.f32 %v728, %v728
      %v741 = vmul.f32 %v343, -0.5
      %v742 = vmul.f32 %v344, -0.5
      %v743 = vadd.f32 %v741, 0.75
      %v744 = vadd.f32 %v742, 0.75
      %v745 = vmul.f32 %v669, %v743
      %v746 = vmul.f32 %v670, %v743
      %v747 = vmul.f32 %v671, %v743
      %v748 = vmul.f32 %v672, %v744
      %v749 = vmul.f32 %v673, %v744
      %v750 = vmul.f32 %v674, %v744
      %v751 = vmul.f32 %v675, %v743
      %v752 = vmul.f32 %v676, %v743
      %v753 = vmul.f32 %v677, %v743
      %v754 = vmul.f32 %v678, %v744
      %v755 = vmul.f32 %v679, %v744
      %v756 = vmul.f32 %v680, %v744
      %v757 = vmul.f32 %v745, %v729
      %v758 = vmul.f32 %v746, %v730
      %v759 = vmul.f32 %v747, %v731
      %v760 = vmul.f32 %v748, %v732
      %v761 = vmul.f32 %v749, %v733
      %v762 = vmul.f32 %v750, %v734
      %v763 = vmul.f32 %v751, %v735
      %v764 = vmul.f32 %v752, %v736
      %v765 = vmul.f32 %v753, %v737
      %v766 = vmul.f32 %v754, %v738
      %v767 = vmul.f32 %v755, %v739
      %v768 = vmul.f32 %v756, %v740
      %vm769 = vcmp.gt.f32.partialorder %v331, 0.0
      %vm770 = vcmp.gt.f32.partialorder %v332, 0.0
      %vm771 = vcmp.gt.f32.partialorder %v333, 0.0
      %vm772 = vcmp.gt.f32.partialorder %v334, 0.0
      %vm773 = vcmp.gt.f32.partialorder %v335, 0.0
      %vm774 = vcmp.gt.f32.partialorder %v336, 0.0
      %vm775 = vcmp.gt.f32.partialorder %v337, 0.0
      %vm776 = vcmp.gt.f32.partialorder %v338, 0.0
      %vm777 = vcmp.gt.f32.partialorder %v339, 0.0
      %vm778 = vcmp.gt.f32.partialorder %v340, 0.0
      %vm779 = vcmp.gt.f32.partialorder %v341, 0.0
      %vm780 = vcmp.gt.f32.partialorder %v342, 0.0
      %v781 = vsel %vm769, 1, 0
      %v782 = vsel %vm770, 1, 0
      %v783 = vsel %vm771, 1, 0
      %v784 = vsel %vm772, 1, 0
      %v785 = vsel %vm773, 1, 0
      %v786 = vsel %vm774, 1, 0
      %v787 = vsel %vm775, 1, 0
      %v788 = vsel %vm776, 1, 0
      %v789 = vsel %vm777, 1, 0
      %v790 = vsel %vm778, 1, 0
      %v791 = vsel %vm779, 1, 0
      %v792 = vsel %vm780, 1, 0
      %v793 = vcvt.s32.f32 %v781
      %v794 = vcvt.s32.f32 %v782
      %v795 = vcvt.s32.f32 %v783
      %v796 = vcvt.s32.f32 %v784
      %v797 = vcvt.s32.f32 %v785
      %v798 = vcvt.s32.f32 %v786
      %v799 = vcvt.s32.f32 %v787
      %v800 = vcvt.s32.f32 %v788
      %v801 = vcvt.s32.f32 %v789
      %v802 = vcvt.s32.f32 %v790
      %v803 = vcvt.s32.f32 %v791
      %v804 = vcvt.s32.f32 %v792
      %v805 = vmul.f32 %v793, %v343
      %v806 = vmul.f32 %v794, %v343
      %v807 = vmul.f32 %v795, %v343
      %v808 = vmul.f32 %v796, %v344
      %v809 = vmul.f32 %v797, %v344
      %v810 = vmul.f32 %v798, %v344
      %v811 = vmul.f32 %v799, %v343
      %v812 = vmul.f32 %v800, %v343
      %v813 = vmul.f32 %v801, %v343
      %v814 = vmul.f32 %v802, %v344
      %v815 = vmul.f32 %v803, %v344
      %v816 = vmul.f32 %v804, %v344
      %v817 = vld [vmem:[%s2] sm:$0xff]
      %v818 = vld [vmem:[%s2 + $0x8] sm:$0xff]
      %v819 = vld [vmem:[%s2 + $0x10] sm:$0xff]
      %v820 = vld [vmem:[%s2 + $0x18] sm:$0xff]
      %v821 = vld [vmem:[%s2 + $0x20] sm:$0xff]
      %v822 = vld [vmem:[%s2 + $0x28] sm:$0xff]
      %v823 = vld [vmem:[%s2 + $0x30] sm:$0xff]
      %v824 = vld [vmem:[%s2 + $0x38] sm:$0xff]
      %v825 = vld [vmem:[%s2 + $0x40] sm:$0xff]
      %v826 = vld [vmem:[%s2 + $0x48] sm:$0xff]
      %v827 = vld [vmem:[%s2 + $0x50] sm:$0xff]
      %v828 = vld [vmem:[%s2 + $0x58] sm:$0xff]
      %v829 = vld [vmem:[%s2 + $0x60] sm:$0xff]
      %v830 = vld [vmem:[%s2 + $0x68] sm:$0xff]
      %v831 = vld [vmem:[%s2 + $0x70] sm:$0xff]
      %v832 = vld [vmem:[%s2 + $0x78] sm:$0xff]
      %v833 = vand.u32 %v832, 4294901760
      %834 = vmatpush.msra.mxu0 %v833
      %v835 = vand.u32 %v831, 4294901760
      %836 = vmatpush.msra.mxu0 %v835
      %v837 = vand.u32 %v830, 4294901760
      %838 = vmatpush.msra.mxu0 %v837
      %v839 = vand.u32 %v829, 4294901760
      %840 = vmatpush.msra.mxu0 %v839
      %v841 = vand.u32 %v828, 4294901760
      %842 = vmatpush.msra.mxu0 %v841
      %v843 = vand.u32 %v827, 4294901760
      %844 = vmatpush.msra.mxu0 %v843
      %v845 = vand.u32 %v826, 4294901760
      %846 = vmatpush.msra.mxu0 %v845
      %v847 = vand.u32 %v825, 4294901760
      %848 = vmatpush.msra.mxu0 %v847
      %v849 = vand.u32 %v824, 4294901760
      %850 = vmatpush.msra.mxu0 %v849
      %v851 = vand.u32 %v823, 4294901760
      %852 = vmatpush.msra.mxu0 %v851
      %v853 = vand.u32 %v822, 4294901760
      %854 = vmatpush.msra.mxu0 %v853
      %v855 = vand.u32 %v821, 4294901760
      %856 = vmatpush.msra.mxu0 %v855
      %v857 = vand.u32 %v820, 4294901760
      %858 = vmatpush.msra.mxu0 %v857
      %v859 = vand.u32 %v819, 4294901760
      %860 = vmatpush.msra.mxu0 %v859
      %v861 = vand.u32 %v818, 4294901760
      %862 = vmatpush.msra.mxu0 %v861
      %v863 = vand.u32 %v817, 4294901760
      %864 = vmatpush.msra.mxu0 %v863
      %v865 = vand.u32 %v757, 4294901760
      %v866 = vsub.f32 %v757, %v865
      %v867 = vand.u32 %v866, 4294901760
      %v868 = vsub.f32 %v866, %v867
      %v869 = vand.u32 %v868, 4294901760
      %870 = vmatmul.f32.gmra.mxu0 %v869
      %v871 = vpop.f32.mrf.mxu0
      %v872 = vadd.f32 0.0, %v871
      %v873 = vand.u32 %v758, 4294901760
      %v874 = vsub.f32 %v758, %v873
      %v875 = vand.u32 %v874, 4294901760
      %v876 = vsub.f32 %v874, %v875
      %v877 = vand.u32 %v876, 4294901760
      %878 = vmatmul.f32.gmra.mxu0 %v877
      %v879 = vpop.f32.mrf.mxu0
      %v880 = vadd.f32 0.0, %v879
      %v881 = vand.u32 %v759, 4294901760
      %v882 = vsub.f32 %v759, %v881
      %v883 = vand.u32 %v882, 4294901760
      %v884 = vsub.f32 %v882, %v883
      %v885 = vand.u32 %v884, 4294901760
      %886 = vmatmul.f32.gmra.mxu0 %v885
      %v887 = vpop.f32.mrf.mxu0
      %v888 = vadd.f32 0.0, %v887
      %v889 = vand.u32 %v760, 4294901760
      %v890 = vsub.f32 %v760, %v889
      %v891 = vand.u32 %v890, 4294901760
      %v892 = vsub.f32 %v890, %v891
      %v893 = vand.u32 %v892, 4294901760
      %894 = vmatmul.f32.gmra.mxu0 %v893
      %v895 = vpop.f32.mrf.mxu0
      %v896 = vadd.f32 0.0, %v895
      %v897 = vand.u32 %v761, 4294901760
      %v898 = vsub.f32 %v761, %v897
      %v899 = vand.u32 %v898, 4294901760
      %v900 = vsub.f32 %v898, %v899
      %v901 = vand.u32 %v900, 4294901760
      %902 = vmatmul.f32.gmra.mxu0 %v901
      %v903 = vpop.f32.mrf.mxu0
      %v904 = vadd.f32 0.0, %v903
      %v905 = vand.u32 %v762, 4294901760
      %v906 = vsub.f32 %v762, %v905
      %v907 = vand.u32 %v906, 4294901760
      %v908 = vsub.f32 %v906, %v907
      %v909 = vand.u32 %v908, 4294901760
      %910 = vmatmul.f32.gmra.mxu0 %v909
      %v911 = vpop.f32.mrf.mxu0
      %v912 = vadd.f32 0.0, %v911
      %v913 = vand.u32 %v763, 4294901760
      %v914 = vsub.f32 %v763, %v913
      %v915 = vand.u32 %v914, 4294901760
      %v916 = vsub.f32 %v914, %v915
      %v917 = vand.u32 %v916, 4294901760
      %918 = vmatmul.f32.gmra.mxu0 %v917
      %v919 = vpop.f32.mrf.mxu0
      %v920 = vadd.f32 0.0, %v919
      %v921 = vand.u32 %v764, 4294901760
      %v922 = vsub.f32 %v764, %v921
      %v923 = vand.u32 %v922, 4294901760
      %v924 = vsub.f32 %v922, %v923
      %v925 = vand.u32 %v924, 4294901760
      %926 = vmatmul.f32.gmra.mxu0 %v925
      %v927 = vpop.f32.mrf.mxu0
      %v928 = vadd.f32 0.0, %v927
      %v929 = vand.u32 %v765, 4294901760
      %v930 = vsub.f32 %v765, %v929
      %v931 = vand.u32 %v930, 4294901760
      %v932 = vsub.f32 %v930, %v931
      %v933 = vand.u32 %v932, 4294901760
      %934 = vmatmul.f32.gmra.mxu0 %v933
      %v935 = vpop.f32.mrf.mxu0
      %v936 = vadd.f32 0.0, %v935
      %v937 = vand.u32 %v766, 4294901760
      %v938 = vsub.f32 %v766, %v937
      %v939 = vand.u32 %v938, 4294901760
      %v940 = vsub.f32 %v938, %v939
      %v941 = vand.u32 %v940, 4294901760
      %942 = vmatmul.f32.gmra.mxu0 %v941
      %v943 = vpop.f32.mrf.mxu0
      %v944 = vadd.f32 0.0, %v943
      %v945 = vand.u32 %v767, 4294901760
      %v946 = vsub.f32 %v767, %v945
      %v947 = vand.u32 %v946, 4294901760
      %v948 = vsub.f32 %v946, %v947
      %v949 = vand.u32 %v948, 4294901760
      %950 = vmatmul.f32.gmra.mxu0 %v949
      %v951 = vpop.f32.mrf.mxu0
      %v952 = vadd.f32 0.0, %v951
      %v953 = vand.u32 %v768, 4294901760
      %v954 = vsub.f32 %v768, %v953
      %v955 = vand.u32 %v954, 4294901760
      %v956 = vsub.f32 %v954, %v955
      %v957 = vand.u32 %v956, 4294901760
      %958 = vmatmul.f32.gmra.mxu0 %v957
      %v959 = vpop.f32.mrf.mxu0
      %v960 = vadd.f32 0.0, %v959
      %961 = vdwg.mxu0
      %v962 = vand.u32 %v832, 4294901760
      %v963 = vsub.f32 %v832, %v962
      %v964 = vand.u32 %v963, 4294901760
      %v965 = vsub.f32 %v963, %v964
      %v966 = vand.u32 %v965, 4294901760
      %967 = vmatpush.msra.mxu0 %v966
      %v968 = vand.u32 %v831, 4294901760
      %v969 = vsub.f32 %v831, %v968
      %v970 = vand.u32 %v969, 4294901760
      %v971 = vsub.f32 %v969, %v970
      %v972 = vand.u32 %v971, 4294901760
      %973 = vmatpush.msra.mxu0 %v972
      %v974 = vand.u32 %v830, 4294901760
      %v975 = vsub.f32 %v830, %v974
      %v976 = vand.u32 %v975, 4294901760
      %v977 = vsub.f32 %v975, %v976
      %v978 = vand.u32 %v977, 4294901760
      %979 = vmatpush.msra.mxu0 %v978
      %v980 = vand.u32 %v829, 4294901760
      %v981 = vsub.f32 %v829, %v980
      %v982 = vand.u32 %v981, 4294901760
      %v983 = vsub.f32 %v981, %v982
      %v984 = vand.u32 %v983, 4294901760
      %985 = vmatpush.msra.mxu0 %v984
      %v986 = vand.u32 %v828, 4294901760
      %v987 = vsub.f32 %v828, %v986
      %v988 = vand.u32 %v987, 4294901760
      %v989 = vsub.f32 %v987, %v988
      %v990 = vand.u32 %v989, 4294901760
      %991 = vmatpush.msra.mxu0 %v990
      %v992 = vand.u32 %v827, 4294901760
      %v993 = vsub.f32 %v827, %v992
      %v994 = vand.u32 %v993, 4294901760
      %v995 = vsub.f32 %v993, %v994
      %v996 = vand.u32 %v995, 4294901760
      %997 = vmatpush.msra.mxu0 %v996
      %v998 = vand.u32 %v826, 4294901760
      %v999 = vsub.f32 %v826, %v998
      %v1000 = vand.u32 %v999, 4294901760
      %v1001 = vsub.f32 %v999, %v1000
      %v1002 = vand.u32 %v1001, 4294901760
      %1003 = vmatpush.msra.mxu0 %v1002
      %v1004 = vand.u32 %v825, 4294901760
      %v1005 = vsub.f32 %v825, %v1004
      %v1006 = vand.u32 %v1005, 4294901760
      %v1007 = vsub.f32 %v1005, %v1006
      %v1008 = vand.u32 %v1007, 4294901760
      %1009 = vmatpush.msra.mxu0 %v1008
      %v1010 = vand.u32 %v824, 4294901760
      %v1011 = vsub.f32 %v824, %v1010
      %v1012 = vand.u32 %v1011, 4294901760
      %v1013 = vsub.f32 %v1011, %v1012
      %v1014 = vand.u32 %v1013, 4294901760
      %1015 = vmatpush.msra.mxu0 %v1014
      %v1016 = vand.u32 %v823, 4294901760
      %v1017 = vsub.f32 %v823, %v1016
      %v1018 = vand.u32 %v1017, 4294901760
      %v1019 = vsub.f32 %v1017, %v1018
      %v1020 = vand.u32 %v1019, 4294901760
      %1021 = vmatpush.msra.mxu0 %v1020
      %v1022 = vand.u32 %v822, 4294901760
      %v1023 = vsub.f32 %v822, %v1022
      %v1024 = vand.u32 %v1023, 4294901760
      %v1025 = vsub.f32 %v1023, %v1024
      %v1026 = vand.u32 %v1025, 4294901760
      %1027 = vmatpush.msra.mxu0 %v1026
      %v1028 = vand.u32 %v821, 4294901760
      %v1029 = vsub.f32 %v821, %v1028
      %v1030 = vand.u32 %v1029, 4294901760
      %v1031 = vsub.f32 %v1029, %v1030
      %v1032 = vand.u32 %v1031, 4294901760
      %1033 = vmatpush.msra.mxu0 %v1032
      %v1034 = vand.u32 %v820, 4294901760
      %v1035 = vsub.f32 %v820, %v1034
      %v1036 = vand.u32 %v1035, 4294901760
      %v1037 = vsub.f32 %v1035, %v1036
      %v1038 = vand.u32 %v1037, 4294901760
      %1039 = vmatpush.msra.mxu0 %v1038
      %v1040 = vand.u32 %v819, 4294901760
      %v1041 = vsub.f32 %v819, %v1040
      %v1042 = vand.u32 %v1041, 4294901760
      %v1043 = vsub.f32 %v1041, %v1042
      %v1044 = vand.u32 %v1043, 4294901760
      %1045 = vmatpush.msra.mxu0 %v1044
      %v1046 = vand.u32 %v818, 4294901760
      %v1047 = vsub.f32 %v818, %v1046
      %v1048 = vand.u32 %v1047, 4294901760
      %v1049 = vsub.f32 %v1047, %v1048
      %v1050 = vand.u32 %v1049, 4294901760
      %1051 = vmatpush.msra.mxu0 %v1050
      %v1052 = vand.u32 %v817, 4294901760
      %v1053 = vsub.f32 %v817, %v1052
      %v1054 = vand.u32 %v1053, 4294901760
      %v1055 = vsub.f32 %v1053, %v1054
      %v1056 = vand.u32 %v1055, 4294901760
      %1057 = vmatpush.msra.mxu0 %v1056
      %v1058 = vand.u32 %v757, 4294901760
      %1059 = vmatmul.f32.gmra.mxu0 %v1058
      %v1060 = vpop.f32.mrf.mxu0
      %v1061 = vadd.f32 %v872, %v1060
      %v1062 = vand.u32 %v758, 4294901760
      %1063 = vmatmul.f32.gmra.mxu0 %v1062
      %v1064 = vpop.f32.mrf.mxu0
      %v1065 = vadd.f32 %v880, %v1064
      %v1066 = vand.u32 %v759, 4294901760
      %1067 = vmatmul.f32.gmra.mxu0 %v1066
      %v1068 = vpop.f32.mrf.mxu0
      %v1069 = vadd.f32 %v888, %v1068
      %v1070 = vand.u32 %v760, 4294901760
      %1071 = vmatmul.f32.gmra.mxu0 %v1070
      %v1072 = vpop.f32.mrf.mxu0
      %v1073 = vadd.f32 %v896, %v1072
      %v1074 = vand.u32 %v761, 4294901760
      %1075 = vmatmul.f32.gmra.mxu0 %v1074
      %v1076 = vpop.f32.mrf.mxu0
      %v1077 = vadd.f32 %v904, %v1076
      %v1078 = vand.u32 %v762, 4294901760
      %1079 = vmatmul.f32.gmra.mxu0 %v1078
      %v1080 = vpop.f32.mrf.mxu0
      %v1081 = vadd.f32 %v912, %v1080
      %v1082 = vand.u32 %v763, 4294901760
      %1083 = vmatmul.f32.gmra.mxu0 %v1082
      %v1084 = vpop.f32.mrf.mxu0
      %v1085 = vadd.f32 %v920, %v1084
      %v1086 = vand.u32 %v764, 4294901760
      %1087 = vmatmul.f32.gmra.mxu0 %v1086
      %v1088 = vpop.f32.mrf.mxu0
      %v1089 = vadd.f32 %v928, %v1088
      %v1090 = vand.u32 %v765, 4294901760
      %1091 = vmatmul.f32.gmra.mxu0 %v1090
      %v1092 = vpop.f32.mrf.mxu0
      %v1093 = vadd.f32 %v936, %v1092
      %v1094 = vand.u32 %v766, 4294901760
      %1095 = vmatmul.f32.gmra.mxu0 %v1094
      %v1096 = vpop.f32.mrf.mxu0
      %v1097 = vadd.f32 %v944, %v1096
      %v1098 = vand.u32 %v767, 4294901760
      %1099 = vmatmul.f32.gmra.mxu0 %v1098
      %v1100 = vpop.f32.mrf.mxu0
      %v1101 = vadd.f32 %v952, %v1100
      %v1102 = vand.u32 %v768, 4294901760
      %1103 = vmatmul.f32.gmra.mxu0 %v1102
      %v1104 = vpop.f32.mrf.mxu0
      %v1105 = vadd.f32 %v960, %v1104
      %1106 = vdwg.mxu0
      %v1107 = vand.u32 %v832, 4294901760
      %v1108 = vsub.f32 %v832, %v1107
      %1109 = vmatpush.msra.mxu0 %v1108
      %v1110 = vand.u32 %v831, 4294901760
      %v1111 = vsub.f32 %v831, %v1110
      %1112 = vmatpush.msra.mxu0 %v1111
      %v1113 = vand.u32 %v830, 4294901760
      %v1114 = vsub.f32 %v830, %v1113
      %1115 = vmatpush.msra.mxu0 %v1114
      %v1116 = vand.u32 %v829, 4294901760
      %v1117 = vsub.f32 %v829, %v1116
      %1118 = vmatpush.msra.mxu0 %v1117
      %v1119 = vand.u32 %v828, 4294901760
      %v1120 = vsub.f32 %v828, %v1119
      %1121 = vmatpush.msra.mxu0 %v1120
      %v1122 = vand.u32 %v827, 4294901760
      %v1123 = vsub.f32 %v827, %v1122
      %1124 = vmatpush.msra.mxu0 %v1123
      %v1125 = vand.u32 %v826, 4294901760
      %v1126 = vsub.f32 %v826, %v1125
      %1127 = vmatpush.msra.mxu0 %v1126
      %v1128 = vand.u32 %v825, 4294901760
      %v1129 = vsub.f32 %v825, %v1128
      %1130 = vmatpush.msra.mxu0 %v1129
      %v1131 = vand.u32 %v824, 4294901760
      %v1132 = vsub.f32 %v824, %v1131
      %1133 = vmatpush.msra.mxu0 %v1132
      %v1134 = vand.u32 %v823, 4294901760
      %v1135 = vsub.f32 %v823, %v1134
      %1136 = vmatpush.msra.mxu0 %v1135
      %v1137 = vand.u32 %v822, 4294901760
      %v1138 = vsub.f32 %v822, %v1137
      %1139 = vmatpush.msra.mxu0 %v1138
      %v1140 = vand.u32 %v821, 4294901760
      %v1141 = vsub.f32 %v821, %v1140
      %1142 = vmatpush.msra.mxu0 %v1141
      %v1143 = vand.u32 %v820, 4294901760
      %v1144 = vsub.f32 %v820, %v1143
      %1145 = vmatpush.msra.mxu0 %v1144
      %v1146 = vand.u32 %v819, 4294901760
      %v1147 = vsub.f32 %v819, %v1146
      %1148 = vmatpush.msra.mxu0 %v1147
      %v1149 = vand.u32 %v818, 4294901760
      %v1150 = vsub.f32 %v818, %v1149
      %1151 = vmatpush.msra.mxu0 %v1150
      %v1152 = vand.u32 %v817, 4294901760
      %v1153 = vsub.f32 %v817, %v1152
      %1154 = vmatpush.msra.mxu0 %v1153
      %v1155 = vand.u32 %v757, 4294901760
      %v1156 = vsub.f32 %v757, %v1155
      %1157 = vmatmul.f32.gmra.mxu0 %v1156
      %v1158 = vpop.f32.mrf.mxu0
      %v1159 = vadd.f32 %v1061, %v1158
      %v1160 = vand.u32 %v758, 4294901760
      %v1161 = vsub.f32 %v758, %v1160
      %1162 = vmatmul.f32.gmra.mxu0 %v1161
      %v1163 = vpop.f32.mrf.mxu0
      %v1164 = vadd.f32 %v1065, %v1163
      %v1165 = vand.u32 %v759, 4294901760
      %v1166 = vsub.f32 %v759, %v1165
      %1167 = vmatmul.f32.gmra.mxu0 %v1166
      %v1168 = vpop.f32.mrf.mxu0
      %v1169 = vadd.f32 %v1069, %v1168
      %v1170 = vand.u32 %v760, 4294901760
      %v1171 = vsub.f32 %v760, %v1170
      %1172 = vmatmul.f32.gmra.mxu0 %v1171
      %v1173 = vpop.f32.mrf.mxu0
      %v1174 = vadd.f32 %v1073, %v1173
      %v1175 = vand.u32 %v761, 4294901760
      %v1176 = vsub.f32 %v761, %v1175
      %1177 = vmatmul.f32.gmra.mxu0 %v1176
      %v1178 = vpop.f32.mrf.mxu0
      %v1179 = vadd.f32 %v1077, %v1178
      %v1180 = vand.u32 %v762, 4294901760
      %v1181 = vsub.f32 %v762, %v1180
      %1182 = vmatmul.f32.gmra.mxu0 %v1181
      %v1183 = vpop.f32.mrf.mxu0
      %v1184 = vadd.f32 %v1081, %v1183
      %v1185 = vand.u32 %v763, 4294901760
      %v1186 = vsub.f32 %v763, %v1185
      %1187 = vmatmul.f32.gmra.mxu0 %v1186
      %v1188 = vpop.f32.mrf.mxu0
      %v1189 = vadd.f32 %v1085, %v1188
      %v1190 = vand.u32 %v764, 4294901760
      %v1191 = vsub.f32 %v764, %v1190
      %1192 = vmatmul.f32.gmra.mxu0 %v1191
      %v1193 = vpop.f32.mrf.mxu0
      %v1194 = vadd.f32 %v1089, %v1193
      %v1195 = vand.u32 %v765, 4294901760
      %v1196 = vsub.f32 %v765, %v1195
      %1197 = vmatmul.f32.gmra.mxu0 %v1196
      %v1198 = vpop.f32.mrf.mxu0
      %v1199 = vadd.f32 %v1093, %v1198
      %v1200 = vand.u32 %v766, 4294901760
      %v1201 = vsub.f32 %v766, %v1200
      %1202 = vmatmul.f32.gmra.mxu0 %v1201
      %v1203 = vpop.f32.mrf.mxu0
      %v1204 = vadd.f32 %v1097, %v1203
      %v1205 = vand.u32 %v767, 4294901760
      %v1206 = vsub.f32 %v767, %v1205
      %1207 = vmatmul.f32.gmra.mxu0 %v1206
      %v1208 = vpop.f32.mrf.mxu0
      %v1209 = vadd.f32 %v1101, %v1208
      %v1210 = vand.u32 %v768, 4294901760
      %v1211 = vsub.f32 %v768, %v1210
      %1212 = vmatmul.f32.gmra.mxu0 %v1211
      %v1213 = vpop.f32.mrf.mxu0
      %v1214 = vadd.f32 %v1105, %v1213
      %1215 = vdwg.mxu0
      %v1216 = vand.u32 %v832, 4294901760
      %1217 = vmatpush.msra.mxu0 %v1216
      %v1218 = vand.u32 %v831, 4294901760
      %1219 = vmatpush.msra.mxu0 %v1218
      %v1220 = vand.u32 %v830, 4294901760
      %1221 = vmatpush.msra.mxu0 %v1220
      %v1222 = vand.u32 %v829, 4294901760
      %1223 = vmatpush.msra.mxu0 %v1222
      %v1224 = vand.u32 %v828, 4294901760
      %1225 = vmatpush.msra.mxu0 %v1224
      %v1226 = vand.u32 %v827, 4294901760
      %1227 = vmatpush.msra.mxu0 %v1226
      %v1228 = vand.u32 %v826, 4294901760
      %1229 = vmatpush.msra.mxu0 %v1228
      %v1230 = vand.u32 %v825, 4294901760
      %1231 = vmatpush.msra.mxu0 %v1230
      %v1232 = vand.u32 %v824, 4294901760
      %1233 = vmatpush.msra.mxu0 %v1232
      %v1234 = vand.u32 %v823, 4294901760
      %1235 = vmatpush.msra.mxu0 %v1234
      %v1236 = vand.u32 %v822, 4294901760
      %1237 = vmatpush.msra.mxu0 %v1236
      %v1238 = vand.u32 %v821, 4294901760
      %1239 = vmatpush.msra.mxu0 %v1238
      %v1240 = vand.u32 %v820, 4294901760
      %1241 = vmatpush.msra.mxu0 %v1240
      %v1242 = vand.u32 %v819, 4294901760
      %1243 = vmatpush.msra.mxu0 %v1242
      %v1244 = vand.u32 %v818, 4294901760
      %1245 = vmatpush.msra.mxu0 %v1244
      %v1246 = vand.u32 %v817, 4294901760
      %1247 = vmatpush.msra.mxu0 %v1246
      %v1248 = vand.u32 %v757, 4294901760
      %v1249 = vsub.f32 %v757, %v1248
      %v1250 = vand.u32 %v1249, 4294901760
      %1251 = vmatmul.f32.gmra.mxu0 %v1250
      %v1252 = vpop.f32.mrf.mxu0
      %v1253 = vadd.f32 %v1159, %v1252
      %v1254 = vand.u32 %v758, 4294901760
      %v1255 = vsub.f32 %v758, %v1254
      %v1256 = vand.u32 %v1255, 4294901760
      %1257 = vmatmul.f32.gmra.mxu0 %v1256
      %v1258 = vpop.f32.mrf.mxu0
      %v1259 = vadd.f32 %v1164, %v1258
      %v1260 = vand.u32 %v759, 4294901760
      %v1261 = vsub.f32 %v759, %v1260
      %v1262 = vand.u32 %v1261, 4294901760
      %1263 = vmatmul.f32.gmra.mxu0 %v1262
      %v1264 = vpop.f32.mrf.mxu0
      %v1265 = vadd.f32 %v1169, %v1264
      %v1266 = vand.u32 %v760, 4294901760
      %v1267 = vsub.f32 %v760, %v1266
      %v1268 = vand.u32 %v1267, 4294901760
      %1269 = vmatmul.f32.gmra.mxu0 %v1268
      %v1270 = vpop.f32.mrf.mxu0
      %v1271 = vadd.f32 %v1174, %v1270
      %v1272 = vand.u32 %v761, 4294901760
      %v1273 = vsub.f32 %v761, %v1272
      %v1274 = vand.u32 %v1273, 4294901760
      %1275 = vmatmul.f32.gmra.mxu0 %v1274
      %v1276 = vpop.f32.mrf.mxu0
      %v1277 = vadd.f32 %v1179, %v1276
      %v1278 = vand.u32 %v762, 4294901760
      %v1279 = vsub.f32 %v762, %v1278
      %v1280 = vand.u32 %v1279, 4294901760
      %1281 = vmatmul.f32.gmra.mxu0 %v1280
      %v1282 = vpop.f32.mrf.mxu0
      %v1283 = vadd.f32 %v1184, %v1282
      %v1284 = vand.u32 %v763, 4294901760
      %v1285 = vsub.f32 %v763, %v1284
      %v1286 = vand.u32 %v1285, 4294901760
      %1287 = vmatmul.f32.gmra.mxu0 %v1286
      %v1288 = vpop.f32.mrf.mxu0
      %v1289 = vadd.f32 %v1189, %v1288
      %v1290 = vand.u32 %v764, 4294901760
      %v1291 = vsub.f32 %v764, %v1290
      %v1292 = vand.u32 %v1291, 4294901760
      %1293 = vmatmul.f32.gmra.mxu0 %v1292
      %v1294 = vpop.f32.mrf.mxu0
      %v1295 = vadd.f32 %v1194, %v1294
      %v1296 = vand.u32 %v765, 4294901760
      %v1297 = vsub.f32 %v765, %v1296
      %v1298 = vand.u32 %v1297, 4294901760
      %1299 = vmatmul.f32.gmra.mxu0 %v1298
      %v1300 = vpop.f32.mrf.mxu0
      %v1301 = vadd.f32 %v1199, %v1300
      %v1302 = vand.u32 %v766, 4294901760
      %v1303 = vsub.f32 %v766, %v1302
      %v1304 = vand.u32 %v1303, 4294901760
      %1305 = vmatmul.f32.gmra.mxu0 %v1304
      %v1306 = vpop.f32.mrf.mxu0
      %v1307 = vadd.f32 %v1204, %v1306
      %v1308 = vand.u32 %v767, 4294901760
      %v1309 = vsub.f32 %v767, %v1308
      %v1310 = vand.u32 %v1309, 4294901760
      %1311 = vmatmul.f32.gmra.mxu0 %v1310
      %v1312 = vpop.f32.mrf.mxu0
      %v1313 = vadd.f32 %v1209, %v1312
      %v1314 = vand.u32 %v768, 4294901760
      %v1315 = vsub.f32 %v768, %v1314
      %v1316 = vand.u32 %v1315, 4294901760
      %1317 = vmatmul.f32.gmra.mxu0 %v1316
      %v1318 = vpop.f32.mrf.mxu0
      %v1319 = vadd.f32 %v1214, %v1318
      %1320 = vdwg.mxu0
      %v1321 = vand.u32 %v832, 4294901760
      %v1322 = vsub.f32 %v832, %v1321
      %v1323 = vand.u32 %v1322, 4294901760
      %1324 = vmatpush.msra.mxu0 %v1323
      %v1325 = vand.u32 %v831, 4294901760
      %v1326 = vsub.f32 %v831, %v1325
      %v1327 = vand.u32 %v1326, 4294901760
      %1328 = vmatpush.msra.mxu0 %v1327
      %v1329 = vand.u32 %v830, 4294901760
      %v1330 = vsub.f32 %v830, %v1329
      %v1331 = vand.u32 %v1330, 4294901760
      %1332 = vmatpush.msra.mxu0 %v1331
      %v1333 = vand.u32 %v829, 4294901760
      %v1334 = vsub.f32 %v829, %v1333
      %v1335 = vand.u32 %v1334, 4294901760
      %1336 = vmatpush.msra.mxu0 %v1335
      %v1337 = vand.u32 %v828, 4294901760
      %v1338 = vsub.f32 %v828, %v1337
      %v1339 = vand.u32 %v1338, 4294901760
      %1340 = vmatpush.msra.mxu0 %v1339
      %v1341 = vand.u32 %v827, 4294901760
      %v1342 = vsub.f32 %v827, %v1341
      %v1343 = vand.u32 %v1342, 4294901760
      %1344 = vmatpush.msra.mxu0 %v1343
      %v1345 = vand.u32 %v826, 4294901760
      %v1346 = vsub.f32 %v826, %v1345
      %v1347 = vand.u32 %v1346, 4294901760
      %1348 = vmatpush.msra.mxu0 %v1347
      %v1349 = vand.u32 %v825, 4294901760
      %v1350 = vsub.f32 %v825, %v1349
      %v1351 = vand.u32 %v1350, 4294901760
      %1352 = vmatpush.msra.mxu0 %v1351
      %v1353 = vand.u32 %v824, 4294901760
      %v1354 = vsub.f32 %v824, %v1353
      %v1355 = vand.u32 %v1354, 4294901760
      %1356 = vmatpush.msra.mxu0 %v1355
      %v1357 = vand.u32 %v823, 4294901760
      %v1358 = vsub.f32 %v823, %v1357
      %v1359 = vand.u32 %v1358, 4294901760
      %1360 = vmatpush.msra.mxu0 %v1359
      %v1361 = vand.u32 %v822, 4294901760
      %v1362 = vsub.f32 %v822, %v1361
      %v1363 = vand.u32 %v1362, 4294901760
      %1364 = vmatpush.msra.mxu0 %v1363
      %v1365 = vand.u32 %v821, 4294901760
      %v1366 = vsub.f32 %v821, %v1365
      %v1367 = vand.u32 %v1366, 4294901760
      %1368 = vmatpush.msra.mxu0 %v1367
      %v1369 = vand.u32 %v820, 4294901760
      %v1370 = vsub.f32 %v820, %v1369
      %v1371 = vand.u32 %v1370, 4294901760
      %1372 = vmatpush.msra.mxu0 %v1371
      %v1373 = vand.u32 %v819, 4294901760
      %v1374 = vsub.f32 %v819, %v1373
      %v1375 = vand.u32 %v1374, 4294901760
      %1376 = vmatpush.msra.mxu0 %v1375
      %v1377 = vand.u32 %v818, 4294901760
      %v1378 = vsub.f32 %v818, %v1377
      %v1379 = vand.u32 %v1378, 4294901760
      %1380 = vmatpush.msra.mxu0 %v1379
      %v1381 = vand.u32 %v817, 4294901760
      %v1382 = vsub.f32 %v817, %v1381
      %v1383 = vand.u32 %v1382, 4294901760
      %1384 = vmatpush.msra.mxu0 %v1383
      %v1385 = vand.u32 %v757, 4294901760
      %1386 = vmatmul.f32.gmra.mxu0 %v1385
      %v1387 = vpop.f32.mrf.mxu0
      %v1388 = vadd.f32 %v1253, %v1387
      %v1389 = vand.u32 %v758, 4294901760
      %1390 = vmatmul.f32.gmra.mxu0 %v1389
      %v1391 = vpop.f32.mrf.mxu0
      %v1392 = vadd.f32 %v1259, %v1391
      %v1393 = vand.u32 %v759, 4294901760
      %1394 = vmatmul.f32.gmra.mxu0 %v1393
      %v1395 = vpop.f32.mrf.mxu0
      %v1396 = vadd.f32 %v1265, %v1395
      %v1397 = vand.u32 %v760, 4294901760
      %1398 = vmatmul.f32.gmra.mxu0 %v1397
      %v1399 = vpop.f32.mrf.mxu0
      %v1400 = vadd.f32 %v1271, %v1399
      %v1401 = vand.u32 %v761, 4294901760
      %1402 = vmatmul.f32.gmra.mxu0 %v1401
      %v1403 = vpop.f32.mrf.mxu0
      %v1404 = vadd.f32 %v1277, %v1403
      %v1405 = vand.u32 %v762, 4294901760
      %1406 = vmatmul.f32.gmra.mxu0 %v1405
      %v1407 = vpop.f32.mrf.mxu0
      %v1408 = vadd.f32 %v1283, %v1407
      %v1409 = vand.u32 %v763, 4294901760
      %1410 = vmatmul.f32.gmra.mxu0 %v1409
      %v1411 = vpop.f32.mrf.mxu0
      %v1412 = vadd.f32 %v1289, %v1411
      %v1413 = vand.u32 %v764, 4294901760
      %1414 = vmatmul.f32.gmra.mxu0 %v1413
      %v1415 = vpop.f32.mrf.mxu0
      %v1416 = vadd.f32 %v1295, %v1415
      %v1417 = vand.u32 %v765, 4294901760
      %1418 = vmatmul.f32.gmra.mxu0 %v1417
      %v1419 = vpop.f32.mrf.mxu0
      %v1420 = vadd.f32 %v1301, %v1419
      %v1421 = vand.u32 %v766, 4294901760
      %1422 = vmatmul.f32.gmra.mxu0 %v1421
      %v1423 = vpop.f32.mrf.mxu0
      %v1424 = vadd.f32 %v1307, %v1423
      %v1425 = vand.u32 %v767, 4294901760
      %1426 = vmatmul.f32.gmra.mxu0 %v1425
      %v1427 = vpop.f32.mrf.mxu0
      %v1428 = vadd.f32 %v1313, %v1427
      %v1429 = vand.u32 %v768, 4294901760
      %1430 = vmatmul.f32.gmra.mxu0 %v1429
      %v1431 = vpop.f32.mrf.mxu0
      %v1432 = vadd.f32 %v1319, %v1431
      %1433 = vdwg.mxu0
      %v1434 = vand.u32 %v832, 4294901760
      %1435 = vmatpush.msra.mxu0 %v1434
      %v1436 = vand.u32 %v831, 4294901760
      %1437 = vmatpush.msra.mxu0 %v1436
      %v1438 = vand.u32 %v830, 4294901760
      %1439 = vmatpush.msra.mxu0 %v1438
      %v1440 = vand.u32 %v829, 4294901760
      %1441 = vmatpush.msra.mxu0 %v1440
      %v1442 = vand.u32 %v828, 4294901760
      %1443 = vmatpush.msra.mxu0 %v1442
      %v1444 = vand.u32 %v827, 4294901760
      %1445 = vmatpush.msra.mxu0 %v1444
      %v1446 = vand.u32 %v826, 4294901760
      %1447 = vmatpush.msra.mxu0 %v1446
      %v1448 = vand.u32 %v825, 4294901760
      %1449 = vmatpush.msra.mxu0 %v1448
      %v1450 = vand.u32 %v824, 4294901760
      %1451 = vmatpush.msra.mxu0 %v1450
      %v1452 = vand.u32 %v823, 4294901760
      %1453 = vmatpush.msra.mxu0 %v1452
      %v1454 = vand.u32 %v822, 4294901760
      %1455 = vmatpush.msra.mxu0 %v1454
      %v1456 = vand.u32 %v821, 4294901760
      %1457 = vmatpush.msra.mxu0 %v1456
      %v1458 = vand.u32 %v820, 4294901760
      %1459 = vmatpush.msra.mxu0 %v1458
      %v1460 = vand.u32 %v819, 4294901760
      %1461 = vmatpush.msra.mxu0 %v1460
      %v1462 = vand.u32 %v818, 4294901760
      %1463 = vmatpush.msra.mxu0 %v1462
      %v1464 = vand.u32 %v817, 4294901760
      %1465 = vmatpush.msra.mxu0 %v1464
      %v1466 = vand.u32 %v757, 4294901760
      %1467 = vmatmul.f32.gmra.mxu0 %v1466
      %v1468 = vpop.f32.mrf.mxu0
      %v1469 = vadd.f32 %v1388, %v1468
      %v1470 = vand.u32 %v758, 4294901760
      %1471 = vmatmul.f32.gmra.mxu0 %v1470
      %v1472 = vpop.f32.mrf.mxu0
      %v1473 = vadd.f32 %v1392, %v1472
      %v1474 = vand.u32 %v759, 4294901760
      %1475 = vmatmul.f32.gmra.mxu0 %v1474
      %v1476 = vpop.f32.mrf.mxu0
      %v1477 = vadd.f32 %v1396, %v1476
      %v1478 = vand.u32 %v760, 4294901760
      %1479 = vmatmul.f32.gmra.mxu0 %v1478
      %v1480 = vpop.f32.mrf.mxu0
      %v1481 = vadd.f32 %v1400, %v1480
      %v1482 = vand.u32 %v761, 4294901760
      %1483 = vmatmul.f32.gmra.mxu0 %v1482
      %v1484 = vpop.f32.mrf.mxu0
      %v1485 = vadd.f32 %v1404, %v1484
      %v1486 = vand.u32 %v762, 4294901760
      %1487 = vmatmul.f32.gmra.mxu0 %v1486
      %v1488 = vpop.f32.mrf.mxu0
      %v1489 = vadd.f32 %v1408, %v1488
      %v1490 = vand.u32 %v763, 4294901760
      %1491 = vmatmul.f32.gmra.mxu0 %v1490
      %v1492 = vpop.f32.mrf.mxu0
      %v1493 = vadd.f32 %v1412, %v1492
      %v1494 = vand.u32 %v764, 4294901760
      %1495 = vmatmul.f32.gmra.mxu0 %v1494
      %v1496 = vpop.f32.mrf.mxu0
      %v1497 = vadd.f32 %v1416, %v1496
      %v1498 = vand.u32 %v765, 4294901760
      %1499 = vmatmul.f32.gmra.mxu0 %v1498
      %v1500 = vpop.f32.mrf.mxu0
      %v1501 = vadd.f32 %v1420, %v1500
      %v1502 = vand.u32 %v766, 4294901760
      %1503 = vmatmul.f32.gmra.mxu0 %v1502
      %v1504 = vpop.f32.mrf.mxu0
      %v1505 = vadd.f32 %v1424, %v1504
      %v1506 = vand.u32 %v767, 4294901760
      %1507 = vmatmul.f32.gmra.mxu0 %v1506
      %v1508 = vpop.f32.mrf.mxu0
      %v1509 = vadd.f32 %v1428, %v1508
      %v1510 = vand.u32 %v768, 4294901760
      %1511 = vmatmul.f32.gmra.mxu0 %v1510
      %v1512 = vpop.f32.mrf.mxu0
      %v1513 = vadd.f32 %v1432, %v1512
      %1514 = vdwg.mxu0
      %v1515 = vld [vmem:[%s259] sm:$0xff]
      %v1516 = vld [vmem:[%s259 + $0x8] sm:$0xff]
      %v1517 = vld [vmem:[%s259 + $0x10] sm:$0xff]
      %v1518 = vld [vmem:[%s259 + $0x18] sm:$0xff]
      %v1519 = vld [vmem:[%s259 + $0x20] sm:$0xff]
      %v1520 = vld [vmem:[%s259 + $0x28] sm:$0xff]
      %v1521 = vld [vmem:[%s259 + $0x30] sm:$0xff]
      %v1522 = vld [vmem:[%s259 + $0x38] sm:$0xff]
      %v1523 = vld [vmem:[%s259 + $0x40] sm:$0xff]
      %v1524 = vld [vmem:[%s259 + $0x48] sm:$0xff]
      %v1525 = vld [vmem:[%s259 + $0x50] sm:$0xff]
      %v1526 = vld [vmem:[%s259 + $0x58] sm:$0xff]
      %v1527 = vadd.f32 %v1515, %v1469
      %v1528 = vadd.f32 %v1516, %v1473
      %v1529 = vadd.f32 %v1517, %v1477
      %v1530 = vadd.f32 %v1518, %v1481
      %v1531 = vadd.f32 %v1519, %v1485
      %v1532 = vadd.f32 %v1520, %v1489
      %v1533 = vadd.f32 %v1521, %v1493
      %v1534 = vadd.f32 %v1522, %v1497
      %v1535 = vadd.f32 %v1523, %v1501
      %v1536 = vadd.f32 %v1524, %v1505
      %v1537 = vadd.f32 %v1525, %v1509
      %v1538 = vadd.f32 %v1526, %v1513
      %1539 = vst [vmem:[%s259] sm:$0xff] %v1527
      %1540 = vst [vmem:[%s259 + $0x8] sm:$0xff] %v1528
      %1541 = vst [vmem:[%s259 + $0x10] sm:$0xff] %v1529
      %1542 = vst [vmem:[%s259 + $0x18] sm:$0xff] %v1530
      %1543 = vst [vmem:[%s259 + $0x20] sm:$0xff] %v1531
      %1544 = vst [vmem:[%s259 + $0x28] sm:$0xff] %v1532
      %1545 = vst [vmem:[%s259 + $0x30] sm:$0xff] %v1533
      %1546 = vst [vmem:[%s259 + $0x38] sm:$0xff] %v1534
      %1547 = vst [vmem:[%s259 + $0x40] sm:$0xff] %v1535
      %1548 = vst [vmem:[%s259 + $0x48] sm:$0xff] %v1536
      %1549 = vst [vmem:[%s259 + $0x50] sm:$0xff] %v1537
      %1550 = vst [vmem:[%s259 + $0x58] sm:$0xff] %v1538
      %v1551 = vand.u32 %v832, 4294901760
      %1552 = vmatpush.msra.mxu0 %v1551
      %v1553 = vand.u32 %v831, 4294901760
      %1554 = vmatpush.msra.mxu0 %v1553
      %v1555 = vand.u32 %v830, 4294901760
      %1556 = vmatpush.msra.mxu0 %v1555
      %v1557 = vand.u32 %v829, 4294901760
      %1558 = vmatpush.msra.mxu0 %v1557
      %v1559 = vand.u32 %v828, 4294901760
      %1560 = vmatpush.msra.mxu0 %v1559
      %v1561 = vand.u32 %v827, 4294901760
      %1562 = vmatpush.msra.mxu0 %v1561
      %v1563 = vand.u32 %v826, 4294901760
      %1564 = vmatpush.msra.mxu0 %v1563
      %v1565 = vand.u32 %v825, 4294901760
      %1566 = vmatpush.msra.mxu0 %v1565
      %v1567 = vand.u32 %v824, 4294901760
      %1568 = vmatpush.msra.mxu0 %v1567
      %v1569 = vand.u32 %v823, 4294901760
      %1570 = vmatpush.msra.mxu0 %v1569
      %v1571 = vand.u32 %v822, 4294901760
      %1572 = vmatpush.msra.mxu0 %v1571
      %v1573 = vand.u32 %v821, 4294901760
      %1574 = vmatpush.msra.mxu0 %v1573
      %v1575 = vand.u32 %v820, 4294901760
      %1576 = vmatpush.msra.mxu0 %v1575
      %v1577 = vand.u32 %v819, 4294901760
      %1578 = vmatpush.msra.mxu0 %v1577
      %v1579 = vand.u32 %v818, 4294901760
      %1580 = vmatpush.msra.mxu0 %v1579
      %v1581 = vand.u32 %v817, 4294901760
      %1582 = vmatpush.msra.mxu0 %v1581
      %v1583 = vand.u32 %v681, 4294901760
      %v1584 = vsub.f32 %v681, %v1583
      %v1585 = vand.u32 %v1584, 4294901760
      %v1586 = vsub.f32 %v1584, %v1585
      %v1587 = vand.u32 %v1586, 4294901760
      %1588 = vmatmul.f32.gmra.mxu0 %v1587
      %v1589 = vpop.f32.mrf.mxu0
      %v1590 = vadd.f32 0.0, %v1589
      %v1591 = vand.u32 %v682, 4294901760
      %v1592 = vsub.f32 %v682, %v1591
      %v1593 = vand.u32 %v1592, 4294901760
      %v1594 = vsub.f32 %v1592, %v1593
      %v1595 = vand.u32 %v1594, 4294901760
      %1596 = vmatmul.f32.gmra.mxu0 %v1595
      %v1597 = vpop.f32.mrf.mxu0
      %v1598 = vadd.f32 0.0, %v1597
      %v1599 = vand.u32 %v683, 4294901760
      %v1600 = vsub.f32 %v683, %v1599
      %v1601 = vand.u32 %v1600, 4294901760
      %v1602 = vsub.f32 %v1600, %v1601
      %v1603 = vand.u32 %v1602, 4294901760
      %1604 = vmatmul.f32.gmra.mxu0 %v1603
      %v1605 = vpop.f32.mrf.mxu0
      %v1606 = vadd.f32 0.0, %v1605
      %v1607 = vand.u32 %v684, 4294901760
      %v1608 = vsub.f32 %v684, %v1607
      %v1609 = vand.u32 %v1608, 4294901760
      %v1610 = vsub.f32 %v1608, %v1609
      %v1611 = vand.u32 %v1610, 4294901760
      %1612 = vmatmul.f32.gmra.mxu0 %v1611
      %v1613 = vpop.f32.mrf.mxu0
      %v1614 = vadd.f32 0.0, %v1613
      %v1615 = vand.u32 %v685, 4294901760
      %v1616 = vsub.f32 %v685, %v1615
      %v1617 = vand.u32 %v1616, 4294901760
      %v1618 = vsub.f32 %v1616, %v1617
      %v1619 = vand.u32 %v1618, 4294901760
      %1620 = vmatmul.f32.gmra.mxu0 %v1619
      %v1621 = vpop.f32.mrf.mxu0
      %v1622 = vadd.f32 0.0, %v1621
      %v1623 = vand.u32 %v686, 4294901760
      %v1624 = vsub.f32 %v686, %v1623
      %v1625 = vand.u32 %v1624, 4294901760
      %v1626 = vsub.f32 %v1624, %v1625
      %v1627 = vand.u32 %v1626, 4294901760
      %1628 = vmatmul.f32.gmra.mxu0 %v1627
      %v1629 = vpop.f32.mrf.mxu0
      %v1630 = vadd.f32 0.0, %v1629
      %v1631 = vand.u32 %v687, 4294901760
      %v1632 = vsub.f32 %v687, %v1631
      %v1633 = vand.u32 %v1632, 4294901760
      %v1634 = vsub.f32 %v1632, %v1633
      %v1635 = vand.u32 %v1634, 4294901760
      %1636 = vmatmul.f32.gmra.mxu0 %v1635
      %v1637 = vpop.f32.mrf.mxu0
      %v1638 = vadd.f32 0.0, %v1637
      %v1639 = vand.u32 %v688, 4294901760
      %v1640 = vsub.f32 %v688, %v1639
      %v1641 = vand.u32 %v1640, 4294901760
      %v1642 = vsub.f32 %v1640, %v1641
      %v1643 = vand.u32 %v1642, 4294901760
      %1644 = vmatmul.f32.gmra.mxu0 %v1643
      %v1645 = vpop.f32.mrf.mxu0
      %v1646 = vadd.f32 0.0, %v1645
      %v1647 = vand.u32 %v689, 4294901760
      %v1648 = vsub.f32 %v689, %v1647
      %v1649 = vand.u32 %v1648, 4294901760
      %v1650 = vsub.f32 %v1648, %v1649
      %v1651 = vand.u32 %v1650, 4294901760
      %1652 = vmatmul.f32.gmra.mxu0 %v1651
      %v1653 = vpop.f32.mrf.mxu0
      %v1654 = vadd.f32 0.0, %v1653
      %v1655 = vand.u32 %v690, 4294901760
      %v1656 = vsub.f32 %v690, %v1655
      %v1657 = vand.u32 %v1656, 4294901760
      %v1658 = vsub.f32 %v1656, %v1657
      %v1659 = vand.u32 %v1658, 4294901760
      %1660 = vmatmul.f32.gmra.mxu0 %v1659
      %v1661 = vpop.f32.mrf.mxu0
      %v1662 = vadd.f32 0.0, %v1661
      %v1663 = vand.u32 %v691, 4294901760
      %v1664 = vsub.f32 %v691, %v1663
      %v1665 = vand.u32 %v1664, 4294901760
      %v1666 = vsub.f32 %v1664, %v1665
      %v1667 = vand.u32 %v1666, 4294901760
      %1668 = vmatmul.f32.gmra.mxu0 %v1667
      %v1669 = vpop.f32.mrf.mxu0
      %v1670 = vadd.f32 0.0, %v1669
      %v1671 = vand.u32 %v692, 4294901760
      %v1672 = vsub.f32 %v692, %v1671
      %v1673 = vand.u32 %v1672, 4294901760
      %v1674 = vsub.f32 %v1672, %v1673
      %v1675 = vand.u32 %v1674, 4294901760
      %1676 = vmatmul.f32.gmra.mxu0 %v1675
      %v1677 = vpop.f32.mrf.mxu0
      %v1678 = vadd.f32 0.0, %v1677
      %1679 = vdwg.mxu0
      %v1680 = vand.u32 %v832, 4294901760
      %v1681 = vsub.f32 %v832, %v1680
      %v1682 = vand.u32 %v1681, 4294901760
      %v1683 = vsub.f32 %v1681, %v1682
      %v1684 = vand.u32 %v1683, 4294901760
      %1685 = vmatpush.msra.mxu0 %v1684
      %v1686 = vand.u32 %v831, 4294901760
      %v1687 = vsub.f32 %v831, %v1686
      %v1688 = vand.u32 %v1687, 4294901760
      %v1689 = vsub.f32 %v1687, %v1688
      %v1690 = vand.u32 %v1689, 4294901760
      %1691 = vmatpush.msra.mxu0 %v1690
      %v1692 = vand.u32 %v830, 4294901760
      %v1693 = vsub.f32 %v830, %v1692
      %v1694 = vand.u32 %v1693, 4294901760
      %v1695 = vsub.f32 %v1693, %v1694
      %v1696 = vand.u32 %v1695, 4294901760
      %1697 = vmatpush.msra.mxu0 %v1696
      %v1698 = vand.u32 %v829, 4294901760
      %v1699 = vsub.f32 %v829, %v1698
      %v1700 = vand.u32 %v1699, 4294901760
      %v1701 = vsub.f32 %v1699, %v1700
      %v1702 = vand.u32 %v1701, 4294901760
      %1703 = vmatpush.msra.mxu0 %v1702
      %v1704 = vand.u32 %v828, 4294901760
      %v1705 = vsub.f32 %v828, %v1704
      %v1706 = vand.u32 %v1705, 4294901760
      %v1707 = vsub.f32 %v1705, %v1706
      %v1708 = vand.u32 %v1707, 4294901760
      %1709 = vmatpush.msra.mxu0 %v1708
      %v1710 = vand.u32 %v827, 4294901760
      %v1711 = vsub.f32 %v827, %v1710
      %v1712 = vand.u32 %v1711, 4294901760
      %v1713 = vsub.f32 %v1711, %v1712
      %v1714 = vand.u32 %v1713, 4294901760
      %1715 = vmatpush.msra.mxu0 %v1714
      %v1716 = vand.u32 %v826, 4294901760
      %v1717 = vsub.f32 %v826, %v1716
      %v1718 = vand.u32 %v1717, 4294901760
      %v1719 = vsub.f32 %v1717, %v1718
      %v1720 = vand.u32 %v1719, 4294901760
      %1721 = vmatpush.msra.mxu0 %v1720
      %v1722 = vand.u32 %v825, 4294901760
      %v1723 = vsub.f32 %v825, %v1722
      %v1724 = vand.u32 %v1723, 4294901760
      %v1725 = vsub.f32 %v1723, %v1724
      %v1726 = vand.u32 %v1725, 4294901760
      %1727 = vmatpush.msra.mxu0 %v1726
      %v1728 = vand.u32 %v824, 4294901760
      %v1729 = vsub.f32 %v824, %v1728
      %v1730 = vand.u32 %v1729, 4294901760
      %v1731 = vsub.f32 %v1729, %v1730
      %v1732 = vand.u32 %v1731, 4294901760
      %1733 = vmatpush.msra.mxu0 %v1732
      %v1734 = vand.u32 %v823, 4294901760
      %v1735 = vsub.f32 %v823, %v1734
      %v1736 = vand.u32 %v1735, 4294901760
      %v1737 = vsub.f32 %v1735, %v1736
      %v1738 = vand.u32 %v1737, 4294901760
      %1739 = vmatpush.msra.mxu0 %v1738
      %v1740 = vand.u32 %v822, 4294901760
      %v1741 = vsub.f32 %v822, %v1740
      %v1742 = vand.u32 %v1741, 4294901760
      %v1743 = vsub.f32 %v1741, %v1742
      %v1744 = vand.u32 %v1743, 4294901760
      %1745 = vmatpush.msra.mxu0 %v1744
      %v1746 = vand.u32 %v821, 4294901760
      %v1747 = vsub.f32 %v821, %v1746
      %v1748 = vand.u32 %v1747, 4294901760
      %v1749 = vsub.f32 %v1747, %v1748
      %v1750 = vand.u32 %v1749, 4294901760
      %1751 = vmatpush.msra.mxu0 %v1750
      %v1752 = vand.u32 %v820, 4294901760
      %v1753 = vsub.f32 %v820, %v1752
      %v1754 = vand.u32 %v1753, 4294901760
      %v1755 = vsub.f32 %v1753, %v1754
      %v1756 = vand.u32 %v1755, 4294901760
      %1757 = vmatpush.msra.mxu0 %v1756
      %v1758 = vand.u32 %v819, 4294901760
      %v1759 = vsub.f32 %v819, %v1758
      %v1760 = vand.u32 %v1759, 4294901760
      %v1761 = vsub.f32 %v1759, %v1760
      %v1762 = vand.u32 %v1761, 4294901760
      %1763 = vmatpush.msra.mxu0 %v1762
      %v1764 = vand.u32 %v818, 4294901760
      %v1765 = vsub.f32 %v818, %v1764
      %v1766 = vand.u32 %v1765, 4294901760
      %v1767 = vsub.f32 %v1765, %v1766
      %v1768 = vand.u32 %v1767, 4294901760
      %1769 = vmatpush.msra.mxu0 %v1768
      %v1770 = vand.u32 %v817, 4294901760
      %v1771 = vsub.f32 %v817, %v1770
      %v1772 = vand.u32 %v1771, 4294901760
      %v1773 = vsub.f32 %v1771, %v1772
      %v1774 = vand.u32 %v1773, 4294901760
      %1775 = vmatpush.msra.mxu0 %v1774
      %v1776 = vand.u32 %v681, 4294901760
      %1777 = vmatmul.f32.gmra.mxu0 %v1776
      %v1778 = vpop.f32.mrf.mxu0
      %v1779 = vadd.f32 %v1590, %v1778
      %v1780 = vand.u32 %v682, 4294901760
      %1781 = vmatmul.f32.gmra.mxu0 %v1780
      %v1782 = vpop.f32.mrf.mxu0
      %v1783 = vadd.f32 %v1598, %v1782
      %v1784 = vand.u32 %v683, 4294901760
      %1785 = vmatmul.f32.gmra.mxu0 %v1784
      %v1786 = vpop.f32.mrf.mxu0
      %v1787 = vadd.f32 %v1606, %v1786
      %v1788 = vand.u32 %v684, 4294901760
      %1789 = vmatmul.f32.gmra.mxu0 %v1788
      %v1790 = vpop.f32.mrf.mxu0
      %v1791 = vadd.f32 %v1614, %v1790
      %v1792 = vand.u32 %v685, 4294901760
      %1793 = vmatmul.f32.gmra.mxu0 %v1792
      %v1794 = vpop.f32.mrf.mxu0
      %v1795 = vadd.f32 %v1622, %v1794
      %v1796 = vand.u32 %v686, 4294901760
      %1797 = vmatmul.f32.gmra.mxu0 %v1796
      %v1798 = vpop.f32.mrf.mxu0
      %v1799 = vadd.f32 %v1630, %v1798
      %v1800 = vand.u32 %v687, 4294901760
      %1801 = vmatmul.f32.gmra.mxu0 %v1800
      %v1802 = vpop.f32.mrf.mxu0
      %v1803 = vadd.f32 %v1638, %v1802
      %v1804 = vand.u32 %v688, 4294901760
      %1805 = vmatmul.f32.gmra.mxu0 %v1804
      %v1806 = vpop.f32.mrf.mxu0
      %v1807 = vadd.f32 %v1646, %v1806
      %v1808 = vand.u32 %v689, 4294901760
      %1809 = vmatmul.f32.gmra.mxu0 %v1808
      %v1810 = vpop.f32.mrf.mxu0
      %v1811 = vadd.f32 %v1654, %v1810
      %v1812 = vand.u32 %v690, 4294901760
      %1813 = vmatmul.f32.gmra.mxu0 %v1812
      %v1814 = vpop.f32.mrf.mxu0
      %v1815 = vadd.f32 %v1662, %v1814
      %v1816 = vand.u32 %v691, 4294901760
      %1817 = vmatmul.f32.gmra.mxu0 %v1816
      %v1818 = vpop.f32.mrf.mxu0
      %v1819 = vadd.f32 %v1670, %v1818
      %v1820 = vand.u32 %v692, 4294901760
      %1821 = vmatmul.f32.gmra.mxu0 %v1820
      %v1822 = vpop.f32.mrf.mxu0
      %v1823 = vadd.f32 %v1678, %v1822
      %1824 = vdwg.mxu0
      %v1825 = vand.u32 %v832, 4294901760
      %v1826 = vsub.f32 %v832, %v1825
      %1827 = vmatpush.msra.mxu0 %v1826
      %v1828 = vand.u32 %v831, 4294901760
      %v1829 = vsub.f32 %v831, %v1828
      %1830 = vmatpush.msra.mxu0 %v1829
      %v1831 = vand.u32 %v830, 4294901760
      %v1832 = vsub.f32 %v830, %v1831
      %1833 = vmatpush.msra.mxu0 %v1832
      %v1834 = vand.u32 %v829, 4294901760
      %v1835 = vsub.f32 %v829, %v1834
      %1836 = vmatpush.msra.mxu0 %v1835
      %v1837 = vand.u32 %v828, 4294901760
      %v1838 = vsub.f32 %v828, %v1837
      %1839 = vmatpush.msra.mxu0 %v1838
      %v1840 = vand.u32 %v827, 4294901760
      %v1841 = vsub.f32 %v827, %v1840
      %1842 = vmatpush.msra.mxu0 %v1841
      %v1843 = vand.u32 %v826, 4294901760
      %v1844 = vsub.f32 %v826, %v1843
      %1845 = vmatpush.msra.mxu0 %v1844
      %v1846 = vand.u32 %v825, 4294901760
      %v1847 = vsub.f32 %v825, %v1846
      %1848 = vmatpush.msra.mxu0 %v1847
      %v1849 = vand.u32 %v824, 4294901760
      %v1850 = vsub.f32 %v824, %v1849
      %1851 = vmatpush.msra.mxu0 %v1850
      %v1852 = vand.u32 %v823, 4294901760
      %v1853 = vsub.f32 %v823, %v1852
      %1854 = vmatpush.msra.mxu0 %v1853
      %v1855 = vand.u32 %v822, 4294901760
      %v1856 = vsub.f32 %v822, %v1855
      %1857 = vmatpush.msra.mxu0 %v1856
      %v1858 = vand.u32 %v821, 4294901760
      %v1859 = vsub.f32 %v821, %v1858
      %1860 = vmatpush.msra.mxu0 %v1859
      %v1861 = vand.u32 %v820, 4294901760
      %v1862 = vsub.f32 %v820, %v1861
      %1863 = vmatpush.msra.mxu0 %v1862
      %v1864 = vand.u32 %v819, 4294901760
      %v1865 = vsub.f32 %v819, %v1864
      %1866 = vmatpush.msra.mxu0 %v1865
      %v1867 = vand.u32 %v818, 4294901760
      %v1868 = vsub.f32 %v818, %v1867
      %1869 = vmatpush.msra.mxu0 %v1868
      %v1870 = vand.u32 %v817, 4294901760
      %v1871 = vsub.f32 %v817, %v1870
      %1872 = vmatpush.msra.mxu0 %v1871
      %v1873 = vand.u32 %v681, 4294901760
      %v1874 = vsub.f32 %v681, %v1873
      %1875 = vmatmul.f32.gmra.mxu0 %v1874
      %v1876 = vpop.f32.mrf.mxu0
      %v1877 = vadd.f32 %v1779, %v1876
      %v1878 = vand.u32 %v682, 4294901760
      %v1879 = vsub.f32 %v682, %v1878
      %1880 = vmatmul.f32.gmra.mxu0 %v1879
      %v1881 = vpop.f32.mrf.mxu0
      %v1882 = vadd.f32 %v1783, %v1881
      %v1883 = vand.u32 %v683, 4294901760
      %v1884 = vsub.f32 %v683, %v1883
      %1885 = vmatmul.f32.gmra.mxu0 %v1884
      %v1886 = vpop.f32.mrf.mxu0
      %v1887 = vadd.f32 %v1787, %v1886
      %v1888 = vand.u32 %v684, 4294901760
      %v1889 = vsub.f32 %v684, %v1888
      %1890 = vmatmul.f32.gmra.mxu0 %v1889
      %v1891 = vpop.f32.mrf.mxu0
      %v1892 = vadd.f32 %v1791, %v1891
      %v1893 = vand.u32 %v685, 4294901760
      %v1894 = vsub.f32 %v685, %v1893
      %1895 = vmatmul.f32.gmra.mxu0 %v1894
      %v1896 = vpop.f32.mrf.mxu0
      %v1897 = vadd.f32 %v1795, %v1896
      %v1898 = vand.u32 %v686, 4294901760
      %v1899 = vsub.f32 %v686, %v1898
      %1900 = vmatmul.f32.gmra.mxu0 %v1899
      %v1901 = vpop.f32.mrf.mxu0
      %v1902 = vadd.f32 %v1799, %v1901
      %v1903 = vand.u32 %v687, 4294901760
      %v1904 = vsub.f32 %v687, %v1903
      %1905 = vmatmul.f32.gmra.mxu0 %v1904
      %v1906 = vpop.f32.mrf.mxu0
      %v1907 = vadd.f32 %v1803, %v1906
      %v1908 = vand.u32 %v688, 4294901760
      %v1909 = vsub.f32 %v688, %v1908
      %1910 = vmatmul.f32.gmra.mxu0 %v1909
      %v1911 = vpop.f32.mrf.mxu0
      %v1912 = vadd.f32 %v1807, %v1911
      %v1913 = vand.u32 %v689, 4294901760
      %v1914 = vsub.f32 %v689, %v1913
      %1915 = vmatmul.f32.gmra.mxu0 %v1914
      %v1916 = vpop.f32.mrf.mxu0
      %v1917 = vadd.f32 %v1811, %v1916
      %v1918 = vand.u32 %v690, 4294901760
      %v1919 = vsub.f32 %v690, %v1918
      %1920 = vmatmul.f32.gmra.mxu0 %v1919
      %v1921 = vpop.f32.mrf.mxu0
      %v1922 = vadd.f32 %v1815, %v1921
      %v1923 = vand.u32 %v691, 4294901760
      %v1924 = vsub.f32 %v691, %v1923
      %1925 = vmatmul.f32.gmra.mxu0 %v1924
      %v1926 = vpop.f32.mrf.mxu0
      %v1927 = vadd.f32 %v1819, %v1926
      %v1928 = vand.u32 %v692, 4294901760
      %v1929 = vsub.f32 %v692, %v1928
      %1930 = vmatmul.f32.gmra.mxu0 %v1929
      %v1931 = vpop.f32.mrf.mxu0
      %v1932 = vadd.f32 %v1823, %v1931
      %1933 = vdwg.mxu0
      %v1934 = vand.u32 %v832, 4294901760
      %1935 = vmatpush.msra.mxu0 %v1934
      %v1936 = vand.u32 %v831, 4294901760
      %1937 = vmatpush.msra.mxu0 %v1936
      %v1938 = vand.u32 %v830, 4294901760
      %1939 = vmatpush.msra.mxu0 %v1938
      %v1940 = vand.u32 %v829, 4294901760
      %1941 = vmatpush.msra.mxu0 %v1940
      %v1942 = vand.u32 %v828, 4294901760
      %1943 = vmatpush.msra.mxu0 %v1942
      %v1944 = vand.u32 %v827, 4294901760
      %1945 = vmatpush.msra.mxu0 %v1944
      %v1946 = vand.u32 %v826, 4294901760
      %1947 = vmatpush.msra.mxu0 %v1946
      %v1948 = vand.u32 %v825, 4294901760
      %1949 = vmatpush.msra.mxu0 %v1948
      %v1950 = vand.u32 %v824, 4294901760
      %1951 = vmatpush.msra.mxu0 %v1950
      %v1952 = vand.u32 %v823, 4294901760
      %1953 = vmatpush.msra.mxu0 %v1952
      %v1954 = vand.u32 %v822, 4294901760
      %1955 = vmatpush.msra.mxu0 %v1954
      %v1956 = vand.u32 %v821, 4294901760
      %1957 = vmatpush.msra.mxu0 %v1956
      %v1958 = vand.u32 %v820, 4294901760
      %1959 = vmatpush.msra.mxu0 %v1958
      %v1960 = vand.u32 %v819, 4294901760
      %1961 = vmatpush.msra.mxu0 %v1960
      %v1962 = vand.u32 %v818, 4294901760
      %1963 = vmatpush.msra.mxu0 %v1962
      %v1964 = vand.u32 %v817, 4294901760
      %1965 = vmatpush.msra.mxu0 %v1964
      %v1966 = vand.u32 %v681, 4294901760
      %v1967 = vsub.f32 %v681, %v1966
      %v1968 = vand.u32 %v1967, 4294901760
      %1969 = vmatmul.f32.gmra.mxu0 %v1968
      %v1970 = vpop.f32.mrf.mxu0
      %v1971 = vadd.f32 %v1877, %v1970
      %v1972 = vand.u32 %v682, 4294901760
      %v1973 = vsub.f32 %v682, %v1972
      %v1974 = vand.u32 %v1973, 4294901760
      %1975 = vmatmul.f32.gmra.mxu0 %v1974
      %v1976 = vpop.f32.mrf.mxu0
      %v1977 = vadd.f32 %v1882, %v1976
      %v1978 = vand.u32 %v683, 4294901760
      %v1979 = vsub.f32 %v683, %v1978
      %v1980 = vand.u32 %v1979, 4294901760
      %1981 = vmatmul.f32.gmra.mxu0 %v1980
      %v1982 = vpop.f32.mrf.mxu0
      %v1983 = vadd.f32 %v1887, %v1982
      %v1984 = vand.u32 %v684, 4294901760
      %v1985 = vsub.f32 %v684, %v1984
      %v1986 = vand.u32 %v1985, 4294901760
      %1987 = vmatmul.f32.gmra.mxu0 %v1986
      %v1988 = vpop.f32.mrf.mxu0
      %v1989 = vadd.f32 %v1892, %v1988
      %v1990 = vand.u32 %v685, 4294901760
      %v1991 = vsub.f32 %v685, %v1990
      %v1992 = vand.u32 %v1991, 4294901760
      %1993 = vmatmul.f32.gmra.mxu0 %v1992
      %v1994 = vpop.f32.mrf.mxu0
      %v1995 = vadd.f32 %v1897, %v1994
      %v1996 = vand.u32 %v686, 4294901760
      %v1997 = vsub.f32 %v686, %v1996
      %v1998 = vand.u32 %v1997, 4294901760
      %1999 = vmatmul.f32.gmra.mxu0 %v1998
      %v2000 = vpop.f32.mrf.mxu0
      %v2001 = vadd.f32 %v1902, %v2000
      %v2002 = vand.u32 %v687, 4294901760
      %v2003 = vsub.f32 %v687, %v2002
      %v2004 = vand.u32 %v2003, 4294901760
      %2005 = vmatmul.f32.gmra.mxu0 %v2004
      %v2006 = vpop.f32.mrf.mxu0
      %v2007 = vadd.f32 %v1907, %v2006
      %v2008 = vand.u32 %v688, 4294901760
      %v2009 = vsub.f32 %v688, %v2008
      %v2010 = vand.u32 %v2009, 4294901760
      %2011 = vmatmul.f32.gmra.mxu0 %v2010
      %v2012 = vpop.f32.mrf.mxu0
      %v2013 = vadd.f32 %v1912, %v2012
      %v2014 = vand.u32 %v689, 4294901760
      %v2015 = vsub.f32 %v689, %v2014
      %v2016 = vand.u32 %v2015, 4294901760
      %2017 = vmatmul.f32.gmra.mxu0 %v2016
      %v2018 = vpop.f32.mrf.mxu0
      %v2019 = vadd.f32 %v1917, %v2018
      %v2020 = vand.u32 %v690, 4294901760
      %v2021 = vsub.f32 %v690, %v2020
      %v2022 = vand.u32 %v2021, 4294901760
      %2023 = vmatmul.f32.gmra.mxu0 %v2022
      %v2024 = vpop.f32.mrf.mxu0
      %v2025 = vadd.f32 %v1922, %v2024
      %v2026 = vand.u32 %v691, 4294901760
      %v2027 = vsub.f32 %v691, %v2026
      %v2028 = vand.u32 %v2027, 4294901760
      %2029 = vmatmul.f32.gmra.mxu0 %v2028
      %v2030 = vpop.f32.mrf.mxu0
      %v2031 = vadd.f32 %v1927, %v2030
      %v2032 = vand.u32 %v692, 4294901760
      %v2033 = vsub.f32 %v692, %v2032
      %v2034 = vand.u32 %v2033, 4294901760
      %2035 = vmatmul.f32.gmra.mxu0 %v2034
      %v2036 = vpop.f32.mrf.mxu0
      %v2037 = vadd.f32 %v1932, %v2036
      %2038 = vdwg.mxu0
      %v2039 = vand.u32 %v832, 4294901760
      %v2040 = vsub.f32 %v832, %v2039
      %v2041 = vand.u32 %v2040, 4294901760
      %2042 = vmatpush.msra.mxu0 %v2041
      %v2043 = vand.u32 %v831, 4294901760
      %v2044 = vsub.f32 %v831, %v2043
      %v2045 = vand.u32 %v2044, 4294901760
      %2046 = vmatpush.msra.mxu0 %v2045
      %v2047 = vand.u32 %v830, 4294901760
      %v2048 = vsub.f32 %v830, %v2047
      %v2049 = vand.u32 %v2048, 4294901760
      %2050 = vmatpush.msra.mxu0 %v2049
      %v2051 = vand.u32 %v829, 4294901760
      %v2052 = vsub.f32 %v829, %v2051
      %v2053 = vand.u32 %v2052, 4294901760
      %2054 = vmatpush.msra.mxu0 %v2053
      %v2055 = vand.u32 %v828, 4294901760
      %v2056 = vsub.f32 %v828, %v2055
      %v2057 = vand.u32 %v2056, 4294901760
      %2058 = vmatpush.msra.mxu0 %v2057
      %v2059 = vand.u32 %v827, 4294901760
      %v2060 = vsub.f32 %v827, %v2059
      %v2061 = vand.u32 %v2060, 4294901760
      %2062 = vmatpush.msra.mxu0 %v2061
      %v2063 = vand.u32 %v826, 4294901760
      %v2064 = vsub.f32 %v826, %v2063
      %v2065 = vand.u32 %v2064, 4294901760
      %2066 = vmatpush.msra.mxu0 %v2065
      %v2067 = vand.u32 %v825, 4294901760
      %v2068 = vsub.f32 %v825, %v2067
      %v2069 = vand.u32 %v2068, 4294901760
      %2070 = vmatpush.msra.mxu0 %v2069
      %v2071 = vand.u32 %v824, 4294901760
      %v2072 = vsub.f32 %v824, %v2071
      %v2073 = vand.u32 %v2072, 4294901760
      %2074 = vmatpush.msra.mxu0 %v2073
      %v2075 = vand.u32 %v823, 4294901760
      %v2076 = vsub.f32 %v823, %v2075
      %v2077 = vand.u32 %v2076, 4294901760
      %2078 = vmatpush.msra.mxu0 %v2077
      %v2079 = vand.u32 %v822, 4294901760
      %v2080 = vsub.f32 %v822, %v2079
      %v2081 = vand.u32 %v2080, 4294901760
      %2082 = vmatpush.msra.mxu0 %v2081
      %v2083 = vand.u32 %v821, 4294901760
      %v2084 = vsub.f32 %v821, %v2083
      %v2085 = vand.u32 %v2084, 4294901760
      %2086 = vmatpush.msra.mxu0 %v2085
      %v2087 = vand.u32 %v820, 4294901760
      %v2088 = vsub.f32 %v820, %v2087
      %v2089 = vand.u32 %v2088, 4294901760
      %2090 = vmatpush.msra.mxu0 %v2089
      %v2091 = vand.u32 %v819, 4294901760
      %v2092 = vsub.f32 %v819, %v2091
      %v2093 = vand.u32 %v2092, 4294901760
      %2094 = vmatpush.msra.mxu0 %v2093
      %v2095 = vand.u32 %v818, 4294901760
      %v2096 = vsub.f32 %v818, %v2095
      %v2097 = vand.u32 %v2096, 4294901760
      %2098 = vmatpush.msra.mxu0 %v2097
      %v2099 = vand.u32 %v817, 4294901760
      %v2100 = vsub.f32 %v817, %v2099
      %v2101 = vand.u32 %v2100, 4294901760
      %2102 = vmatpush.msra.mxu0 %v2101
      %v2103 = vand.u32 %v681, 4294901760
      %2104 = vmatmul.f32.gmra.mxu0 %v2103
      %v2105 = vpop.f32.mrf.mxu0
      %v2106 = vadd.f32 %v1971, %v2105
      %v2107 = vand.u32 %v682, 4294901760
      %2108 = vmatmul.f32.gmra.mxu0 %v2107
      %v2109 = vpop.f32.mrf.mxu0
      %v2110 = vadd.f32 %v1977, %v2109
      %v2111 = vand.u32 %v683, 4294901760
      %2112 = vmatmul.f32.gmra.mxu0 %v2111
      %v2113 = vpop.f32.mrf.mxu0
      %v2114 = vadd.f32 %v1983, %v2113
      %v2115 = vand.u32 %v684, 4294901760
      %2116 = vmatmul.f32.gmra.mxu0 %v2115
      %v2117 = vpop.f32.mrf.mxu0
      %v2118 = vadd.f32 %v1989, %v2117
      %v2119 = vand.u32 %v685, 4294901760
      %2120 = vmatmul.f32.gmra.mxu0 %v2119
      %v2121 = vpop.f32.mrf.mxu0
      %v2122 = vadd.f32 %v1995, %v2121
      %v2123 = vand.u32 %v686, 4294901760
      %2124 = vmatmul.f32.gmra.mxu0 %v2123
      %v2125 = vpop.f32.mrf.mxu0
      %v2126 = vadd.f32 %v2001, %v2125
      %v2127 = vand.u32 %v687, 4294901760
      %2128 = vmatmul.f32.gmra.mxu0 %v2127
      %v2129 = vpop.f32.mrf.mxu0
      %v2130 = vadd.f32 %v2007, %v2129
      %v2131 = vand.u32 %v688, 4294901760
      %2132 = vmatmul.f32.gmra.mxu0 %v2131
      %v2133 = vpop.f32.mrf.mxu0
      %v2134 = vadd.f32 %v2013, %v2133
      %v2135 = vand.u32 %v689, 4294901760
      %2136 = vmatmul.f32.gmra.mxu0 %v2135
      %v2137 = vpop.f32.mrf.mxu0
      %v2138 = vadd.f32 %v2019, %v2137
      %v2139 = vand.u32 %v690, 4294901760
      %2140 = vmatmul.f32.gmra.mxu0 %v2139
      %v2141 = vpop.f32.mrf.mxu0
      %v2142 = vadd.f32 %v2025, %v2141
      %v2143 = vand.u32 %v691, 4294901760
      %2144 = vmatmul.f32.gmra.mxu0 %v2143
      %v2145 = vpop.f32.mrf.mxu0
      %v2146 = vadd.f32 %v2031, %v2145
      %v2147 = vand.u32 %v692, 4294901760
      %2148 = vmatmul.f32.gmra.mxu0 %v2147
      %v2149 = vpop.f32.mrf.mxu0
      %v2150 = vadd.f32 %v2037, %v2149
      %2151 = vdwg.mxu0
      %v2152 = vand.u32 %v832, 4294901760
      %2153 = vmatpush.msra.mxu0 %v2152
      %v2154 = vand.u32 %v831, 4294901760
      %2155 = vmatpush.msra.mxu0 %v2154
      %v2156 = vand.u32 %v830, 4294901760
      %2157 = vmatpush.msra.mxu0 %v2156
      %v2158 = vand.u32 %v829, 4294901760
      %2159 = vmatpush.msra.mxu0 %v2158
      %v2160 = vand.u32 %v828, 4294901760
      %2161 = vmatpush.msra.mxu0 %v2160
      %v2162 = vand.u32 %v827, 4294901760
      %2163 = vmatpush.msra.mxu0 %v2162
      %v2164 = vand.u32 %v826, 4294901760
      %2165 = vmatpush.msra.mxu0 %v2164
      %v2166 = vand.u32 %v825, 4294901760
      %2167 = vmatpush.msra.mxu0 %v2166
      %v2168 = vand.u32 %v824, 4294901760
      %2169 = vmatpush.msra.mxu0 %v2168
      %v2170 = vand.u32 %v823, 4294901760
      %2171 = vmatpush.msra.mxu0 %v2170
      %v2172 = vand.u32 %v822, 4294901760
      %2173 = vmatpush.msra.mxu0 %v2172
      %v2174 = vand.u32 %v821, 4294901760
      %2175 = vmatpush.msra.mxu0 %v2174
      %v2176 = vand.u32 %v820, 4294901760
      %2177 = vmatpush.msra.mxu0 %v2176
      %v2178 = vand.u32 %v819, 4294901760
      %2179 = vmatpush.msra.mxu0 %v2178
      %v2180 = vand.u32 %v818, 4294901760
      %2181 = vmatpush.msra.mxu0 %v2180
      %v2182 = vand.u32 %v817, 4294901760
      %2183 = vmatpush.msra.mxu0 %v2182
      %v2184 = vand.u32 %v681, 4294901760
      %2185 = vmatmul.f32.gmra.mxu0 %v2184
      %v2186 = vpop.f32.mrf.mxu0
      %v2187 = vadd.f32 %v2106, %v2186
      %v2188 = vand.u32 %v682, 4294901760
      %2189 = vmatmul.f32.gmra.mxu0 %v2188
      %v2190 = vpop.f32.mrf.mxu0
      %v2191 = vadd.f32 %v2110, %v2190
      %v2192 = vand.u32 %v683, 4294901760
      %2193 = vmatmul.f32.gmra.mxu0 %v2192
      %v2194 = vpop.f32.mrf.mxu0
      %v2195 = vadd.f32 %v2114, %v2194
      %v2196 = vand.u32 %v684, 4294901760
      %2197 = vmatmul.f32.gmra.mxu0 %v2196
      %v2198 = vpop.f32.mrf.mxu0
      %v2199 = vadd.f32 %v2118, %v2198
      %v2200 = vand.u32 %v685, 4294901760
      %2201 = vmatmul.f32.gmra.mxu0 %v2200
      %v2202 = vpop.f32.mrf.mxu0
      %v2203 = vadd.f32 %v2122, %v2202
      %v2204 = vand.u32 %v686, 4294901760
      %2205 = vmatmul.f32.gmra.mxu0 %v2204
      %v2206 = vpop.f32.mrf.mxu0
      %v2207 = vadd.f32 %v2126, %v2206
      %v2208 = vand.u32 %v687, 4294901760
      %2209 = vmatmul.f32.gmra.mxu0 %v2208
      %v2210 = vpop.f32.mrf.mxu0
      %v2211 = vadd.f32 %v2130, %v2210
      %v2212 = vand.u32 %v688, 4294901760
      %2213 = vmatmul.f32.gmra.mxu0 %v2212
      %v2214 = vpop.f32.mrf.mxu0
      %v2215 = vadd.f32 %v2134, %v2214
      %v2216 = vand.u32 %v689, 4294901760
      %2217 = vmatmul.f32.gmra.mxu0 %v2216
      %v2218 = vpop.f32.mrf.mxu0
      %v2219 = vadd.f32 %v2138, %v2218
      %v2220 = vand.u32 %v690, 4294901760
      %2221 = vmatmul.f32.gmra.mxu0 %v2220
      %v2222 = vpop.f32.mrf.mxu0
      %v2223 = vadd.f32 %v2142, %v2222
      %v2224 = vand.u32 %v691, 4294901760
      %2225 = vmatmul.f32.gmra.mxu0 %v2224
      %v2226 = vpop.f32.mrf.mxu0
      %v2227 = vadd.f32 %v2146, %v2226
      %v2228 = vand.u32 %v692, 4294901760
      %2229 = vmatmul.f32.gmra.mxu0 %v2228
      %v2230 = vpop.f32.mrf.mxu0
      %v2231 = vadd.f32 %v2150, %v2230
      %2232 = vdwg.mxu0
      %s2233 = scalar_lea.vmem %s259, 96
      %v2234 = vld [vmem:[%s2233] sm:$0xff]
      %v2235 = vld [vmem:[%s2233 + $0x8] sm:$0xff]
      %v2236 = vld [vmem:[%s2233 + $0x10] sm:$0xff]
      %v2237 = vld [vmem:[%s2233 + $0x18] sm:$0xff]
      %v2238 = vld [vmem:[%s2233 + $0x20] sm:$0xff]
      %v2239 = vld [vmem:[%s2233 + $0x28] sm:$0xff]
      %v2240 = vld [vmem:[%s2233 + $0x30] sm:$0xff]
      %v2241 = vld [vmem:[%s2233 + $0x38] sm:$0xff]
      %v2242 = vld [vmem:[%s2233 + $0x40] sm:$0xff]
      %v2243 = vld [vmem:[%s2233 + $0x48] sm:$0xff]
      %v2244 = vld [vmem:[%s2233 + $0x50] sm:$0xff]
      %v2245 = vld [vmem:[%s2233 + $0x58] sm:$0xff]
      %v2246 = vadd.f32 %v2234, %v2187
      %v2247 = vadd.f32 %v2235, %v2191
      %v2248 = vadd.f32 %v2236, %v2195
      %v2249 = vadd.f32 %v2237, %v2199
      %v2250 = vadd.f32 %v2238, %v2203
      %v2251 = vadd.f32 %v2239, %v2207
      %v2252 = vadd.f32 %v2240, %v2211
      %v2253 = vadd.f32 %v2241, %v2215
      %v2254 = vadd.f32 %v2242, %v2219
      %v2255 = vadd.f32 %v2243, %v2223
      %v2256 = vadd.f32 %v2244, %v2227
      %v2257 = vadd.f32 %v2245, %v2231
      %2258 = vst [vmem:[%s2233] sm:$0xff] %v2246
      %2259 = vst [vmem:[%s2233 + $0x8] sm:$0xff] %v2247
      %2260 = vst [vmem:[%s2233 + $0x10] sm:$0xff] %v2248
      %2261 = vst [vmem:[%s2233 + $0x18] sm:$0xff] %v2249
      %2262 = vst [vmem:[%s2233 + $0x20] sm:$0xff] %v2250
      %2263 = vst [vmem:[%s2233 + $0x28] sm:$0xff] %v2251
      %2264 = vst [vmem:[%s2233 + $0x30] sm:$0xff] %v2252
      %2265 = vst [vmem:[%s2233 + $0x38] sm:$0xff] %v2253
      %2266 = vst [vmem:[%s2233 + $0x40] sm:$0xff] %v2254
      %2267 = vst [vmem:[%s2233 + $0x48] sm:$0xff] %v2255
      %2268 = vst [vmem:[%s2233 + $0x50] sm:$0xff] %v2256
      %2269 = vst [vmem:[%s2233 + $0x58] sm:$0xff] %v2257
      %v2270 = vand.u32 %v832, 4294901760
      %2271 = vmatpush.msra.mxu0 %v2270
      %v2272 = vand.u32 %v831, 4294901760
      %2273 = vmatpush.msra.mxu0 %v2272
      %v2274 = vand.u32 %v830, 4294901760
      %2275 = vmatpush.msra.mxu0 %v2274
      %v2276 = vand.u32 %v829, 4294901760
      %2277 = vmatpush.msra.mxu0 %v2276
      %v2278 = vand.u32 %v828, 4294901760
      %2279 = vmatpush.msra.mxu0 %v2278
      %v2280 = vand.u32 %v827, 4294901760
      %2281 = vmatpush.msra.mxu0 %v2280
      %v2282 = vand.u32 %v826, 4294901760
      %2283 = vmatpush.msra.mxu0 %v2282
      %v2284 = vand.u32 %v825, 4294901760
      %2285 = vmatpush.msra.mxu0 %v2284
      %v2286 = vand.u32 %v824, 4294901760
      %2287 = vmatpush.msra.mxu0 %v2286
      %v2288 = vand.u32 %v823, 4294901760
      %2289 = vmatpush.msra.mxu0 %v2288
      %v2290 = vand.u32 %v822, 4294901760
      %2291 = vmatpush.msra.mxu0 %v2290
      %v2292 = vand.u32 %v821, 4294901760
      %2293 = vmatpush.msra.mxu0 %v2292
      %v2294 = vand.u32 %v820, 4294901760
      %2295 = vmatpush.msra.mxu0 %v2294
      %v2296 = vand.u32 %v819, 4294901760
      %2297 = vmatpush.msra.mxu0 %v2296
      %v2298 = vand.u32 %v818, 4294901760
      %2299 = vmatpush.msra.mxu0 %v2298
      %v2300 = vand.u32 %v817, 4294901760
      %2301 = vmatpush.msra.mxu0 %v2300
      %v2302 = vand.u32 %v407, 4294901760
      %v2303 = vsub.f32 %v407, %v2302
      %v2304 = vand.u32 %v2303, 4294901760
      %v2305 = vsub.f32 %v2303, %v2304
      %v2306 = vand.u32 %v2305, 4294901760
      %2307 = vmatmul.f32.gmra.mxu0 %v2306
      %v2308 = vpop.f32.mrf.mxu0
      %v2309 = vadd.f32 0.0, %v2308
      %v2310 = vand.u32 %v422, 4294901760
      %v2311 = vsub.f32 %v422, %v2310
      %v2312 = vand.u32 %v2311, 4294901760
      %v2313 = vsub.f32 %v2311, %v2312
      %v2314 = vand.u32 %v2313, 4294901760
      %2315 = vmatmul.f32.gmra.mxu0 %v2314
      %v2316 = vpop.f32.mrf.mxu0
      %v2317 = vadd.f32 0.0, %v2316
      %v2318 = vand.u32 %v437, 4294901760
      %v2319 = vsub.f32 %v437, %v2318
      %v2320 = vand.u32 %v2319, 4294901760
      %v2321 = vsub.f32 %v2319, %v2320
      %v2322 = vand.u32 %v2321, 4294901760
      %2323 = vmatmul.f32.gmra.mxu0 %v2322
      %v2324 = vpop.f32.mrf.mxu0
      %v2325 = vadd.f32 0.0, %v2324
      %v2326 = vand.u32 %v452, 4294901760
      %v2327 = vsub.f32 %v452, %v2326
      %v2328 = vand.u32 %v2327, 4294901760
      %v2329 = vsub.f32 %v2327, %v2328
      %v2330 = vand.u32 %v2329, 4294901760
      %2331 = vmatmul.f32.gmra.mxu0 %v2330
      %v2332 = vpop.f32.mrf.mxu0
      %v2333 = vadd.f32 0.0, %v2332
      %v2334 = vand.u32 %v467, 4294901760
      %v2335 = vsub.f32 %v467, %v2334
      %v2336 = vand.u32 %v2335, 4294901760
      %v2337 = vsub.f32 %v2335, %v2336
      %v2338 = vand.u32 %v2337, 4294901760
      %2339 = vmatmul.f32.gmra.mxu0 %v2338
      %v2340 = vpop.f32.mrf.mxu0
      %v2341 = vadd.f32 0.0, %v2340
      %v2342 = vand.u32 %v482, 4294901760
      %v2343 = vsub.f32 %v482, %v2342
      %v2344 = vand.u32 %v2343, 4294901760
      %v2345 = vsub.f32 %v2343, %v2344
      %v2346 = vand.u32 %v2345, 4294901760
      %2347 = vmatmul.f32.gmra.mxu0 %v2346
      %v2348 = vpop.f32.mrf.mxu0
      %v2349 = vadd.f32 0.0, %v2348
      %v2350 = vand.u32 %v497, 4294901760
      %v2351 = vsub.f32 %v497, %v2350
      %v2352 = vand.u32 %v2351, 4294901760
      %v2353 = vsub.f32 %v2351, %v2352
      %v2354 = vand.u32 %v2353, 4294901760
      %2355 = vmatmul.f32.gmra.mxu0 %v2354
      %v2356 = vpop.f32.mrf.mxu0
      %v2357 = vadd.f32 0.0, %v2356
      %v2358 = vand.u32 %v512, 4294901760
      %v2359 = vsub.f32 %v512, %v2358
      %v2360 = vand.u32 %v2359, 4294901760
      %v2361 = vsub.f32 %v2359, %v2360
      %v2362 = vand.u32 %v2361, 4294901760
      %2363 = vmatmul.f32.gmra.mxu0 %v2362
      %v2364 = vpop.f32.mrf.mxu0
      %v2365 = vadd.f32 0.0, %v2364
      %v2366 = vand.u32 %v527, 4294901760
      %v2367 = vsub.f32 %v527, %v2366
      %v2368 = vand.u32 %v2367, 4294901760
      %v2369 = vsub.f32 %v2367, %v2368
      %v2370 = vand.u32 %v2369, 4294901760
      %2371 = vmatmul.f32.gmra.mxu0 %v2370
      %v2372 = vpop.f32.mrf.mxu0
      %v2373 = vadd.f32 0.0, %v2372
      %v2374 = vand.u32 %v542, 4294901760
      %v2375 = vsub.f32 %v542, %v2374
      %v2376 = vand.u32 %v2375, 4294901760
      %v2377 = vsub.f32 %v2375, %v2376
      %v2378 = vand.u32 %v2377, 4294901760
      %2379 = vmatmul.f32.gmra.mxu0 %v2378
      %v2380 = vpop.f32.mrf.mxu0
      %v2381 = vadd.f32 0.0, %v2380
      %v2382 = vand.u32 %v557, 4294901760
      %v2383 = vsub.f32 %v557, %v2382
      %v2384 = vand.u32 %v2383, 4294901760
      %v2385 = vsub.f32 %v2383, %v2384
      %v2386 = vand.u32 %v2385, 4294901760
      %2387 = vmatmul.f32.gmra.mxu0 %v2386
      %v2388 = vpop.f32.mrf.mxu0
      %v2389 = vadd.f32 0.0, %v2388
      %v2390 = vand.u32 %v572, 4294901760
      %v2391 = vsub.f32 %v572, %v2390
      %v2392 = vand.u32 %v2391, 4294901760
      %v2393 = vsub.f32 %v2391, %v2392
      %v2394 = vand.u32 %v2393, 4294901760
      %2395 = vmatmul.f32.gmra.mxu0 %v2394
      %v2396 = vpop.f32.mrf.mxu0
      %v2397 = vadd.f32 0.0, %v2396
      %2398 = vdwg.mxu0
      %v2399 = vand.u32 %v832, 4294901760
      %v2400 = vsub.f32 %v832, %v2399
      %v2401 = vand.u32 %v2400, 4294901760
      %v2402 = vsub.f32 %v2400, %v2401
      %v2403 = vand.u32 %v2402, 4294901760
      %2404 = vmatpush.msra.mxu0 %v2403
      %v2405 = vand.u32 %v831, 4294901760
      %v2406 = vsub.f32 %v831, %v2405
      %v2407 = vand.u32 %v2406, 4294901760
      %v2408 = vsub.f32 %v2406, %v2407
      %v2409 = vand.u32 %v2408, 4294901760
      %2410 = vmatpush.msra.mxu0 %v2409
      %v2411 = vand.u32 %v830, 4294901760
      %v2412 = vsub.f32 %v830, %v2411
      %v2413 = vand.u32 %v2412, 4294901760
      %v2414 = vsub.f32 %v2412, %v2413
      %v2415 = vand.u32 %v2414, 4294901760
      %2416 = vmatpush.msra.mxu0 %v2415
      %v2417 = vand.u32 %v829, 4294901760
      %v2418 = vsub.f32 %v829, %v2417
      %v2419 = vand.u32 %v2418, 4294901760
      %v2420 = vsub.f32 %v2418, %v2419
      %v2421 = vand.u32 %v2420, 4294901760
      %2422 = vmatpush.msra.mxu0 %v2421
      %v2423 = vand.u32 %v828, 4294901760
      %v2424 = vsub.f32 %v828, %v2423
      %v2425 = vand.u32 %v2424, 4294901760
      %v2426 = vsub.f32 %v2424, %v2425
      %v2427 = vand.u32 %v2426, 4294901760
      %2428 = vmatpush.msra.mxu0 %v2427
      %v2429 = vand.u32 %v827, 4294901760
      %v2430 = vsub.f32 %v827, %v2429
      %v2431 = vand.u32 %v2430, 4294901760
      %v2432 = vsub.f32 %v2430, %v2431
      %v2433 = vand.u32 %v2432, 4294901760
      %2434 = vmatpush.msra.mxu0 %v2433
      %v2435 = vand.u32 %v826, 4294901760
      %v2436 = vsub.f32 %v826, %v2435
      %v2437 = vand.u32 %v2436, 4294901760
      %v2438 = vsub.f32 %v2436, %v2437
      %v2439 = vand.u32 %v2438, 4294901760
      %2440 = vmatpush.msra.mxu0 %v2439
      %v2441 = vand.u32 %v825, 4294901760
      %v2442 = vsub.f32 %v825, %v2441
      %v2443 = vand.u32 %v2442, 4294901760
      %v2444 = vsub.f32 %v2442, %v2443
      %v2445 = vand.u32 %v2444, 4294901760
      %2446 = vmatpush.msra.mxu0 %v2445
      %v2447 = vand.u32 %v824, 4294901760
      %v2448 = vsub.f32 %v824, %v2447
      %v2449 = vand.u32 %v2448, 4294901760
      %v2450 = vsub.f32 %v2448, %v2449
      %v2451 = vand.u32 %v2450, 4294901760
      %2452 = vmatpush.msra.mxu0 %v2451
      %v2453 = vand.u32 %v823, 4294901760
      %v2454 = vsub.f32 %v823, %v2453
      %v2455 = vand.u32 %v2454, 4294901760
      %v2456 = vsub.f32 %v2454, %v2455
      %v2457 = vand.u32 %v2456, 4294901760
      %2458 = vmatpush.msra.mxu0 %v2457
      %v2459 = vand.u32 %v822, 4294901760
      %v2460 = vsub.f32 %v822, %v2459
      %v2461 = vand.u32 %v2460, 4294901760
      %v2462 = vsub.f32 %v2460, %v2461
      %v2463 = vand.u32 %v2462, 4294901760
      %2464 = vmatpush.msra.mxu0 %v2463
      %v2465 = vand.u32 %v821, 4294901760
      %v2466 = vsub.f32 %v821, %v2465
      %v2467 = vand.u32 %v2466, 4294901760
      %v2468 = vsub.f32 %v2466, %v2467
      %v2469 = vand.u32 %v2468, 4294901760
      %2470 = vmatpush.msra.mxu0 %v2469
      %v2471 = vand.u32 %v820, 4294901760
      %v2472 = vsub.f32 %v820, %v2471
      %v2473 = vand.u32 %v2472, 4294901760
      %v2474 = vsub.f32 %v2472, %v2473
      %v2475 = vand.u32 %v2474, 4294901760
      %2476 = vmatpush.msra.mxu0 %v2475
      %v2477 = vand.u32 %v819, 4294901760
      %v2478 = vsub.f32 %v819, %v2477
      %v2479 = vand.u32 %v2478, 4294901760
      %v2480 = vsub.f32 %v2478, %v2479
      %v2481 = vand.u32 %v2480, 4294901760
      %2482 = vmatpush.msra.mxu0 %v2481
      %v2483 = vand.u32 %v818, 4294901760
      %v2484 = vsub.f32 %v818, %v2483
      %v2485 = vand.u32 %v2484, 4294901760
      %v2486 = vsub.f32 %v2484, %v2485
      %v2487 = vand.u32 %v2486, 4294901760
      %2488 = vmatpush.msra.mxu0 %v2487
      %v2489 = vand.u32 %v817, 4294901760
      %v2490 = vsub.f32 %v817, %v2489
      %v2491 = vand.u32 %v2490, 4294901760
      %v2492 = vsub.f32 %v2490, %v2491
      %v2493 = vand.u32 %v2492, 4294901760
      %2494 = vmatpush.msra.mxu0 %v2493
      %v2495 = vand.u32 %v407, 4294901760
      %2496 = vmatmul.f32.gmra.mxu0 %v2495
      %v2497 = vpop.f32.mrf.mxu0
      %v2498 = vadd.f32 %v2309, %v2497
      %v2499 = vand.u32 %v422, 4294901760
      %2500 = vmatmul.f32.gmra.mxu0 %v2499
      %v2501 = vpop.f32.mrf.mxu0
      %v2502 = vadd.f32 %v2317, %v2501
      %v2503 = vand.u32 %v437, 4294901760
      %2504 = vmatmul.f32.gmra.mxu0 %v2503
      %v2505 = vpop.f32.mrf.mxu0
      %v2506 = vadd.f32 %v2325, %v2505
      %v2507 = vand.u32 %v452, 4294901760
      %2508 = vmatmul.f32.gmra.mxu0 %v2507
      %v2509 = vpop.f32.mrf.mxu0
      %v2510 = vadd.f32 %v2333, %v2509
      %v2511 = vand.u32 %v467, 4294901760
      %2512 = vmatmul.f32.gmra.mxu0 %v2511
      %v2513 = vpop.f32.mrf.mxu0
      %v2514 = vadd.f32 %v2341, %v2513
      %v2515 = vand.u32 %v482, 4294901760
      %2516 = vmatmul.f32.gmra.mxu0 %v2515
      %v2517 = vpop.f32.mrf.mxu0
      %v2518 = vadd.f32 %v2349, %v2517
      %v2519 = vand.u32 %v497, 4294901760
      %2520 = vmatmul.f32.gmra.mxu0 %v2519
      %v2521 = vpop.f32.mrf.mxu0
      %v2522 = vadd.f32 %v2357, %v2521
      %v2523 = vand.u32 %v512, 4294901760
      %2524 = vmatmul.f32.gmra.mxu0 %v2523
      %v2525 = vpop.f32.mrf.mxu0
      %v2526 = vadd.f32 %v2365, %v2525
      %v2527 = vand.u32 %v527, 4294901760
      %2528 = vmatmul.f32.gmra.mxu0 %v2527
      %v2529 = vpop.f32.mrf.mxu0
      %v2530 = vadd.f32 %v2373, %v2529
      %v2531 = vand.u32 %v542, 4294901760
      %2532 = vmatmul.f32.gmra.mxu0 %v2531
      %v2533 = vpop.f32.mrf.mxu0
      %v2534 = vadd.f32 %v2381, %v2533
      %v2535 = vand.u32 %v557, 4294901760
      %2536 = vmatmul.f32.gmra.mxu0 %v2535
      %v2537 = vpop.f32.mrf.mxu0
      %v2538 = vadd.f32 %v2389, %v2537
      %v2539 = vand.u32 %v572, 4294901760
      %2540 = vmatmul.f32.gmra.mxu0 %v2539
      %v2541 = vpop.f32.mrf.mxu0
      %v2542 = vadd.f32 %v2397, %v2541
      %2543 = vdwg.mxu0
      %v2544 = vand.u32 %v832, 4294901760
      %v2545 = vsub.f32 %v832, %v2544
      %2546 = vmatpush.msra.mxu0 %v2545
      %v2547 = vand.u32 %v831, 4294901760
      %v2548 = vsub.f32 %v831, %v2547
      %2549 = vmatpush.msra.mxu0 %v2548
      %v2550 = vand.u32 %v830, 4294901760
      %v2551 = vsub.f32 %v830, %v2550
      %2552 = vmatpush.msra.mxu0 %v2551
      %v2553 = vand.u32 %v829, 4294901760
      %v2554 = vsub.f32 %v829, %v2553
      %2555 = vmatpush.msra.mxu0 %v2554
      %v2556 = vand.u32 %v828, 4294901760
      %v2557 = vsub.f32 %v828, %v2556
      %2558 = vmatpush.msra.mxu0 %v2557
      %v2559 = vand.u32 %v827, 4294901760
      %v2560 = vsub.f32 %v827, %v2559
      %2561 = vmatpush.msra.mxu0 %v2560
      %v2562 = vand.u32 %v826, 4294901760
      %v2563 = vsub.f32 %v826, %v2562
      %2564 = vmatpush.msra.mxu0 %v2563
      %v2565 = vand.u32 %v825, 4294901760
      %v2566 = vsub.f32 %v825, %v2565
      %2567 = vmatpush.msra.mxu0 %v2566
      %v2568 = vand.u32 %v824, 4294901760
      %v2569 = vsub.f32 %v824, %v2568
      %2570 = vmatpush.msra.mxu0 %v2569
      %v2571 = vand.u32 %v823, 4294901760
      %v2572 = vsub.f32 %v823, %v2571
      %2573 = vmatpush.msra.mxu0 %v2572
      %v2574 = vand.u32 %v822, 4294901760
      %v2575 = vsub.f32 %v822, %v2574
      %2576 = vmatpush.msra.mxu0 %v2575
      %v2577 = vand.u32 %v821, 4294901760
      %v2578 = vsub.f32 %v821, %v2577
      %2579 = vmatpush.msra.mxu0 %v2578
      %v2580 = vand.u32 %v820, 4294901760
      %v2581 = vsub.f32 %v820, %v2580
      %2582 = vmatpush.msra.mxu0 %v2581
      %v2583 = vand.u32 %v819, 4294901760
      %v2584 = vsub.f32 %v819, %v2583
      %2585 = vmatpush.msra.mxu0 %v2584
      %v2586 = vand.u32 %v818, 4294901760
      %v2587 = vsub.f32 %v818, %v2586
      %2588 = vmatpush.msra.mxu0 %v2587
      %v2589 = vand.u32 %v817, 4294901760
      %v2590 = vsub.f32 %v817, %v2589
      %2591 = vmatpush.msra.mxu0 %v2590
      %v2592 = vand.u32 %v407, 4294901760
      %v2593 = vsub.f32 %v407, %v2592
      %2594 = vmatmul.f32.gmra.mxu0 %v2593
      %v2595 = vpop.f32.mrf.mxu0
      %v2596 = vadd.f32 %v2498, %v2595
      %v2597 = vand.u32 %v422, 4294901760
      %v2598 = vsub.f32 %v422, %v2597
      %2599 = vmatmul.f32.gmra.mxu0 %v2598
      %v2600 = vpop.f32.mrf.mxu0
      %v2601 = vadd.f32 %v2502, %v2600
      %v2602 = vand.u32 %v437, 4294901760
      %v2603 = vsub.f32 %v437, %v2602
      %2604 = vmatmul.f32.gmra.mxu0 %v2603
      %v2605 = vpop.f32.mrf.mxu0
      %v2606 = vadd.f32 %v2506, %v2605
      %v2607 = vand.u32 %v452, 4294901760
      %v2608 = vsub.f32 %v452, %v2607
      %2609 = vmatmul.f32.gmra.mxu0 %v2608
      %v2610 = vpop.f32.mrf.mxu0
      %v2611 = vadd.f32 %v2510, %v2610
      %v2612 = vand.u32 %v467, 4294901760
      %v2613 = vsub.f32 %v467, %v2612
      %2614 = vmatmul.f32.gmra.mxu0 %v2613
      %v2615 = vpop.f32.mrf.mxu0
      %v2616 = vadd.f32 %v2514, %v2615
      %v2617 = vand.u32 %v482, 4294901760
      %v2618 = vsub.f32 %v482, %v2617
      %2619 = vmatmul.f32.gmra.mxu0 %v2618
      %v2620 = vpop.f32.mrf.mxu0
      %v2621 = vadd.f32 %v2518, %v2620
      %v2622 = vand.u32 %v497, 4294901760
      %v2623 = vsub.f32 %v497, %v2622
      %2624 = vmatmul.f32.gmra.mxu0 %v2623
      %v2625 = vpop.f32.mrf.mxu0
      %v2626 = vadd.f32 %v2522, %v2625
      %v2627 = vand.u32 %v512, 4294901760
      %v2628 = vsub.f32 %v512, %v2627
      %2629 = vmatmul.f32.gmra.mxu0 %v2628
      %v2630 = vpop.f32.mrf.mxu0
      %v2631 = vadd.f32 %v2526, %v2630
      %v2632 = vand.u32 %v527, 4294901760
      %v2633 = vsub.f32 %v527, %v2632
      %2634 = vmatmul.f32.gmra.mxu0 %v2633
      %v2635 = vpop.f32.mrf.mxu0
      %v2636 = vadd.f32 %v2530, %v2635
      %v2637 = vand.u32 %v542, 4294901760
      %v2638 = vsub.f32 %v542, %v2637
      %2639 = vmatmul.f32.gmra.mxu0 %v2638
      %v2640 = vpop.f32.mrf.mxu0
      %v2641 = vadd.f32 %v2534, %v2640
      %v2642 = vand.u32 %v557, 4294901760
      %v2643 = vsub.f32 %v557, %v2642
      %2644 = vmatmul.f32.gmra.mxu0 %v2643
      %v2645 = vpop.f32.mrf.mxu0
      %v2646 = vadd.f32 %v2538, %v2645
      %v2647 = vand.u32 %v572, 4294901760
      %v2648 = vsub.f32 %v572, %v2647
      %2649 = vmatmul.f32.gmra.mxu0 %v2648
      %v2650 = vpop.f32.mrf.mxu0
      %v2651 = vadd.f32 %v2542, %v2650
      %2652 = vdwg.mxu0
      %v2653 = vand.u32 %v832, 4294901760
      %2654 = vmatpush.msra.mxu0 %v2653
      %v2655 = vand.u32 %v831, 4294901760
      %2656 = vmatpush.msra.mxu0 %v2655
      %v2657 = vand.u32 %v830, 4294901760
      %2658 = vmatpush.msra.mxu0 %v2657
      %v2659 = vand.u32 %v829, 4294901760
      %2660 = vmatpush.msra.mxu0 %v2659
      %v2661 = vand.u32 %v828, 4294901760
      %2662 = vmatpush.msra.mxu0 %v2661
      %v2663 = vand.u32 %v827, 4294901760
      %2664 = vmatpush.msra.mxu0 %v2663
      %v2665 = vand.u32 %v826, 4294901760
      %2666 = vmatpush.msra.mxu0 %v2665
      %v2667 = vand.u32 %v825, 4294901760
      %2668 = vmatpush.msra.mxu0 %v2667
      %v2669 = vand.u32 %v824, 4294901760
      %2670 = vmatpush.msra.mxu0 %v2669
      %v2671 = vand.u32 %v823, 4294901760
      %2672 = vmatpush.msra.mxu0 %v2671
      %v2673 = vand.u32 %v822, 4294901760
      %2674 = vmatpush.msra.mxu0 %v2673
      %v2675 = vand.u32 %v821, 4294901760
      %2676 = vmatpush.msra.mxu0 %v2675
      %v2677 = vand.u32 %v820, 4294901760
      %2678 = vmatpush.msra.mxu0 %v2677
      %v2679 = vand.u32 %v819, 4294901760
      %2680 = vmatpush.msra.mxu0 %v2679
      %v2681 = vand.u32 %v818, 4294901760
      %2682 = vmatpush.msra.mxu0 %v2681
      %v2683 = vand.u32 %v817, 4294901760
      %2684 = vmatpush.msra.mxu0 %v2683
      %v2685 = vand.u32 %v407, 4294901760
      %v2686 = vsub.f32 %v407, %v2685
      %v2687 = vand.u32 %v2686, 4294901760
      %2688 = vmatmul.f32.gmra.mxu0 %v2687
      %v2689 = vpop.f32.mrf.mxu0
      %v2690 = vadd.f32 %v2596, %v2689
      %v2691 = vand.u32 %v422, 4294901760
      %v2692 = vsub.f32 %v422, %v2691
      %v2693 = vand.u32 %v2692, 4294901760
      %2694 = vmatmul.f32.gmra.mxu0 %v2693
      %v2695 = vpop.f32.mrf.mxu0
      %v2696 = vadd.f32 %v2601, %v2695
      %v2697 = vand.u32 %v437, 4294901760
      %v2698 = vsub.f32 %v437, %v2697
      %v2699 = vand.u32 %v2698, 4294901760
      %2700 = vmatmul.f32.gmra.mxu0 %v2699
      %v2701 = vpop.f32.mrf.mxu0
      %v2702 = vadd.f32 %v2606, %v2701
      %v2703 = vand.u32 %v452, 4294901760
      %v2704 = vsub.f32 %v452, %v2703
      %v2705 = vand.u32 %v2704, 4294901760
      %2706 = vmatmul.f32.gmra.mxu0 %v2705
      %v2707 = vpop.f32.mrf.mxu0
      %v2708 = vadd.f32 %v2611, %v2707
      %v2709 = vand.u32 %v467, 4294901760
      %v2710 = vsub.f32 %v467, %v2709
      %v2711 = vand.u32 %v2710, 4294901760
      %2712 = vmatmul.f32.gmra.mxu0 %v2711
      %v2713 = vpop.f32.mrf.mxu0
      %v2714 = vadd.f32 %v2616, %v2713
      %v2715 = vand.u32 %v482, 4294901760
      %v2716 = vsub.f32 %v482, %v2715
      %v2717 = vand.u32 %v2716, 4294901760
      %2718 = vmatmul.f32.gmra.mxu0 %v2717
      %v2719 = vpop.f32.mrf.mxu0
      %v2720 = vadd.f32 %v2621, %v2719
      %v2721 = vand.u32 %v497, 4294901760
      %v2722 = vsub.f32 %v497, %v2721
      %v2723 = vand.u32 %v2722, 4294901760
      %2724 = vmatmul.f32.gmra.mxu0 %v2723
      %v2725 = vpop.f32.mrf.mxu0
      %v2726 = vadd.f32 %v2626, %v2725
      %v2727 = vand.u32 %v512, 4294901760
      %v2728 = vsub.f32 %v512, %v2727
      %v2729 = vand.u32 %v2728, 4294901760
      %2730 = vmatmul.f32.gmra.mxu0 %v2729
      %v2731 = vpop.f32.mrf.mxu0
      %v2732 = vadd.f32 %v2631, %v2731
      %v2733 = vand.u32 %v527, 4294901760
      %v2734 = vsub.f32 %v527, %v2733
      %v2735 = vand.u32 %v2734, 4294901760
      %2736 = vmatmul.f32.gmra.mxu0 %v2735
      %v2737 = vpop.f32.mrf.mxu0
      %v2738 = vadd.f32 %v2636, %v2737
      %v2739 = vand.u32 %v542, 4294901760
      %v2740 = vsub.f32 %v542, %v2739
      %v2741 = vand.u32 %v2740, 4294901760
      %2742 = vmatmul.f32.gmra.mxu0 %v2741
      %v2743 = vpop.f32.mrf.mxu0
      %v2744 = vadd.f32 %v2641, %v2743
      %v2745 = vand.u32 %v557, 4294901760
      %v2746 = vsub.f32 %v557, %v2745
      %v2747 = vand.u32 %v2746, 4294901760
      %2748 = vmatmul.f32.gmra.mxu0 %v2747
      %v2749 = vpop.f32.mrf.mxu0
      %v2750 = vadd.f32 %v2646, %v2749
      %v2751 = vand.u32 %v572, 4294901760
      %v2752 = vsub.f32 %v572, %v2751
      %v2753 = vand.u32 %v2752, 4294901760
      %2754 = vmatmul.f32.gmra.mxu0 %v2753
      %v2755 = vpop.f32.mrf.mxu0
      %v2756 = vadd.f32 %v2651, %v2755
      %2757 = vdwg.mxu0
      %v2758 = vand.u32 %v832, 4294901760
      %v2759 = vsub.f32 %v832, %v2758
      %v2760 = vand.u32 %v2759, 4294901760
      %2761 = vmatpush.msra.mxu0 %v2760
      %v2762 = vand.u32 %v831, 4294901760
      %v2763 = vsub.f32 %v831, %v2762
      %v2764 = vand.u32 %v2763, 4294901760
      %2765 = vmatpush.msra.mxu0 %v2764
      %v2766 = vand.u32 %v830, 4294901760
      %v2767 = vsub.f32 %v830, %v2766
      %v2768 = vand.u32 %v2767, 4294901760
      %2769 = vmatpush.msra.mxu0 %v2768
      %v2770 = vand.u32 %v829, 4294901760
      %v2771 = vsub.f32 %v829, %v2770
      %v2772 = vand.u32 %v2771, 4294901760
      %2773 = vmatpush.msra.mxu0 %v2772
      %v2774 = vand.u32 %v828, 4294901760
      %v2775 = vsub.f32 %v828, %v2774
      %v2776 = vand.u32 %v2775, 4294901760
      %2777 = vmatpush.msra.mxu0 %v2776
      %v2778 = vand.u32 %v827, 4294901760
      %v2779 = vsub.f32 %v827, %v2778
      %v2780 = vand.u32 %v2779, 4294901760
      %2781 = vmatpush.msra.mxu0 %v2780
      %v2782 = vand.u32 %v826, 4294901760
      %v2783 = vsub.f32 %v826, %v2782
      %v2784 = vand.u32 %v2783, 4294901760
      %2785 = vmatpush.msra.mxu0 %v2784
      %v2786 = vand.u32 %v825, 4294901760
      %v2787 = vsub.f32 %v825, %v2786
      %v2788 = vand.u32 %v2787, 4294901760
      %2789 = vmatpush.msra.mxu0 %v2788
      %v2790 = vand.u32 %v824, 4294901760
      %v2791 = vsub.f32 %v824, %v2790
      %v2792 = vand.u32 %v2791, 4294901760
      %2793 = vmatpush.msra.mxu0 %v2792
      %v2794 = vand.u32 %v823, 4294901760
      %v2795 = vsub.f32 %v823, %v2794
      %v2796 = vand.u32 %v2795, 4294901760
      %2797 = vmatpush.msra.mxu0 %v2796
      %v2798 = vand.u32 %v822, 4294901760
      %v2799 = vsub.f32 %v822, %v2798
      %v2800 = vand.u32 %v2799, 4294901760
      %2801 = vmatpush.msra.mxu0 %v2800
      %v2802 = vand.u32 %v821, 4294901760
      %v2803 = vsub.f32 %v821, %v2802
      %v2804 = vand.u32 %v2803, 4294901760
      %2805 = vmatpush.msra.mxu0 %v2804
      %v2806 = vand.u32 %v820, 4294901760
      %v2807 = vsub.f32 %v820, %v2806
      %v2808 = vand.u32 %v2807, 4294901760
      %2809 = vmatpush.msra.mxu0 %v2808
      %v2810 = vand.u32 %v819, 4294901760
      %v2811 = vsub.f32 %v819, %v2810
      %v2812 = vand.u32 %v2811, 4294901760
      %2813 = vmatpush.msra.mxu0 %v2812
      %v2814 = vand.u32 %v818, 4294901760
      %v2815 = vsub.f32 %v818, %v2814
      %v2816 = vand.u32 %v2815, 4294901760
      %2817 = vmatpush.msra.mxu0 %v2816
      %v2818 = vand.u32 %v817, 4294901760
      %v2819 = vsub.f32 %v817, %v2818
      %v2820 = vand.u32 %v2819, 4294901760
      %2821 = vmatpush.msra.mxu0 %v2820
      %v2822 = vand.u32 %v407, 4294901760
      %2823 = vmatmul.f32.gmra.mxu0 %v2822
      %v2824 = vpop.f32.mrf.mxu0
      %v2825 = vadd.f32 %v2690, %v2824
      %v2826 = vand.u32 %v422, 4294901760
      %2827 = vmatmul.f32.gmra.mxu0 %v2826
      %v2828 = vpop.f32.mrf.mxu0
      %v2829 = vadd.f32 %v2696, %v2828
      %v2830 = vand.u32 %v437, 4294901760
      %2831 = vmatmul.f32.gmra.mxu0 %v2830
      %v2832 = vpop.f32.mrf.mxu0
      %v2833 = vadd.f32 %v2702, %v2832
      %v2834 = vand.u32 %v452, 4294901760
      %2835 = vmatmul.f32.gmra.mxu0 %v2834
      %v2836 = vpop.f32.mrf.mxu0
      %v2837 = vadd.f32 %v2708, %v2836
      %v2838 = vand.u32 %v467, 4294901760
      %2839 = vmatmul.f32.gmra.mxu0 %v2838
      %v2840 = vpop.f32.mrf.mxu0
      %v2841 = vadd.f32 %v2714, %v2840
      %v2842 = vand.u32 %v482, 4294901760
      %2843 = vmatmul.f32.gmra.mxu0 %v2842
      %v2844 = vpop.f32.mrf.mxu0
      %v2845 = vadd.f32 %v2720, %v2844
      %v2846 = vand.u32 %v497, 4294901760
      %2847 = vmatmul.f32.gmra.mxu0 %v2846
      %v2848 = vpop.f32.mrf.mxu0
      %v2849 = vadd.f32 %v2726, %v2848
      %v2850 = vand.u32 %v512, 4294901760
      %2851 = vmatmul.f32.gmra.mxu0 %v2850
      %v2852 = vpop.f32.mrf.mxu0
      %v2853 = vadd.f32 %v2732, %v2852
      %v2854 = vand.u32 %v527, 4294901760
      %2855 = vmatmul.f32.gmra.mxu0 %v2854
      %v2856 = vpop.f32.mrf.mxu0
      %v2857 = vadd.f32 %v2738, %v2856
      %v2858 = vand.u32 %v542, 4294901760
      %2859 = vmatmul.f32.gmra.mxu0 %v2858
      %v2860 = vpop.f32.mrf.mxu0
      %v2861 = vadd.f32 %v2744, %v2860
      %v2862 = vand.u32 %v557, 4294901760
      %2863 = vmatmul.f32.gmra.mxu0 %v2862
      %v2864 = vpop.f32.mrf.mxu0
      %v2865 = vadd.f32 %v2750, %v2864
      %v2866 = vand.u32 %v572, 4294901760
      %2867 = vmatmul.f32.gmra.mxu0 %v2866
      %v2868 = vpop.f32.mrf.mxu0
      %v2869 = vadd.f32 %v2756, %v2868
      %2870 = vdwg.mxu0
      %v2871 = vand.u32 %v832, 4294901760
      %2872 = vmatpush.msra.mxu0 %v2871
      %v2873 = vand.u32 %v831, 4294901760
      %2874 = vmatpush.msra.mxu0 %v2873
      %v2875 = vand.u32 %v830, 4294901760
      %2876 = vmatpush.msra.mxu0 %v2875
      %v2877 = vand.u32 %v829, 4294901760
      %2878 = vmatpush.msra.mxu0 %v2877
      %v2879 = vand.u32 %v828, 4294901760
      %2880 = vmatpush.msra.mxu0 %v2879
      %v2881 = vand.u32 %v827, 4294901760
      %2882 = vmatpush.msra.mxu0 %v2881
      %v2883 = vand.u32 %v826, 4294901760
      %2884 = vmatpush.msra.mxu0 %v2883
      %v2885 = vand.u32 %v825, 4294901760
      %2886 = vmatpush.msra.mxu0 %v2885
      %v2887 = vand.u32 %v824, 4294901760
      %2888 = vmatpush.msra.mxu0 %v2887
      %v2889 = vand.u32 %v823, 4294901760
      %2890 = vmatpush.msra.mxu0 %v2889
      %v2891 = vand.u32 %v822, 4294901760
      %2892 = vmatpush.msra.mxu0 %v2891
      %v2893 = vand.u32 %v821, 4294901760
      %2894 = vmatpush.msra.mxu0 %v2893
      %v2895 = vand.u32 %v820, 4294901760
      %2896 = vmatpush.msra.mxu0 %v2895
      %v2897 = vand.u32 %v819, 4294901760
      %2898 = vmatpush.msra.mxu0 %v2897
      %v2899 = vand.u32 %v818, 4294901760
      %2900 = vmatpush.msra.mxu0 %v2899
      %v2901 = vand.u32 %v817, 4294901760
      %2902 = vmatpush.msra.mxu0 %v2901
      %v2903 = vand.u32 %v407, 4294901760
      %2904 = vmatmul.f32.gmra.mxu0 %v2903
      %v2905 = vpop.f32.mrf.mxu0
      %v2906 = vadd.f32 %v2825, %v2905
      %v2907 = vand.u32 %v422, 4294901760
      %2908 = vmatmul.f32.gmra.mxu0 %v2907
      %v2909 = vpop.f32.mrf.mxu0
      %v2910 = vadd.f32 %v2829, %v2909
      %v2911 = vand.u32 %v437, 4294901760
      %2912 = vmatmul.f32.gmra.mxu0 %v2911
      %v2913 = vpop.f32.mrf.mxu0
      %v2914 = vadd.f32 %v2833, %v2913
      %v2915 = vand.u32 %v452, 4294901760
      %2916 = vmatmul.f32.gmra.mxu0 %v2915
      %v2917 = vpop.f32.mrf.mxu0
      %v2918 = vadd.f32 %v2837, %v2917
      %v2919 = vand.u32 %v467, 4294901760
      %2920 = vmatmul.f32.gmra.mxu0 %v2919
      %v2921 = vpop.f32.mrf.mxu0
      %v2922 = vadd.f32 %v2841, %v2921
      %v2923 = vand.u32 %v482, 4294901760
      %2924 = vmatmul.f32.gmra.mxu0 %v2923
      %v2925 = vpop.f32.mrf.mxu0
      %v2926 = vadd.f32 %v2845, %v2925
      %v2927 = vand.u32 %v497, 4294901760
      %2928 = vmatmul.f32.gmra.mxu0 %v2927
      %v2929 = vpop.f32.mrf.mxu0
      %v2930 = vadd.f32 %v2849, %v2929
      %v2931 = vand.u32 %v512, 4294901760
      %2932 = vmatmul.f32.gmra.mxu0 %v2931
      %v2933 = vpop.f32.mrf.mxu0
      %v2934 = vadd.f32 %v2853, %v2933
      %v2935 = vand.u32 %v527, 4294901760
      %2936 = vmatmul.f32.gmra.mxu0 %v2935
      %v2937 = vpop.f32.mrf.mxu0
      %v2938 = vadd.f32 %v2857, %v2937
      %v2939 = vand.u32 %v542, 4294901760
      %2940 = vmatmul.f32.gmra.mxu0 %v2939
      %v2941 = vpop.f32.mrf.mxu0
      %v2942 = vadd.f32 %v2861, %v2941
      %v2943 = vand.u32 %v557, 4294901760
      %2944 = vmatmul.f32.gmra.mxu0 %v2943
      %v2945 = vpop.f32.mrf.mxu0
      %v2946 = vadd.f32 %v2865, %v2945
      %v2947 = vand.u32 %v572, 4294901760
      %2948 = vmatmul.f32.gmra.mxu0 %v2947
      %v2949 = vpop.f32.mrf.mxu0
      %v2950 = vadd.f32 %v2869, %v2949
      %2951 = vdwg.mxu0
      %s2952 = scalar_lea.vmem %s259, 192
      %v2953 = vld [vmem:[%s2952] sm:$0xff]
      %v2954 = vld [vmem:[%s2952 + $0x8] sm:$0xff]
      %v2955 = vld [vmem:[%s2952 + $0x10] sm:$0xff]
      %v2956 = vld [vmem:[%s2952 + $0x18] sm:$0xff]
      %v2957 = vld [vmem:[%s2952 + $0x20] sm:$0xff]
      %v2958 = vld [vmem:[%s2952 + $0x28] sm:$0xff]
      %v2959 = vld [vmem:[%s2952 + $0x30] sm:$0xff]
      %v2960 = vld [vmem:[%s2952 + $0x38] sm:$0xff]
      %v2961 = vld [vmem:[%s2952 + $0x40] sm:$0xff]
      %v2962 = vld [vmem:[%s2952 + $0x48] sm:$0xff]
      %v2963 = vld [vmem:[%s2952 + $0x50] sm:$0xff]
      %v2964 = vld [vmem:[%s2952 + $0x58] sm:$0xff]
      %v2965 = vadd.f32 %v2953, %v2906
      %v2966 = vadd.f32 %v2954, %v2910
      %v2967 = vadd.f32 %v2955, %v2914
      %v2968 = vadd.f32 %v2956, %v2918
      %v2969 = vadd.f32 %v2957, %v2922
      %v2970 = vadd.f32 %v2958, %v2926
      %v2971 = vadd.f32 %v2959, %v2930
      %v2972 = vadd.f32 %v2960, %v2934
      %v2973 = vadd.f32 %v2961, %v2938
      %v2974 = vadd.f32 %v2962, %v2942
      %v2975 = vadd.f32 %v2963, %v2946
      %v2976 = vadd.f32 %v2964, %v2950
      %2977 = vst [vmem:[%s2952] sm:$0xff] %v2965
      %2978 = vst [vmem:[%s2952 + $0x8] sm:$0xff] %v2966
      %2979 = vst [vmem:[%s2952 + $0x10] sm:$0xff] %v2967
      %2980 = vst [vmem:[%s2952 + $0x18] sm:$0xff] %v2968
      %2981 = vst [vmem:[%s2952 + $0x20] sm:$0xff] %v2969
      %2982 = vst [vmem:[%s2952 + $0x28] sm:$0xff] %v2970
      %2983 = vst [vmem:[%s2952 + $0x30] sm:$0xff] %v2971
      %2984 = vst [vmem:[%s2952 + $0x38] sm:$0xff] %v2972
      %2985 = vst [vmem:[%s2952 + $0x40] sm:$0xff] %v2973
      %2986 = vst [vmem:[%s2952 + $0x48] sm:$0xff] %v2974
      %2987 = vst [vmem:[%s2952 + $0x50] sm:$0xff] %v2975
      %2988 = vst [vmem:[%s2952 + $0x58] sm:$0xff] %v2976
      %v2989 = vand.u32 %v832, 4294901760
      %2990 = vmatpush.msra.mxu0 %v2989
      %v2991 = vand.u32 %v831, 4294901760
      %2992 = vmatpush.msra.mxu0 %v2991
      %v2993 = vand.u32 %v830, 4294901760
      %2994 = vmatpush.msra.mxu0 %v2993
      %v2995 = vand.u32 %v829, 4294901760
      %2996 = vmatpush.msra.mxu0 %v2995
      %v2997 = vand.u32 %v828, 4294901760
      %2998 = vmatpush.msra.mxu0 %v2997
      %v2999 = vand.u32 %v827, 4294901760
      %3000 = vmatpush.msra.mxu0 %v2999
      %v3001 = vand.u32 %v826, 4294901760
      %3002 = vmatpush.msra.mxu0 %v3001
      %v3003 = vand.u32 %v825, 4294901760
      %3004 = vmatpush.msra.mxu0 %v3003
      %v3005 = vand.u32 %v824, 4294901760
      %3006 = vmatpush.msra.mxu0 %v3005
      %v3007 = vand.u32 %v823, 4294901760
      %3008 = vmatpush.msra.mxu0 %v3007
      %v3009 = vand.u32 %v822, 4294901760
      %3010 = vmatpush.msra.mxu0 %v3009
      %v3011 = vand.u32 %v821, 4294901760
      %3012 = vmatpush.msra.mxu0 %v3011
      %v3013 = vand.u32 %v820, 4294901760
      %3014 = vmatpush.msra.mxu0 %v3013
      %v3015 = vand.u32 %v819, 4294901760
      %3016 = vmatpush.msra.mxu0 %v3015
      %v3017 = vand.u32 %v818, 4294901760
      %3018 = vmatpush.msra.mxu0 %v3017
      %v3019 = vand.u32 %v817, 4294901760
      %3020 = vmatpush.msra.mxu0 %v3019
      %v3021 = vand.u32 %v805, 4294901760
      %v3022 = vsub.f32 %v805, %v3021
      %v3023 = vand.u32 %v3022, 4294901760
      %v3024 = vsub.f32 %v3022, %v3023
      %v3025 = vand.u32 %v3024, 4294901760
      %3026 = vmatmul.f32.gmra.mxu0 %v3025
      %v3027 = vpop.f32.mrf.mxu0
      %v3028 = vadd.f32 0.0, %v3027
      %v3029 = vand.u32 %v806, 4294901760
      %v3030 = vsub.f32 %v806, %v3029
      %v3031 = vand.u32 %v3030, 4294901760
      %v3032 = vsub.f32 %v3030, %v3031
      %v3033 = vand.u32 %v3032, 4294901760
      %3034 = vmatmul.f32.gmra.mxu0 %v3033
      %v3035 = vpop.f32.mrf.mxu0
      %v3036 = vadd.f32 0.0, %v3035
      %v3037 = vand.u32 %v807, 4294901760
      %v3038 = vsub.f32 %v807, %v3037
      %v3039 = vand.u32 %v3038, 4294901760
      %v3040 = vsub.f32 %v3038, %v3039
      %v3041 = vand.u32 %v3040, 4294901760
      %3042 = vmatmul.f32.gmra.mxu0 %v3041
      %v3043 = vpop.f32.mrf.mxu0
      %v3044 = vadd.f32 0.0, %v3043
      %v3045 = vand.u32 %v808, 4294901760
      %v3046 = vsub.f32 %v808, %v3045
      %v3047 = vand.u32 %v3046, 4294901760
      %v3048 = vsub.f32 %v3046, %v3047
      %v3049 = vand.u32 %v3048, 4294901760
      %3050 = vmatmul.f32.gmra.mxu0 %v3049
      %v3051 = vpop.f32.mrf.mxu0
      %v3052 = vadd.f32 0.0, %v3051
      %v3053 = vand.u32 %v809, 4294901760
      %v3054 = vsub.f32 %v809, %v3053
      %v3055 = vand.u32 %v3054, 4294901760
      %v3056 = vsub.f32 %v3054, %v3055
      %v3057 = vand.u32 %v3056, 4294901760
      %3058 = vmatmul.f32.gmra.mxu0 %v3057
      %v3059 = vpop.f32.mrf.mxu0
      %v3060 = vadd.f32 0.0, %v3059
      %v3061 = vand.u32 %v810, 4294901760
      %v3062 = vsub.f32 %v810, %v3061
      %v3063 = vand.u32 %v3062, 4294901760
      %v3064 = vsub.f32 %v3062, %v3063
      %v3065 = vand.u32 %v3064, 4294901760
      %3066 = vmatmul.f32.gmra.mxu0 %v3065
      %v3067 = vpop.f32.mrf.mxu0
      %v3068 = vadd.f32 0.0, %v3067
      %v3069 = vand.u32 %v811, 4294901760
      %v3070 = vsub.f32 %v811, %v3069
      %v3071 = vand.u32 %v3070, 4294901760
      %v3072 = vsub.f32 %v3070, %v3071
      %v3073 = vand.u32 %v3072, 4294901760
      %3074 = vmatmul.f32.gmra.mxu0 %v3073
      %v3075 = vpop.f32.mrf.mxu0
      %v3076 = vadd.f32 0.0, %v3075
      %v3077 = vand.u32 %v812, 4294901760
      %v3078 = vsub.f32 %v812, %v3077
      %v3079 = vand.u32 %v3078, 4294901760
      %v3080 = vsub.f32 %v3078, %v3079
      %v3081 = vand.u32 %v3080, 4294901760
      %3082 = vmatmul.f32.gmra.mxu0 %v3081
      %v3083 = vpop.f32.mrf.mxu0
      %v3084 = vadd.f32 0.0, %v3083
      %v3085 = vand.u32 %v813, 4294901760
      %v3086 = vsub.f32 %v813, %v3085
      %v3087 = vand.u32 %v3086, 4294901760
      %v3088 = vsub.f32 %v3086, %v3087
      %v3089 = vand.u32 %v3088, 4294901760
      %3090 = vmatmul.f32.gmra.mxu0 %v3089
      %v3091 = vpop.f32.mrf.mxu0
      %v3092 = vadd.f32 0.0, %v3091
      %v3093 = vand.u32 %v814, 4294901760
      %v3094 = vsub.f32 %v814, %v3093
      %v3095 = vand.u32 %v3094, 4294901760
      %v3096 = vsub.f32 %v3094, %v3095
      %v3097 = vand.u32 %v3096, 4294901760
      %3098 = vmatmul.f32.gmra.mxu0 %v3097
      %v3099 = vpop.f32.mrf.mxu0
      %v3100 = vadd.f32 0.0, %v3099
      %v3101 = vand.u32 %v815, 4294901760
      %v3102 = vsub.f32 %v815, %v3101
      %v3103 = vand.u32 %v3102, 4294901760
      %v3104 = vsub.f32 %v3102, %v3103
      %v3105 = vand.u32 %v3104, 4294901760
      %3106 = vmatmul.f32.gmra.mxu0 %v3105
      %v3107 = vpop.f32.mrf.mxu0
      %v3108 = vadd.f32 0.0, %v3107
      %v3109 = vand.u32 %v816, 4294901760
      %v3110 = vsub.f32 %v816, %v3109
      %v3111 = vand.u32 %v3110, 4294901760
      %v3112 = vsub.f32 %v3110, %v3111
      %v3113 = vand.u32 %v3112, 4294901760
      %3114 = vmatmul.f32.gmra.mxu0 %v3113
      %v3115 = vpop.f32.mrf.mxu0
      %v3116 = vadd.f32 0.0, %v3115
      %3117 = vdwg.mxu0
      %v3118 = vand.u32 %v832, 4294901760
      %v3119 = vsub.f32 %v832, %v3118
      %v3120 = vand.u32 %v3119, 4294901760
      %v3121 = vsub.f32 %v3119, %v3120
      %v3122 = vand.u32 %v3121, 4294901760
      %3123 = vmatpush.msra.mxu0 %v3122
      %v3124 = vand.u32 %v831, 4294901760
      %v3125 = vsub.f32 %v831, %v3124
      %v3126 = vand.u32 %v3125, 4294901760
      %v3127 = vsub.f32 %v3125, %v3126
      %v3128 = vand.u32 %v3127, 4294901760
      %3129 = vmatpush.msra.mxu0 %v3128
      %v3130 = vand.u32 %v830, 4294901760
      %v3131 = vsub.f32 %v830, %v3130
      %v3132 = vand.u32 %v3131, 4294901760
      %v3133 = vsub.f32 %v3131, %v3132
      %v3134 = vand.u32 %v3133, 4294901760
      %3135 = vmatpush.msra.mxu0 %v3134
      %v3136 = vand.u32 %v829, 4294901760
      %v3137 = vsub.f32 %v829, %v3136
      %v3138 = vand.u32 %v3137, 4294901760
      %v3139 = vsub.f32 %v3137, %v3138
      %v3140 = vand.u32 %v3139, 4294901760
      %3141 = vmatpush.msra.mxu0 %v3140
      %v3142 = vand.u32 %v828, 4294901760
      %v3143 = vsub.f32 %v828, %v3142
      %v3144 = vand.u32 %v3143, 4294901760
      %v3145 = vsub.f32 %v3143, %v3144
      %v3146 = vand.u32 %v3145, 4294901760
      %3147 = vmatpush.msra.mxu0 %v3146
      %v3148 = vand.u32 %v827, 4294901760
      %v3149 = vsub.f32 %v827, %v3148
      %v3150 = vand.u32 %v3149, 4294901760
      %v3151 = vsub.f32 %v3149, %v3150
      %v3152 = vand.u32 %v3151, 4294901760
      %3153 = vmatpush.msra.mxu0 %v3152
      %v3154 = vand.u32 %v826, 4294901760
      %v3155 = vsub.f32 %v826, %v3154
      %v3156 = vand.u32 %v3155, 4294901760
      %v3157 = vsub.f32 %v3155, %v3156
      %v3158 = vand.u32 %v3157, 4294901760
      %3159 = vmatpush.msra.mxu0 %v3158
      %v3160 = vand.u32 %v825, 4294901760
      %v3161 = vsub.f32 %v825, %v3160
      %v3162 = vand.u32 %v3161, 4294901760
      %v3163 = vsub.f32 %v3161, %v3162
      %v3164 = vand.u32 %v3163, 4294901760
      %3165 = vmatpush.msra.mxu0 %v3164
      %v3166 = vand.u32 %v824, 4294901760
      %v3167 = vsub.f32 %v824, %v3166
      %v3168 = vand.u32 %v3167, 4294901760
      %v3169 = vsub.f32 %v3167, %v3168
      %v3170 = vand.u32 %v3169, 4294901760
      %3171 = vmatpush.msra.mxu0 %v3170
      %v3172 = vand.u32 %v823, 4294901760
      %v3173 = vsub.f32 %v823, %v3172
      %v3174 = vand.u32 %v3173, 4294901760
      %v3175 = vsub.f32 %v3173, %v3174
      %v3176 = vand.u32 %v3175, 4294901760
      %3177 = vmatpush.msra.mxu0 %v3176
      %v3178 = vand.u32 %v822, 4294901760
      %v3179 = vsub.f32 %v822, %v3178
      %v3180 = vand.u32 %v3179, 4294901760
      %v3181 = vsub.f32 %v3179, %v3180
      %v3182 = vand.u32 %v3181, 4294901760
      %3183 = vmatpush.msra.mxu0 %v3182
      %v3184 = vand.u32 %v821, 4294901760
      %v3185 = vsub.f32 %v821, %v3184
      %v3186 = vand.u32 %v3185, 4294901760
      %v3187 = vsub.f32 %v3185, %v3186
      %v3188 = vand.u32 %v3187, 4294901760
      %3189 = vmatpush.msra.mxu0 %v3188
      %v3190 = vand.u32 %v820, 4294901760
      %v3191 = vsub.f32 %v820, %v3190
      %v3192 = vand.u32 %v3191, 4294901760
      %v3193 = vsub.f32 %v3191, %v3192
      %v3194 = vand.u32 %v3193, 4294901760
      %3195 = vmatpush.msra.mxu0 %v3194
      %v3196 = vand.u32 %v819, 4294901760
      %v3197 = vsub.f32 %v819, %v3196
      %v3198 = vand.u32 %v3197, 4294901760
      %v3199 = vsub.f32 %v3197, %v3198
      %v3200 = vand.u32 %v3199, 4294901760
      %3201 = vmatpush.msra.mxu0 %v3200
      %v3202 = vand.u32 %v818, 4294901760
      %v3203 = vsub.f32 %v818, %v3202
      %v3204 = vand.u32 %v3203, 4294901760
      %v3205 = vsub.f32 %v3203, %v3204
      %v3206 = vand.u32 %v3205, 4294901760
      %3207 = vmatpush.msra.mxu0 %v3206
      %v3208 = vand.u32 %v817, 4294901760
      %v3209 = vsub.f32 %v817, %v3208
      %v3210 = vand.u32 %v3209, 4294901760
      %v3211 = vsub.f32 %v3209, %v3210
      %v3212 = vand.u32 %v3211, 4294901760
      %3213 = vmatpush.msra.mxu0 %v3212
      %v3214 = vand.u32 %v805, 4294901760
      %3215 = vmatmul.f32.gmra.mxu0 %v3214
      %v3216 = vpop.f32.mrf.mxu0
      %v3217 = vadd.f32 %v3028, %v3216
      %v3218 = vand.u32 %v806, 4294901760
      %3219 = vmatmul.f32.gmra.mxu0 %v3218
      %v3220 = vpop.f32.mrf.mxu0
      %v3221 = vadd.f32 %v3036, %v3220
      %v3222 = vand.u32 %v807, 4294901760
      %3223 = vmatmul.f32.gmra.mxu0 %v3222
      %v3224 = vpop.f32.mrf.mxu0
      %v3225 = vadd.f32 %v3044, %v3224
      %v3226 = vand.u32 %v808, 4294901760
      %3227 = vmatmul.f32.gmra.mxu0 %v3226
      %v3228 = vpop.f32.mrf.mxu0
      %v3229 = vadd.f32 %v3052, %v3228
      %v3230 = vand.u32 %v809, 4294901760
      %3231 = vmatmul.f32.gmra.mxu0 %v3230
      %v3232 = vpop.f32.mrf.mxu0
      %v3233 = vadd.f32 %v3060, %v3232
      %v3234 = vand.u32 %v810, 4294901760
      %3235 = vmatmul.f32.gmra.mxu0 %v3234
      %v3236 = vpop.f32.mrf.mxu0
      %v3237 = vadd.f32 %v3068, %v3236
      %v3238 = vand.u32 %v811, 4294901760
      %3239 = vmatmul.f32.gmra.mxu0 %v3238
      %v3240 = vpop.f32.mrf.mxu0
      %v3241 = vadd.f32 %v3076, %v3240
      %v3242 = vand.u32 %v812, 4294901760
      %3243 = vmatmul.f32.gmra.mxu0 %v3242
      %v3244 = vpop.f32.mrf.mxu0
      %v3245 = vadd.f32 %v3084, %v3244
      %v3246 = vand.u32 %v813, 4294901760
      %3247 = vmatmul.f32.gmra.mxu0 %v3246
      %v3248 = vpop.f32.mrf.mxu0
      %v3249 = vadd.f32 %v3092, %v3248
      %v3250 = vand.u32 %v814, 4294901760
      %3251 = vmatmul.f32.gmra.mxu0 %v3250
      %v3252 = vpop.f32.mrf.mxu0
      %v3253 = vadd.f32 %v3100, %v3252
      %v3254 = vand.u32 %v815, 4294901760
      %3255 = vmatmul.f32.gmra.mxu0 %v3254
      %v3256 = vpop.f32.mrf.mxu0
      %v3257 = vadd.f32 %v3108, %v3256
      %v3258 = vand.u32 %v816, 4294901760
      %3259 = vmatmul.f32.gmra.mxu0 %v3258
      %v3260 = vpop.f32.mrf.mxu0
      %v3261 = vadd.f32 %v3116, %v3260
      %3262 = vdwg.mxu0
      %v3263 = vand.u32 %v832, 4294901760
      %v3264 = vsub.f32 %v832, %v3263
      %3265 = vmatpush.msra.mxu0 %v3264
      %v3266 = vand.u32 %v831, 4294901760
      %v3267 = vsub.f32 %v831, %v3266
      %3268 = vmatpush.msra.mxu0 %v3267
      %v3269 = vand.u32 %v830, 4294901760
      %v3270 = vsub.f32 %v830, %v3269
      %3271 = vmatpush.msra.mxu0 %v3270
      %v3272 = vand.u32 %v829, 4294901760
      %v3273 = vsub.f32 %v829, %v3272
      %3274 = vmatpush.msra.mxu0 %v3273
      %v3275 = vand.u32 %v828, 4294901760
      %v3276 = vsub.f32 %v828, %v3275
      %3277 = vmatpush.msra.mxu0 %v3276
      %v3278 = vand.u32 %v827, 4294901760
      %v3279 = vsub.f32 %v827, %v3278
      %3280 = vmatpush.msra.mxu0 %v3279
      %v3281 = vand.u32 %v826, 4294901760
      %v3282 = vsub.f32 %v826, %v3281
      %3283 = vmatpush.msra.mxu0 %v3282
      %v3284 = vand.u32 %v825, 4294901760
      %v3285 = vsub.f32 %v825, %v3284
      %3286 = vmatpush.msra.mxu0 %v3285
      %v3287 = vand.u32 %v824, 4294901760
      %v3288 = vsub.f32 %v824, %v3287
      %3289 = vmatpush.msra.mxu0 %v3288
      %v3290 = vand.u32 %v823, 4294901760
      %v3291 = vsub.f32 %v823, %v3290
      %3292 = vmatpush.msra.mxu0 %v3291
      %v3293 = vand.u32 %v822, 4294901760
      %v3294 = vsub.f32 %v822, %v3293
      %3295 = vmatpush.msra.mxu0 %v3294
      %v3296 = vand.u32 %v821, 4294901760
      %v3297 = vsub.f32 %v821, %v3296
      %3298 = vmatpush.msra.mxu0 %v3297
      %v3299 = vand.u32 %v820, 4294901760
      %v3300 = vsub.f32 %v820, %v3299
      %3301 = vmatpush.msra.mxu0 %v3300
      %v3302 = vand.u32 %v819, 4294901760
      %v3303 = vsub.f32 %v819, %v3302
      %3304 = vmatpush.msra.mxu0 %v3303
      %v3305 = vand.u32 %v818, 4294901760
      %v3306 = vsub.f32 %v818, %v3305
      %3307 = vmatpush.msra.mxu0 %v3306
      %v3308 = vand.u32 %v817, 4294901760
      %v3309 = vsub.f32 %v817, %v3308
      %3310 = vmatpush.msra.mxu0 %v3309
      %v3311 = vand.u32 %v805, 4294901760
      %v3312 = vsub.f32 %v805, %v3311
      %3313 = vmatmul.f32.gmra.mxu0 %v3312
      %v3314 = vpop.f32.mrf.mxu0
      %v3315 = vadd.f32 %v3217, %v3314
      %v3316 = vand.u32 %v806, 4294901760
      %v3317 = vsub.f32 %v806, %v3316
      %3318 = vmatmul.f32.gmra.mxu0 %v3317
      %v3319 = vpop.f32.mrf.mxu0
      %v3320 = vadd.f32 %v3221, %v3319
      %v3321 = vand.u32 %v807, 4294901760
      %v3322 = vsub.f32 %v807, %v3321
      %3323 = vmatmul.f32.gmra.mxu0 %v3322
      %v3324 = vpop.f32.mrf.mxu0
      %v3325 = vadd.f32 %v3225, %v3324
      %v3326 = vand.u32 %v808, 4294901760
      %v3327 = vsub.f32 %v808, %v3326
      %3328 = vmatmul.f32.gmra.mxu0 %v3327
      %v3329 = vpop.f32.mrf.mxu0
      %v3330 = vadd.f32 %v3229, %v3329
      %v3331 = vand.u32 %v809, 4294901760
      %v3332 = vsub.f32 %v809, %v3331
      %3333 = vmatmul.f32.gmra.mxu0 %v3332
      %v3334 = vpop.f32.mrf.mxu0
      %v3335 = vadd.f32 %v3233, %v3334
      %v3336 = vand.u32 %v810, 4294901760
      %v3337 = vsub.f32 %v810, %v3336
      %3338 = vmatmul.f32.gmra.mxu0 %v3337
      %v3339 = vpop.f32.mrf.mxu0
      %v3340 = vadd.f32 %v3237, %v3339
      %v3341 = vand.u32 %v811, 4294901760
      %v3342 = vsub.f32 %v811, %v3341
      %3343 = vmatmul.f32.gmra.mxu0 %v3342
      %v3344 = vpop.f32.mrf.mxu0
      %v3345 = vadd.f32 %v3241, %v3344
      %v3346 = vand.u32 %v812, 4294901760
      %v3347 = vsub.f32 %v812, %v3346
      %3348 = vmatmul.f32.gmra.mxu0 %v3347
      %v3349 = vpop.f32.mrf.mxu0
      %v3350 = vadd.f32 %v3245, %v3349
      %v3351 = vand.u32 %v813, 4294901760
      %v3352 = vsub.f32 %v813, %v3351
      %3353 = vmatmul.f32.gmra.mxu0 %v3352
      %v3354 = vpop.f32.mrf.mxu0
      %v3355 = vadd.f32 %v3249, %v3354
      %v3356 = vand.u32 %v814, 4294901760
      %v3357 = vsub.f32 %v814, %v3356
      %3358 = vmatmul.f32.gmra.mxu0 %v3357
      %v3359 = vpop.f32.mrf.mxu0
      %v3360 = vadd.f32 %v3253, %v3359
      %v3361 = vand.u32 %v815, 4294901760
      %v3362 = vsub.f32 %v815, %v3361
      %3363 = vmatmul.f32.gmra.mxu0 %v3362
      %v3364 = vpop.f32.mrf.mxu0
      %v3365 = vadd.f32 %v3257, %v3364
      %v3366 = vand.u32 %v816, 4294901760
      %v3367 = vsub.f32 %v816, %v3366
      %3368 = vmatmul.f32.gmra.mxu0 %v3367
      %v3369 = vpop.f32.mrf.mxu0
      %v3370 = vadd.f32 %v3261, %v3369
      %3371 = vdwg.mxu0
      %v3372 = vand.u32 %v832, 4294901760
      %3373 = vmatpush.msra.mxu0 %v3372
      %v3374 = vand.u32 %v831, 4294901760
      %3375 = vmatpush.msra.mxu0 %v3374
      %v3376 = vand.u32 %v830, 4294901760
      %3377 = vmatpush.msra.mxu0 %v3376
      %v3378 = vand.u32 %v829, 4294901760
      %3379 = vmatpush.msra.mxu0 %v3378
      %v3380 = vand.u32 %v828, 4294901760
      %3381 = vmatpush.msra.mxu0 %v3380
      %v3382 = vand.u32 %v827, 4294901760
      %3383 = vmatpush.msra.mxu0 %v3382
      %v3384 = vand.u32 %v826, 4294901760
      %3385 = vmatpush.msra.mxu0 %v3384
      %v3386 = vand.u32 %v825, 4294901760
      %3387 = vmatpush.msra.mxu0 %v3386
      %v3388 = vand.u32 %v824, 4294901760
      %3389 = vmatpush.msra.mxu0 %v3388
      %v3390 = vand.u32 %v823, 4294901760
      %3391 = vmatpush.msra.mxu0 %v3390
      %v3392 = vand.u32 %v822, 4294901760
      %3393 = vmatpush.msra.mxu0 %v3392
      %v3394 = vand.u32 %v821, 4294901760
      %3395 = vmatpush.msra.mxu0 %v3394
      %v3396 = vand.u32 %v820, 4294901760
      %3397 = vmatpush.msra.mxu0 %v3396
      %v3398 = vand.u32 %v819, 4294901760
      %3399 = vmatpush.msra.mxu0 %v3398
      %v3400 = vand.u32 %v818, 4294901760
      %3401 = vmatpush.msra.mxu0 %v3400
      %v3402 = vand.u32 %v817, 4294901760
      %3403 = vmatpush.msra.mxu0 %v3402
      %v3404 = vand.u32 %v805, 4294901760
      %v3405 = vsub.f32 %v805, %v3404
      %v3406 = vand.u32 %v3405, 4294901760
      %3407 = vmatmul.f32.gmra.mxu0 %v3406
      %v3408 = vpop.f32.mrf.mxu0
      %v3409 = vadd.f32 %v3315, %v3408
      %v3410 = vand.u32 %v806, 4294901760
      %v3411 = vsub.f32 %v806, %v3410
      %v3412 = vand.u32 %v3411, 4294901760
      %3413 = vmatmul.f32.gmra.mxu0 %v3412
      %v3414 = vpop.f32.mrf.mxu0
      %v3415 = vadd.f32 %v3320, %v3414
      %v3416 = vand.u32 %v807, 4294901760
      %v3417 = vsub.f32 %v807, %v3416
      %v3418 = vand.u32 %v3417, 4294901760
      %3419 = vmatmul.f32.gmra.mxu0 %v3418
      %v3420 = vpop.f32.mrf.mxu0
      %v3421 = vadd.f32 %v3325, %v3420
      %v3422 = vand.u32 %v808, 4294901760
      %v3423 = vsub.f32 %v808, %v3422
      %v3424 = vand.u32 %v3423, 4294901760
      %3425 = vmatmul.f32.gmra.mxu0 %v3424
      %v3426 = vpop.f32.mrf.mxu0
      %v3427 = vadd.f32 %v3330, %v3426
      %v3428 = vand.u32 %v809, 4294901760
      %v3429 = vsub.f32 %v809, %v3428
      %v3430 = vand.u32 %v3429, 4294901760
      %3431 = vmatmul.f32.gmra.mxu0 %v3430
      %v3432 = vpop.f32.mrf.mxu0
      %v3433 = vadd.f32 %v3335, %v3432
      %v3434 = vand.u32 %v810, 4294901760
      %v3435 = vsub.f32 %v810, %v3434
      %v3436 = vand.u32 %v3435, 4294901760
      %3437 = vmatmul.f32.gmra.mxu0 %v3436
      %v3438 = vpop.f32.mrf.mxu0
      %v3439 = vadd.f32 %v3340, %v3438
      %v3440 = vand.u32 %v811, 4294901760
      %v3441 = vsub.f32 %v811, %v3440
      %v3442 = vand.u32 %v3441, 4294901760
      %3443 = vmatmul.f32.gmra.mxu0 %v3442
      %v3444 = vpop.f32.mrf.mxu0
      %v3445 = vadd.f32 %v3345, %v3444
      %v3446 = vand.u32 %v812, 4294901760
      %v3447 = vsub.f32 %v812, %v3446
      %v3448 = vand.u32 %v3447, 4294901760
      %3449 = vmatmul.f32.gmra.mxu0 %v3448
      %v3450 = vpop.f32.mrf.mxu0
      %v3451 = vadd.f32 %v3350, %v3450
      %v3452 = vand.u32 %v813, 4294901760
      %v3453 = vsub.f32 %v813, %v3452
      %v3454 = vand.u32 %v3453, 4294901760
      %3455 = vmatmul.f32.gmra.mxu0 %v3454
      %v3456 = vpop.f32.mrf.mxu0
      %v3457 = vadd.f32 %v3355, %v3456
      %v3458 = vand.u32 %v814, 4294901760
      %v3459 = vsub.f32 %v814, %v3458
      %v3460 = vand.u32 %v3459, 4294901760
      %3461 = vmatmul.f32.gmra.mxu0 %v3460
      %v3462 = vpop.f32.mrf.mxu0
      %v3463 = vadd.f32 %v3360, %v3462
      %v3464 = vand.u32 %v815, 4294901760
      %v3465 = vsub.f32 %v815, %v3464
      %v3466 = vand.u32 %v3465, 4294901760
      %3467 = vmatmul.f32.gmra.mxu0 %v3466
      %v3468 = vpop.f32.mrf.mxu0
      %v3469 = vadd.f32 %v3365, %v3468
      %v3470 = vand.u32 %v816, 4294901760
      %v3471 = vsub.f32 %v816, %v3470
      %v3472 = vand.u32 %v3471, 4294901760
      %3473 = vmatmul.f32.gmra.mxu0 %v3472
      %v3474 = vpop.f32.mrf.mxu0
      %v3475 = vadd.f32 %v3370, %v3474
      %3476 = vdwg.mxu0
      %v3477 = vand.u32 %v832, 4294901760
      %v3478 = vsub.f32 %v832, %v3477
      %v3479 = vand.u32 %v3478, 4294901760
      %3480 = vmatpush.msra.mxu0 %v3479
      %v3481 = vand.u32 %v831, 4294901760
      %v3482 = vsub.f32 %v831, %v3481
      %v3483 = vand.u32 %v3482, 4294901760
      %3484 = vmatpush.msra.mxu0 %v3483
      %v3485 = vand.u32 %v830, 4294901760
      %v3486 = vsub.f32 %v830, %v3485
      %v3487 = vand.u32 %v3486, 4294901760
      %3488 = vmatpush.msra.mxu0 %v3487
      %v3489 = vand.u32 %v829, 4294901760
      %v3490 = vsub.f32 %v829, %v3489
      %v3491 = vand.u32 %v3490, 4294901760
      %3492 = vmatpush.msra.mxu0 %v3491
      %v3493 = vand.u32 %v828, 4294901760
      %v3494 = vsub.f32 %v828, %v3493
      %v3495 = vand.u32 %v3494, 4294901760
      %3496 = vmatpush.msra.mxu0 %v3495
      %v3497 = vand.u32 %v827, 4294901760
      %v3498 = vsub.f32 %v827, %v3497
      %v3499 = vand.u32 %v3498, 4294901760
      %3500 = vmatpush.msra.mxu0 %v3499
      %v3501 = vand.u32 %v826, 4294901760
      %v3502 = vsub.f32 %v826, %v3501
      %v3503 = vand.u32 %v3502, 4294901760
      %3504 = vmatpush.msra.mxu0 %v3503
      %v3505 = vand.u32 %v825, 4294901760
      %v3506 = vsub.f32 %v825, %v3505
      %v3507 = vand.u32 %v3506, 4294901760
      %3508 = vmatpush.msra.mxu0 %v3507
      %v3509 = vand.u32 %v824, 4294901760
      %v3510 = vsub.f32 %v824, %v3509
      %v3511 = vand.u32 %v3510, 4294901760
      %3512 = vmatpush.msra.mxu0 %v3511
      %v3513 = vand.u32 %v823, 4294901760
      %v3514 = vsub.f32 %v823, %v3513
      %v3515 = vand.u32 %v3514, 4294901760
      %3516 = vmatpush.msra.mxu0 %v3515
      %v3517 = vand.u32 %v822, 4294901760
      %v3518 = vsub.f32 %v822, %v3517
      %v3519 = vand.u32 %v3518, 4294901760
      %3520 = vmatpush.msra.mxu0 %v3519
      %v3521 = vand.u32 %v821, 4294901760
      %v3522 = vsub.f32 %v821, %v3521
      %v3523 = vand.u32 %v3522, 4294901760
      %3524 = vmatpush.msra.mxu0 %v3523
      %v3525 = vand.u32 %v820, 4294901760
      %v3526 = vsub.f32 %v820, %v3525
      %v3527 = vand.u32 %v3526, 4294901760
      %3528 = vmatpush.msra.mxu0 %v3527
      %v3529 = vand.u32 %v819, 4294901760
      %v3530 = vsub.f32 %v819, %v3529
      %v3531 = vand.u32 %v3530, 4294901760
      %3532 = vmatpush.msra.mxu0 %v3531
      %v3533 = vand.u32 %v818, 4294901760
      %v3534 = vsub.f32 %v818, %v3533
      %v3535 = vand.u32 %v3534, 4294901760
      %3536 = vmatpush.msra.mxu0 %v3535
      %v3537 = vand.u32 %v817, 4294901760
      %v3538 = vsub.f32 %v817, %v3537
      %v3539 = vand.u32 %v3538, 4294901760
      %3540 = vmatpush.msra.mxu0 %v3539
      %v3541 = vand.u32 %v805, 4294901760
      %3542 = vmatmul.f32.gmra.mxu0 %v3541
      %v3543 = vpop.f32.mrf.mxu0
      %v3544 = vadd.f32 %v3409, %v3543
      %v3545 = vand.u32 %v806, 4294901760
      %3546 = vmatmul.f32.gmra.mxu0 %v3545
      %v3547 = vpop.f32.mrf.mxu0
      %v3548 = vadd.f32 %v3415, %v3547
      %v3549 = vand.u32 %v807, 4294901760
      %3550 = vmatmul.f32.gmra.mxu0 %v3549
      %v3551 = vpop.f32.mrf.mxu0
      %v3552 = vadd.f32 %v3421, %v3551
      %v3553 = vand.u32 %v808, 4294901760
      %3554 = vmatmul.f32.gmra.mxu0 %v3553
      %v3555 = vpop.f32.mrf.mxu0
      %v3556 = vadd.f32 %v3427, %v3555
      %v3557 = vand.u32 %v809, 4294901760
      %3558 = vmatmul.f32.gmra.mxu0 %v3557
      %v3559 = vpop.f32.mrf.mxu0
      %v3560 = vadd.f32 %v3433, %v3559
      %v3561 = vand.u32 %v810, 4294901760
      %3562 = vmatmul.f32.gmra.mxu0 %v3561
      %v3563 = vpop.f32.mrf.mxu0
      %v3564 = vadd.f32 %v3439, %v3563
      %v3565 = vand.u32 %v811, 4294901760
      %3566 = vmatmul.f32.gmra.mxu0 %v3565
      %v3567 = vpop.f32.mrf.mxu0
      %v3568 = vadd.f32 %v3445, %v3567
      %v3569 = vand.u32 %v812, 4294901760
      %3570 = vmatmul.f32.gmra.mxu0 %v3569
      %v3571 = vpop.f32.mrf.mxu0
      %v3572 = vadd.f32 %v3451, %v3571
      %v3573 = vand.u32 %v813, 4294901760
      %3574 = vmatmul.f32.gmra.mxu0 %v3573
      %v3575 = vpop.f32.mrf.mxu0
      %v3576 = vadd.f32 %v3457, %v3575
      %v3577 = vand.u32 %v814, 4294901760
      %3578 = vmatmul.f32.gmra.mxu0 %v3577
      %v3579 = vpop.f32.mrf.mxu0
      %v3580 = vadd.f32 %v3463, %v3579
      %v3581 = vand.u32 %v815, 4294901760
      %3582 = vmatmul.f32.gmra.mxu0 %v3581
      %v3583 = vpop.f32.mrf.mxu0
      %v3584 = vadd.f32 %v3469, %v3583
      %v3585 = vand.u32 %v816, 4294901760
      %3586 = vmatmul.f32.gmra.mxu0 %v3585
      %v3587 = vpop.f32.mrf.mxu0
      %v3588 = vadd.f32 %v3475, %v3587
      %3589 = vdwg.mxu0
      %v3590 = vand.u32 %v832, 4294901760
      %3591 = vmatpush.msra.mxu0 %v3590
      %v3592 = vand.u32 %v831, 4294901760
      %3593 = vmatpush.msra.mxu0 %v3592
      %v3594 = vand.u32 %v830, 4294901760
      %3595 = vmatpush.msra.mxu0 %v3594
      %v3596 = vand.u32 %v829, 4294901760
      %3597 = vmatpush.msra.mxu0 %v3596
      %v3598 = vand.u32 %v828, 4294901760
      %3599 = vmatpush.msra.mxu0 %v3598
      %v3600 = vand.u32 %v827, 4294901760
      %3601 = vmatpush.msra.mxu0 %v3600
      %v3602 = vand.u32 %v826, 4294901760
      %3603 = vmatpush.msra.mxu0 %v3602
      %v3604 = vand.u32 %v825, 4294901760
      %3605 = vmatpush.msra.mxu0 %v3604
      %v3606 = vand.u32 %v824, 4294901760
      %3607 = vmatpush.msra.mxu0 %v3606
      %v3608 = vand.u32 %v823, 4294901760
      %3609 = vmatpush.msra.mxu0 %v3608
      %v3610 = vand.u32 %v822, 4294901760
      %3611 = vmatpush.msra.mxu0 %v3610
      %v3612 = vand.u32 %v821, 4294901760
      %3613 = vmatpush.msra.mxu0 %v3612
      %v3614 = vand.u32 %v820, 4294901760
      %3615 = vmatpush.msra.mxu0 %v3614
      %v3616 = vand.u32 %v819, 4294901760
      %3617 = vmatpush.msra.mxu0 %v3616
      %v3618 = vand.u32 %v818, 4294901760
      %3619 = vmatpush.msra.mxu0 %v3618
      %v3620 = vand.u32 %v817, 4294901760
      %3621 = vmatpush.msra.mxu0 %v3620
      %v3622 = vand.u32 %v805, 4294901760
      %3623 = vmatmul.f32.gmra.mxu0 %v3622
      %v3624 = vpop.f32.mrf.mxu0
      %v3625 = vadd.f32 %v3544, %v3624
      %v3626 = vand.u32 %v806, 4294901760
      %3627 = vmatmul.f32.gmra.mxu0 %v3626
      %v3628 = vpop.f32.mrf.mxu0
      %v3629 = vadd.f32 %v3548, %v3628
      %v3630 = vand.u32 %v807, 4294901760
      %3631 = vmatmul.f32.gmra.mxu0 %v3630
      %v3632 = vpop.f32.mrf.mxu0
      %v3633 = vadd.f32 %v3552, %v3632
      %v3634 = vand.u32 %v808, 4294901760
      %3635 = vmatmul.f32.gmra.mxu0 %v3634
      %v3636 = vpop.f32.mrf.mxu0
      %v3637 = vadd.f32 %v3556, %v3636
      %v3638 = vand.u32 %v809, 4294901760
      %3639 = vmatmul.f32.gmra.mxu0 %v3638
      %v3640 = vpop.f32.mrf.mxu0
      %v3641 = vadd.f32 %v3560, %v3640
      %v3642 = vand.u32 %v810, 4294901760
      %3643 = vmatmul.f32.gmra.mxu0 %v3642
      %v3644 = vpop.f32.mrf.mxu0
      %v3645 = vadd.f32 %v3564, %v3644
      %v3646 = vand.u32 %v811, 4294901760
      %3647 = vmatmul.f32.gmra.mxu0 %v3646
      %v3648 = vpop.f32.mrf.mxu0
      %v3649 = vadd.f32 %v3568, %v3648
      %v3650 = vand.u32 %v812, 4294901760
      %3651 = vmatmul.f32.gmra.mxu0 %v3650
      %v3652 = vpop.f32.mrf.mxu0
      %v3653 = vadd.f32 %v3572, %v3652
      %v3654 = vand.u32 %v813, 4294901760
      %3655 = vmatmul.f32.gmra.mxu0 %v3654
      %v3656 = vpop.f32.mrf.mxu0
      %v3657 = vadd.f32 %v3576, %v3656
      %v3658 = vand.u32 %v814, 4294901760
      %3659 = vmatmul.f32.gmra.mxu0 %v3658
      %v3660 = vpop.f32.mrf.mxu0
      %v3661 = vadd.f32 %v3580, %v3660
      %v3662 = vand.u32 %v815, 4294901760
      %3663 = vmatmul.f32.gmra.mxu0 %v3662
      %v3664 = vpop.f32.mrf.mxu0
      %v3665 = vadd.f32 %v3584, %v3664
      %v3666 = vand.u32 %v816, 4294901760
      %3667 = vmatmul.f32.gmra.mxu0 %v3666
      %v3668 = vpop.f32.mrf.mxu0
      %v3669 = vadd.f32 %v3588, %v3668
      %3670 = vdwg.mxu0
      %s3671 = scalar_lea.vmem %s259, 288
      %v3672 = vld [vmem:[%s3671] sm:$0xff]
      %v3673 = vld [vmem:[%s3671 + $0x8] sm:$0xff]
      %v3674 = vld [vmem:[%s3671 + $0x10] sm:$0xff]
      %v3675 = vld [vmem:[%s3671 + $0x18] sm:$0xff]
      %v3676 = vld [vmem:[%s3671 + $0x20] sm:$0xff]
      %v3677 = vld [vmem:[%s3671 + $0x28] sm:$0xff]
      %v3678 = vld [vmem:[%s3671 + $0x30] sm:$0xff]
      %v3679 = vld [vmem:[%s3671 + $0x38] sm:$0xff]
      %v3680 = vld [vmem:[%s3671 + $0x40] sm:$0xff]
      %v3681 = vld [vmem:[%s3671 + $0x48] sm:$0xff]
      %v3682 = vld [vmem:[%s3671 + $0x50] sm:$0xff]
      %v3683 = vld [vmem:[%s3671 + $0x58] sm:$0xff]
      %v3684 = vadd.f32 %v3672, %v3625
      %v3685 = vadd.f32 %v3673, %v3629
      %v3686 = vadd.f32 %v3674, %v3633
      %v3687 = vadd.f32 %v3675, %v3637
      %v3688 = vadd.f32 %v3676, %v3641
      %v3689 = vadd.f32 %v3677, %v3645
      %v3690 = vadd.f32 %v3678, %v3649
      %v3691 = vadd.f32 %v3679, %v3653
      %v3692 = vadd.f32 %v3680, %v3657
      %v3693 = vadd.f32 %v3681, %v3661
      %v3694 = vadd.f32 %v3682, %v3665
      %v3695 = vadd.f32 %v3683, %v3669
      %3696 = vst [vmem:[%s3671] sm:$0xff] %v3684
      %3697 = vst [vmem:[%s3671 + $0x8] sm:$0xff] %v3685
      %3698 = vst [vmem:[%s3671 + $0x10] sm:$0xff] %v3686
      %3699 = vst [vmem:[%s3671 + $0x18] sm:$0xff] %v3687
      %3700 = vst [vmem:[%s3671 + $0x20] sm:$0xff] %v3688
      %3701 = vst [vmem:[%s3671 + $0x28] sm:$0xff] %v3689
      %3702 = vst [vmem:[%s3671 + $0x30] sm:$0xff] %v3690
      %3703 = vst [vmem:[%s3671 + $0x38] sm:$0xff] %v3691
      %3704 = vst [vmem:[%s3671 + $0x40] sm:$0xff] %v3692
      %3705 = vst [vmem:[%s3671 + $0x48] sm:$0xff] %v3693
      %3706 = vst [vmem:[%s3671 + $0x50] sm:$0xff] %v3694
      %3707 = vst [vmem:[%s3671 + $0x58] sm:$0xff] %v3695
      %v3708 = vand.u32 %v832, 4294901760
      %3709 = vmatpush.msra.mxu0 %v3708
      %v3710 = vand.u32 %v831, 4294901760
      %3711 = vmatpush.msra.mxu0 %v3710
      %v3712 = vand.u32 %v830, 4294901760
      %3713 = vmatpush.msra.mxu0 %v3712
      %v3714 = vand.u32 %v829, 4294901760
      %3715 = vmatpush.msra.mxu0 %v3714
      %v3716 = vand.u32 %v828, 4294901760
      %3717 = vmatpush.msra.mxu0 %v3716
      %v3718 = vand.u32 %v827, 4294901760
      %3719 = vmatpush.msra.mxu0 %v3718
      %v3720 = vand.u32 %v826, 4294901760
      %3721 = vmatpush.msra.mxu0 %v3720
      %v3722 = vand.u32 %v825, 4294901760
      %3723 = vmatpush.msra.mxu0 %v3722
      %v3724 = vand.u32 %v824, 4294901760
      %3725 = vmatpush.msra.mxu0 %v3724
      %v3726 = vand.u32 %v823, 4294901760
      %3727 = vmatpush.msra.mxu0 %v3726
      %v3728 = vand.u32 %v822, 4294901760
      %3729 = vmatpush.msra.mxu0 %v3728
      %v3730 = vand.u32 %v821, 4294901760
      %3731 = vmatpush.msra.mxu0 %v3730
      %v3732 = vand.u32 %v820, 4294901760
      %3733 = vmatpush.msra.mxu0 %v3732
      %v3734 = vand.u32 %v819, 4294901760
      %3735 = vmatpush.msra.mxu0 %v3734
      %v3736 = vand.u32 %v818, 4294901760
      %3737 = vmatpush.msra.mxu0 %v3736
      %v3738 = vand.u32 %v817, 4294901760
      %3739 = vmatpush.msra.mxu0 %v3738
      %v3740 = vand.u32 %v793, 4294901760
      %v3741 = vsub.f32 %v793, %v3740
      %v3742 = vand.u32 %v3741, 4294901760
      %v3743 = vsub.f32 %v3741, %v3742
      %v3744 = vand.u32 %v3743, 4294901760
      %3745 = vmatmul.f32.gmra.mxu0 %v3744
      %v3746 = vpop.f32.mrf.mxu0
      %v3747 = vadd.f32 0.0, %v3746
      %v3748 = vand.u32 %v794, 4294901760
      %v3749 = vsub.f32 %v794, %v3748
      %v3750 = vand.u32 %v3749, 4294901760
      %v3751 = vsub.f32 %v3749, %v3750
      %v3752 = vand.u32 %v3751, 4294901760
      %3753 = vmatmul.f32.gmra.mxu0 %v3752
      %v3754 = vpop.f32.mrf.mxu0
      %v3755 = vadd.f32 0.0, %v3754
      %v3756 = vand.u32 %v795, 4294901760
      %v3757 = vsub.f32 %v795, %v3756
      %v3758 = vand.u32 %v3757, 4294901760
      %v3759 = vsub.f32 %v3757, %v3758
      %v3760 = vand.u32 %v3759, 4294901760
      %3761 = vmatmul.f32.gmra.mxu0 %v3760
      %v3762 = vpop.f32.mrf.mxu0
      %v3763 = vadd.f32 0.0, %v3762
      %v3764 = vand.u32 %v796, 4294901760
      %v3765 = vsub.f32 %v796, %v3764
      %v3766 = vand.u32 %v3765, 4294901760
      %v3767 = vsub.f32 %v3765, %v3766
      %v3768 = vand.u32 %v3767, 4294901760
      %3769 = vmatmul.f32.gmra.mxu0 %v3768
      %v3770 = vpop.f32.mrf.mxu0
      %v3771 = vadd.f32 0.0, %v3770
      %v3772 = vand.u32 %v797, 4294901760
      %v3773 = vsub.f32 %v797, %v3772
      %v3774 = vand.u32 %v3773, 4294901760
      %v3775 = vsub.f32 %v3773, %v3774
      %v3776 = vand.u32 %v3775, 4294901760
      %3777 = vmatmul.f32.gmra.mxu0 %v3776
      %v3778 = vpop.f32.mrf.mxu0
      %v3779 = vadd.f32 0.0, %v3778
      %v3780 = vand.u32 %v798, 4294901760
      %v3781 = vsub.f32 %v798, %v3780
      %v3782 = vand.u32 %v3781, 4294901760
      %v3783 = vsub.f32 %v3781, %v3782
      %v3784 = vand.u32 %v3783, 4294901760
      %3785 = vmatmul.f32.gmra.mxu0 %v3784
      %v3786 = vpop.f32.mrf.mxu0
      %v3787 = vadd.f32 0.0, %v3786
      %v3788 = vand.u32 %v799, 4294901760
      %v3789 = vsub.f32 %v799, %v3788
      %v3790 = vand.u32 %v3789, 4294901760
      %v3791 = vsub.f32 %v3789, %v3790
      %v3792 = vand.u32 %v3791, 4294901760
      %3793 = vmatmul.f32.gmra.mxu0 %v3792
      %v3794 = vpop.f32.mrf.mxu0
      %v3795 = vadd.f32 0.0, %v3794
      %v3796 = vand.u32 %v800, 4294901760
      %v3797 = vsub.f32 %v800, %v3796
      %v3798 = vand.u32 %v3797, 4294901760
      %v3799 = vsub.f32 %v3797, %v3798
      %v3800 = vand.u32 %v3799, 4294901760
      %3801 = vmatmul.f32.gmra.mxu0 %v3800
      %v3802 = vpop.f32.mrf.mxu0
      %v3803 = vadd.f32 0.0, %v3802
      %v3804 = vand.u32 %v801, 4294901760
      %v3805 = vsub.f32 %v801, %v3804
      %v3806 = vand.u32 %v3805, 4294901760
      %v3807 = vsub.f32 %v3805, %v3806
      %v3808 = vand.u32 %v3807, 4294901760
      %3809 = vmatmul.f32.gmra.mxu0 %v3808
      %v3810 = vpop.f32.mrf.mxu0
      %v3811 = vadd.f32 0.0, %v3810
      %v3812 = vand.u32 %v802, 4294901760
      %v3813 = vsub.f32 %v802, %v3812
      %v3814 = vand.u32 %v3813, 4294901760
      %v3815 = vsub.f32 %v3813, %v3814
      %v3816 = vand.u32 %v3815, 4294901760
      %3817 = vmatmul.f32.gmra.mxu0 %v3816
      %v3818 = vpop.f32.mrf.mxu0
      %v3819 = vadd.f32 0.0, %v3818
      %v3820 = vand.u32 %v803, 4294901760
      %v3821 = vsub.f32 %v803, %v3820
      %v3822 = vand.u32 %v3821, 4294901760
      %v3823 = vsub.f32 %v3821, %v3822
      %v3824 = vand.u32 %v3823, 4294901760
      %3825 = vmatmul.f32.gmra.mxu0 %v3824
      %v3826 = vpop.f32.mrf.mxu0
      %v3827 = vadd.f32 0.0, %v3826
      %v3828 = vand.u32 %v804, 4294901760
      %v3829 = vsub.f32 %v804, %v3828
      %v3830 = vand.u32 %v3829, 4294901760
      %v3831 = vsub.f32 %v3829, %v3830
      %v3832 = vand.u32 %v3831, 4294901760
      %3833 = vmatmul.f32.gmra.mxu0 %v3832
      %v3834 = vpop.f32.mrf.mxu0
      %v3835 = vadd.f32 0.0, %v3834
      %3836 = vdwg.mxu0
      %v3837 = vand.u32 %v832, 4294901760
      %v3838 = vsub.f32 %v832, %v3837
      %v3839 = vand.u32 %v3838, 4294901760
      %v3840 = vsub.f32 %v3838, %v3839
      %v3841 = vand.u32 %v3840, 4294901760
      %3842 = vmatpush.msra.mxu0 %v3841
      %v3843 = vand.u32 %v831, 4294901760
      %v3844 = vsub.f32 %v831, %v3843
      %v3845 = vand.u32 %v3844, 4294901760
      %v3846 = vsub.f32 %v3844, %v3845
      %v3847 = vand.u32 %v3846, 4294901760
      %3848 = vmatpush.msra.mxu0 %v3847
      %v3849 = vand.u32 %v830, 4294901760
      %v3850 = vsub.f32 %v830, %v3849
      %v3851 = vand.u32 %v3850, 4294901760
      %v3852 = vsub.f32 %v3850, %v3851
      %v3853 = vand.u32 %v3852, 4294901760
      %3854 = vmatpush.msra.mxu0 %v3853
      %v3855 = vand.u32 %v829, 4294901760
      %v3856 = vsub.f32 %v829, %v3855
      %v3857 = vand.u32 %v3856, 4294901760
      %v3858 = vsub.f32 %v3856, %v3857
      %v3859 = vand.u32 %v3858, 4294901760
      %3860 = vmatpush.msra.mxu0 %v3859
      %v3861 = vand.u32 %v828, 4294901760
      %v3862 = vsub.f32 %v828, %v3861
      %v3863 = vand.u32 %v3862, 4294901760
      %v3864 = vsub.f32 %v3862, %v3863
      %v3865 = vand.u32 %v3864, 4294901760
      %3866 = vmatpush.msra.mxu0 %v3865
      %v3867 = vand.u32 %v827, 4294901760
      %v3868 = vsub.f32 %v827, %v3867
      %v3869 = vand.u32 %v3868, 4294901760
      %v3870 = vsub.f32 %v3868, %v3869
      %v3871 = vand.u32 %v3870, 4294901760
      %3872 = vmatpush.msra.mxu0 %v3871
      %v3873 = vand.u32 %v826, 4294901760
      %v3874 = vsub.f32 %v826, %v3873
      %v3875 = vand.u32 %v3874, 4294901760
      %v3876 = vsub.f32 %v3874, %v3875
      %v3877 = vand.u32 %v3876, 4294901760
      %3878 = vmatpush.msra.mxu0 %v3877
      %v3879 = vand.u32 %v825, 4294901760
      %v3880 = vsub.f32 %v825, %v3879
      %v3881 = vand.u32 %v3880, 4294901760
      %v3882 = vsub.f32 %v3880, %v3881
      %v3883 = vand.u32 %v3882, 4294901760
      %3884 = vmatpush.msra.mxu0 %v3883
      %v3885 = vand.u32 %v824, 4294901760
      %v3886 = vsub.f32 %v824, %v3885
      %v3887 = vand.u32 %v3886, 4294901760
      %v3888 = vsub.f32 %v3886, %v3887
      %v3889 = vand.u32 %v3888, 4294901760
      %3890 = vmatpush.msra.mxu0 %v3889
      %v3891 = vand.u32 %v823, 4294901760
      %v3892 = vsub.f32 %v823, %v3891
      %v3893 = vand.u32 %v3892, 4294901760
      %v3894 = vsub.f32 %v3892, %v3893
      %v3895 = vand.u32 %v3894, 4294901760
      %3896 = vmatpush.msra.mxu0 %v3895
      %v3897 = vand.u32 %v822, 4294901760
      %v3898 = vsub.f32 %v822, %v3897
      %v3899 = vand.u32 %v3898, 4294901760
      %v3900 = vsub.f32 %v3898, %v3899
      %v3901 = vand.u32 %v3900, 4294901760
      %3902 = vmatpush.msra.mxu0 %v3901
      %v3903 = vand.u32 %v821, 4294901760
      %v3904 = vsub.f32 %v821, %v3903
      %v3905 = vand.u32 %v3904, 4294901760
      %v3906 = vsub.f32 %v3904, %v3905
      %v3907 = vand.u32 %v3906, 4294901760
      %3908 = vmatpush.msra.mxu0 %v3907
      %v3909 = vand.u32 %v820, 4294901760
      %v3910 = vsub.f32 %v820, %v3909
      %v3911 = vand.u32 %v3910, 4294901760
      %v3912 = vsub.f32 %v3910, %v3911
      %v3913 = vand.u32 %v3912, 4294901760
      %3914 = vmatpush.msra.mxu0 %v3913
      %v3915 = vand.u32 %v819, 4294901760
      %v3916 = vsub.f32 %v819, %v3915
      %v3917 = vand.u32 %v3916, 4294901760
      %v3918 = vsub.f32 %v3916, %v3917
      %v3919 = vand.u32 %v3918, 4294901760
      %3920 = vmatpush.msra.mxu0 %v3919
      %v3921 = vand.u32 %v818, 4294901760
      %v3922 = vsub.f32 %v818, %v3921
      %v3923 = vand.u32 %v3922, 4294901760
      %v3924 = vsub.f32 %v3922, %v3923
      %v3925 = vand.u32 %v3924, 4294901760
      %3926 = vmatpush.msra.mxu0 %v3925
      %v3927 = vand.u32 %v817, 4294901760
      %v3928 = vsub.f32 %v817, %v3927
      %v3929 = vand.u32 %v3928, 4294901760
      %v3930 = vsub.f32 %v3928, %v3929
      %v3931 = vand.u32 %v3930, 4294901760
      %3932 = vmatpush.msra.mxu0 %v3931
      %v3933 = vand.u32 %v793, 4294901760
      %3934 = vmatmul.f32.gmra.mxu0 %v3933
      %v3935 = vpop.f32.mrf.mxu0
      %v3936 = vadd.f32 %v3747, %v3935
      %v3937 = vand.u32 %v794, 4294901760
      %3938 = vmatmul.f32.gmra.mxu0 %v3937
      %v3939 = vpop.f32.mrf.mxu0
      %v3940 = vadd.f32 %v3755, %v3939
      %v3941 = vand.u32 %v795, 4294901760
      %3942 = vmatmul.f32.gmra.mxu0 %v3941
      %v3943 = vpop.f32.mrf.mxu0
      %v3944 = vadd.f32 %v3763, %v3943
      %v3945 = vand.u32 %v796, 4294901760
      %3946 = vmatmul.f32.gmra.mxu0 %v3945
      %v3947 = vpop.f32.mrf.mxu0
      %v3948 = vadd.f32 %v3771, %v3947
      %v3949 = vand.u32 %v797, 4294901760
      %3950 = vmatmul.f32.gmra.mxu0 %v3949
      %v3951 = vpop.f32.mrf.mxu0
      %v3952 = vadd.f32 %v3779, %v3951
      %v3953 = vand.u32 %v798, 4294901760
      %3954 = vmatmul.f32.gmra.mxu0 %v3953
      %v3955 = vpop.f32.mrf.mxu0
      %v3956 = vadd.f32 %v3787, %v3955
      %v3957 = vand.u32 %v799, 4294901760
      %3958 = vmatmul.f32.gmra.mxu0 %v3957
      %v3959 = vpop.f32.mrf.mxu0
      %v3960 = vadd.f32 %v3795, %v3959
      %v3961 = vand.u32 %v800, 4294901760
      %3962 = vmatmul.f32.gmra.mxu0 %v3961
      %v3963 = vpop.f32.mrf.mxu0
      %v3964 = vadd.f32 %v3803, %v3963
      %v3965 = vand.u32 %v801, 4294901760
      %3966 = vmatmul.f32.gmra.mxu0 %v3965
      %v3967 = vpop.f32.mrf.mxu0
      %v3968 = vadd.f32 %v3811, %v3967
      %v3969 = vand.u32 %v802, 4294901760
      %3970 = vmatmul.f32.gmra.mxu0 %v3969
      %v3971 = vpop.f32.mrf.mxu0
      %v3972 = vadd.f32 %v3819, %v3971
      %v3973 = vand.u32 %v803, 4294901760
      %3974 = vmatmul.f32.gmra.mxu0 %v3973
      %v3975 = vpop.f32.mrf.mxu0
      %v3976 = vadd.f32 %v3827, %v3975
      %v3977 = vand.u32 %v804, 4294901760
      %3978 = vmatmul.f32.gmra.mxu0 %v3977
      %v3979 = vpop.f32.mrf.mxu0
      %v3980 = vadd.f32 %v3835, %v3979
      %3981 = vdwg.mxu0
      %v3982 = vand.u32 %v832, 4294901760
      %v3983 = vsub.f32 %v832, %v3982
      %3984 = vmatpush.msra.mxu0 %v3983
      %v3985 = vand.u32 %v831, 4294901760
      %v3986 = vsub.f32 %v831, %v3985
      %3987 = vmatpush.msra.mxu0 %v3986
      %v3988 = vand.u32 %v830, 4294901760
      %v3989 = vsub.f32 %v830, %v3988
      %3990 = vmatpush.msra.mxu0 %v3989
      %v3991 = vand.u32 %v829, 4294901760
      %v3992 = vsub.f32 %v829, %v3991
      %3993 = vmatpush.msra.mxu0 %v3992
      %v3994 = vand.u32 %v828, 4294901760
      %v3995 = vsub.f32 %v828, %v3994
      %3996 = vmatpush.msra.mxu0 %v3995
      %v3997 = vand.u32 %v827, 4294901760
      %v3998 = vsub.f32 %v827, %v3997
      %3999 = vmatpush.msra.mxu0 %v3998
      %v4000 = vand.u32 %v826, 4294901760
      %v4001 = vsub.f32 %v826, %v4000
      %4002 = vmatpush.msra.mxu0 %v4001
      %v4003 = vand.u32 %v825, 4294901760
      %v4004 = vsub.f32 %v825, %v4003
      %4005 = vmatpush.msra.mxu0 %v4004
      %v4006 = vand.u32 %v824, 4294901760
      %v4007 = vsub.f32 %v824, %v4006
      %4008 = vmatpush.msra.mxu0 %v4007
      %v4009 = vand.u32 %v823, 4294901760
      %v4010 = vsub.f32 %v823, %v4009
      %4011 = vmatpush.msra.mxu0 %v4010
      %v4012 = vand.u32 %v822, 4294901760
      %v4013 = vsub.f32 %v822, %v4012
      %4014 = vmatpush.msra.mxu0 %v4013
      %v4015 = vand.u32 %v821, 4294901760
      %v4016 = vsub.f32 %v821, %v4015
      %4017 = vmatpush.msra.mxu0 %v4016
      %v4018 = vand.u32 %v820, 4294901760
      %v4019 = vsub.f32 %v820, %v4018
      %4020 = vmatpush.msra.mxu0 %v4019
      %v4021 = vand.u32 %v819, 4294901760
      %v4022 = vsub.f32 %v819, %v4021
      %4023 = vmatpush.msra.mxu0 %v4022
      %v4024 = vand.u32 %v818, 4294901760
      %v4025 = vsub.f32 %v818, %v4024
      %4026 = vmatpush.msra.mxu0 %v4025
      %v4027 = vand.u32 %v817, 4294901760
      %v4028 = vsub.f32 %v817, %v4027
      %4029 = vmatpush.msra.mxu0 %v4028
      %v4030 = vand.u32 %v793, 4294901760
      %v4031 = vsub.f32 %v793, %v4030
      %4032 = vmatmul.f32.gmra.mxu0 %v4031
      %v4033 = vpop.f32.mrf.mxu0
      %v4034 = vadd.f32 %v3936, %v4033
      %v4035 = vand.u32 %v794, 4294901760
      %v4036 = vsub.f32 %v794, %v4035
      %4037 = vmatmul.f32.gmra.mxu0 %v4036
      %v4038 = vpop.f32.mrf.mxu0
      %v4039 = vadd.f32 %v3940, %v4038
      %v4040 = vand.u32 %v795, 4294901760
      %v4041 = vsub.f32 %v795, %v4040
      %4042 = vmatmul.f32.gmra.mxu0 %v4041
      %v4043 = vpop.f32.mrf.mxu0
      %v4044 = vadd.f32 %v3944, %v4043
      %v4045 = vand.u32 %v796, 4294901760
      %v4046 = vsub.f32 %v796, %v4045
      %4047 = vmatmul.f32.gmra.mxu0 %v4046
      %v4048 = vpop.f32.mrf.mxu0
      %v4049 = vadd.f32 %v3948, %v4048
      %v4050 = vand.u32 %v797, 4294901760
      %v4051 = vsub.f32 %v797, %v4050
      %4052 = vmatmul.f32.gmra.mxu0 %v4051
      %v4053 = vpop.f32.mrf.mxu0
      %v4054 = vadd.f32 %v3952, %v4053
      %v4055 = vand.u32 %v798, 4294901760
      %v4056 = vsub.f32 %v798, %v4055
      %4057 = vmatmul.f32.gmra.mxu0 %v4056
      %v4058 = vpop.f32.mrf.mxu0
      %v4059 = vadd.f32 %v3956, %v4058
      %v4060 = vand.u32 %v799, 4294901760
      %v4061 = vsub.f32 %v799, %v4060
      %4062 = vmatmul.f32.gmra.mxu0 %v4061
      %v4063 = vpop.f32.mrf.mxu0
      %v4064 = vadd.f32 %v3960, %v4063
      %v4065 = vand.u32 %v800, 4294901760
      %v4066 = vsub.f32 %v800, %v4065
      %4067 = vmatmul.f32.gmra.mxu0 %v4066
      %v4068 = vpop.f32.mrf.mxu0
      %v4069 = vadd.f32 %v3964, %v4068
      %v4070 = vand.u32 %v801, 4294901760
      %v4071 = vsub.f32 %v801, %v4070
      %4072 = vmatmul.f32.gmra.mxu0 %v4071
      %v4073 = vpop.f32.mrf.mxu0
      %v4074 = vadd.f32 %v3968, %v4073
      %v4075 = vand.u32 %v802, 4294901760
      %v4076 = vsub.f32 %v802, %v4075
      %4077 = vmatmul.f32.gmra.mxu0 %v4076
      %v4078 = vpop.f32.mrf.mxu0
      %v4079 = vadd.f32 %v3972, %v4078
      %v4080 = vand.u32 %v803, 4294901760
      %v4081 = vsub.f32 %v803, %v4080
      %4082 = vmatmul.f32.gmra.mxu0 %v4081
      %v4083 = vpop.f32.mrf.mxu0
      %v4084 = vadd.f32 %v3976, %v4083
      %v4085 = vand.u32 %v804, 4294901760
      %v4086 = vsub.f32 %v804, %v4085
      %4087 = vmatmul.f32.gmra.mxu0 %v4086
      %v4088 = vpop.f32.mrf.mxu0
      %v4089 = vadd.f32 %v3980, %v4088
      %4090 = vdwg.mxu0
      %v4091 = vand.u32 %v832, 4294901760
      %4092 = vmatpush.msra.mxu0 %v4091
      %v4093 = vand.u32 %v831, 4294901760
      %4094 = vmatpush.msra.mxu0 %v4093
      %v4095 = vand.u32 %v830, 4294901760
      %4096 = vmatpush.msra.mxu0 %v4095
      %v4097 = vand.u32 %v829, 4294901760
      %4098 = vmatpush.msra.mxu0 %v4097
      %v4099 = vand.u32 %v828, 4294901760
      %4100 = vmatpush.msra.mxu0 %v4099
      %v4101 = vand.u32 %v827, 4294901760
      %4102 = vmatpush.msra.mxu0 %v4101
      %v4103 = vand.u32 %v826, 4294901760
      %4104 = vmatpush.msra.mxu0 %v4103
      %v4105 = vand.u32 %v825, 4294901760
      %4106 = vmatpush.msra.mxu0 %v4105
      %v4107 = vand.u32 %v824, 4294901760
      %4108 = vmatpush.msra.mxu0 %v4107
      %v4109 = vand.u32 %v823, 4294901760
      %4110 = vmatpush.msra.mxu0 %v4109
      %v4111 = vand.u32 %v822, 4294901760
      %4112 = vmatpush.msra.mxu0 %v4111
      %v4113 = vand.u32 %v821, 4294901760
      %4114 = vmatpush.msra.mxu0 %v4113
      %v4115 = vand.u32 %v820, 4294901760
      %4116 = vmatpush.msra.mxu0 %v4115
      %v4117 = vand.u32 %v819, 4294901760
      %4118 = vmatpush.msra.mxu0 %v4117
      %v4119 = vand.u32 %v818, 4294901760
      %4120 = vmatpush.msra.mxu0 %v4119
      %v4121 = vand.u32 %v817, 4294901760
      %4122 = vmatpush.msra.mxu0 %v4121
      %v4123 = vand.u32 %v793, 4294901760
      %v4124 = vsub.f32 %v793, %v4123
      %v4125 = vand.u32 %v4124, 4294901760
      %4126 = vmatmul.f32.gmra.mxu0 %v4125
      %v4127 = vpop.f32.mrf.mxu0
      %v4128 = vadd.f32 %v4034, %v4127
      %v4129 = vand.u32 %v794, 4294901760
      %v4130 = vsub.f32 %v794, %v4129
      %v4131 = vand.u32 %v4130, 4294901760
      %4132 = vmatmul.f32.gmra.mxu0 %v4131
      %v4133 = vpop.f32.mrf.mxu0
      %v4134 = vadd.f32 %v4039, %v4133
      %v4135 = vand.u32 %v795, 4294901760
      %v4136 = vsub.f32 %v795, %v4135
      %v4137 = vand.u32 %v4136, 4294901760
      %4138 = vmatmul.f32.gmra.mxu0 %v4137
      %v4139 = vpop.f32.mrf.mxu0
      %v4140 = vadd.f32 %v4044, %v4139
      %v4141 = vand.u32 %v796, 4294901760
      %v4142 = vsub.f32 %v796, %v4141
      %v4143 = vand.u32 %v4142, 4294901760
      %4144 = vmatmul.f32.gmra.mxu0 %v4143
      %v4145 = vpop.f32.mrf.mxu0
      %v4146 = vadd.f32 %v4049, %v4145
      %v4147 = vand.u32 %v797, 4294901760
      %v4148 = vsub.f32 %v797, %v4147
      %v4149 = vand.u32 %v4148, 4294901760
      %4150 = vmatmul.f32.gmra.mxu0 %v4149
      %v4151 = vpop.f32.mrf.mxu0
      %v4152 = vadd.f32 %v4054, %v4151
      %v4153 = vand.u32 %v798, 4294901760
      %v4154 = vsub.f32 %v798, %v4153
      %v4155 = vand.u32 %v4154, 4294901760
      %4156 = vmatmul.f32.gmra.mxu0 %v4155
      %v4157 = vpop.f32.mrf.mxu0
      %v4158 = vadd.f32 %v4059, %v4157
      %v4159 = vand.u32 %v799, 4294901760
      %v4160 = vsub.f32 %v799, %v4159
      %v4161 = vand.u32 %v4160, 4294901760
      %4162 = vmatmul.f32.gmra.mxu0 %v4161
      %v4163 = vpop.f32.mrf.mxu0
      %v4164 = vadd.f32 %v4064, %v4163
      %v4165 = vand.u32 %v800, 4294901760
      %v4166 = vsub.f32 %v800, %v4165
      %v4167 = vand.u32 %v4166, 4294901760
      %4168 = vmatmul.f32.gmra.mxu0 %v4167
      %v4169 = vpop.f32.mrf.mxu0
      %v4170 = vadd.f32 %v4069, %v4169
      %v4171 = vand.u32 %v801, 4294901760
      %v4172 = vsub.f32 %v801, %v4171
      %v4173 = vand.u32 %v4172, 4294901760
      %4174 = vmatmul.f32.gmra.mxu0 %v4173
      %v4175 = vpop.f32.mrf.mxu0
      %v4176 = vadd.f32 %v4074, %v4175
      %v4177 = vand.u32 %v802, 4294901760
      %v4178 = vsub.f32 %v802, %v4177
      %v4179 = vand.u32 %v4178, 4294901760
      %4180 = vmatmul.f32.gmra.mxu0 %v4179
      %v4181 = vpop.f32.mrf.mxu0
      %v4182 = vadd.f32 %v4079, %v4181
      %v4183 = vand.u32 %v803, 4294901760
      %v4184 = vsub.f32 %v803, %v4183
      %v4185 = vand.u32 %v4184, 4294901760
      %4186 = vmatmul.f32.gmra.mxu0 %v4185
      %v4187 = vpop.f32.mrf.mxu0
      %v4188 = vadd.f32 %v4084, %v4187
      %v4189 = vand.u32 %v804, 4294901760
      %v4190 = vsub.f32 %v804, %v4189
      %v4191 = vand.u32 %v4190, 4294901760
      %4192 = vmatmul.f32.gmra.mxu0 %v4191
      %v4193 = vpop.f32.mrf.mxu0
      %v4194 = vadd.f32 %v4089, %v4193
      %4195 = vdwg.mxu0
      %v4196 = vand.u32 %v832, 4294901760
      %v4197 = vsub.f32 %v832, %v4196
      %v4198 = vand.u32 %v4197, 4294901760
      %4199 = vmatpush.msra.mxu0 %v4198
      %v4200 = vand.u32 %v831, 4294901760
      %v4201 = vsub.f32 %v831, %v4200
      %v4202 = vand.u32 %v4201, 4294901760
      %4203 = vmatpush.msra.mxu0 %v4202
      %v4204 = vand.u32 %v830, 4294901760
      %v4205 = vsub.f32 %v830, %v4204
      %v4206 = vand.u32 %v4205, 4294901760
      %4207 = vmatpush.msra.mxu0 %v4206
      %v4208 = vand.u32 %v829, 4294901760
      %v4209 = vsub.f32 %v829, %v4208
      %v4210 = vand.u32 %v4209, 4294901760
      %4211 = vmatpush.msra.mxu0 %v4210
      %v4212 = vand.u32 %v828, 4294901760
      %v4213 = vsub.f32 %v828, %v4212
      %v4214 = vand.u32 %v4213, 4294901760
      %4215 = vmatpush.msra.mxu0 %v4214
      %v4216 = vand.u32 %v827, 4294901760
      %v4217 = vsub.f32 %v827, %v4216
      %v4218 = vand.u32 %v4217, 4294901760
      %4219 = vmatpush.msra.mxu0 %v4218
      %v4220 = vand.u32 %v826, 4294901760
      %v4221 = vsub.f32 %v826, %v4220
      %v4222 = vand.u32 %v4221, 4294901760
      %4223 = vmatpush.msra.mxu0 %v4222
      %v4224 = vand.u32 %v825, 4294901760
      %v4225 = vsub.f32 %v825, %v4224
      %v4226 = vand.u32 %v4225, 4294901760
      %4227 = vmatpush.msra.mxu0 %v4226
      %v4228 = vand.u32 %v824, 4294901760
      %v4229 = vsub.f32 %v824, %v4228
      %v4230 = vand.u32 %v4229, 4294901760
      %4231 = vmatpush.msra.mxu0 %v4230
      %v4232 = vand.u32 %v823, 4294901760
      %v4233 = vsub.f32 %v823, %v4232
      %v4234 = vand.u32 %v4233, 4294901760
      %4235 = vmatpush.msra.mxu0 %v4234
      %v4236 = vand.u32 %v822, 4294901760
      %v4237 = vsub.f32 %v822, %v4236
      %v4238 = vand.u32 %v4237, 4294901760
      %4239 = vmatpush.msra.mxu0 %v4238
      %v4240 = vand.u32 %v821, 4294901760
      %v4241 = vsub.f32 %v821, %v4240
      %v4242 = vand.u32 %v4241, 4294901760
      %4243 = vmatpush.msra.mxu0 %v4242
      %v4244 = vand.u32 %v820, 4294901760
      %v4245 = vsub.f32 %v820, %v4244
      %v4246 = vand.u32 %v4245, 4294901760
      %4247 = vmatpush.msra.mxu0 %v4246
      %v4248 = vand.u32 %v819, 4294901760
      %v4249 = vsub.f32 %v819, %v4248
      %v4250 = vand.u32 %v4249, 4294901760
      %4251 = vmatpush.msra.mxu0 %v4250
      %v4252 = vand.u32 %v818, 4294901760
      %v4253 = vsub.f32 %v818, %v4252
      %v4254 = vand.u32 %v4253, 4294901760
      %4255 = vmatpush.msra.mxu0 %v4254
      %v4256 = vand.u32 %v817, 4294901760
      %v4257 = vsub.f32 %v817, %v4256
      %v4258 = vand.u32 %v4257, 4294901760
      %4259 = vmatpush.msra.mxu0 %v4258
      %v4260 = vand.u32 %v793, 4294901760
      %4261 = vmatmul.f32.gmra.mxu0 %v4260
      %v4262 = vpop.f32.mrf.mxu0
      %v4263 = vadd.f32 %v4128, %v4262
      %v4264 = vand.u32 %v794, 4294901760
      %4265 = vmatmul.f32.gmra.mxu0 %v4264
      %v4266 = vpop.f32.mrf.mxu0
      %v4267 = vadd.f32 %v4134, %v4266
      %v4268 = vand.u32 %v795, 4294901760
      %4269 = vmatmul.f32.gmra.mxu0 %v4268
      %v4270 = vpop.f32.mrf.mxu0
      %v4271 = vadd.f32 %v4140, %v4270
      %v4272 = vand.u32 %v796, 4294901760
      %4273 = vmatmul.f32.gmra.mxu0 %v4272
      %v4274 = vpop.f32.mrf.mxu0
      %v4275 = vadd.f32 %v4146, %v4274
      %v4276 = vand.u32 %v797, 4294901760
      %4277 = vmatmul.f32.gmra.mxu0 %v4276
      %v4278 = vpop.f32.mrf.mxu0
      %v4279 = vadd.f32 %v4152, %v4278
      %v4280 = vand.u32 %v798, 4294901760
      %4281 = vmatmul.f32.gmra.mxu0 %v4280
      %v4282 = vpop.f32.mrf.mxu0
      %v4283 = vadd.f32 %v4158, %v4282
      %v4284 = vand.u32 %v799, 4294901760
      %4285 = vmatmul.f32.gmra.mxu0 %v4284
      %v4286 = vpop.f32.mrf.mxu0
      %v4287 = vadd.f32 %v4164, %v4286
      %v4288 = vand.u32 %v800, 4294901760
      %4289 = vmatmul.f32.gmra.mxu0 %v4288
      %v4290 = vpop.f32.mrf.mxu0
      %v4291 = vadd.f32 %v4170, %v4290
      %v4292 = vand.u32 %v801, 4294901760
      %4293 = vmatmul.f32.gmra.mxu0 %v4292
      %v4294 = vpop.f32.mrf.mxu0
      %v4295 = vadd.f32 %v4176, %v4294
      %v4296 = vand.u32 %v802, 4294901760
      %4297 = vmatmul.f32.gmra.mxu0 %v4296
      %v4298 = vpop.f32.mrf.mxu0
      %v4299 = vadd.f32 %v4182, %v4298
      %v4300 = vand.u32 %v803, 4294901760
      %4301 = vmatmul.f32.gmra.mxu0 %v4300
      %v4302 = vpop.f32.mrf.mxu0
      %v4303 = vadd.f32 %v4188, %v4302
      %v4304 = vand.u32 %v804, 4294901760
      %4305 = vmatmul.f32.gmra.mxu0 %v4304
      %v4306 = vpop.f32.mrf.mxu0
      %v4307 = vadd.f32 %v4194, %v4306
      %4308 = vdwg.mxu0
      %v4309 = vand.u32 %v832, 4294901760
      %4310 = vmatpush.msra.mxu0 %v4309
      %v4311 = vand.u32 %v831, 4294901760
      %4312 = vmatpush.msra.mxu0 %v4311
      %v4313 = vand.u32 %v830, 4294901760
      %4314 = vmatpush.msra.mxu0 %v4313
      %v4315 = vand.u32 %v829, 4294901760
      %4316 = vmatpush.msra.mxu0 %v4315
      %v4317 = vand.u32 %v828, 4294901760
      %4318 = vmatpush.msra.mxu0 %v4317
      %v4319 = vand.u32 %v827, 4294901760
      %4320 = vmatpush.msra.mxu0 %v4319
      %v4321 = vand.u32 %v826, 4294901760
      %4322 = vmatpush.msra.mxu0 %v4321
      %v4323 = vand.u32 %v825, 4294901760
      %4324 = vmatpush.msra.mxu0 %v4323
      %v4325 = vand.u32 %v824, 4294901760
      %4326 = vmatpush.msra.mxu0 %v4325
      %v4327 = vand.u32 %v823, 4294901760
      %4328 = vmatpush.msra.mxu0 %v4327
      %v4329 = vand.u32 %v822, 4294901760
      %4330 = vmatpush.msra.mxu0 %v4329
      %v4331 = vand.u32 %v821, 4294901760
      %4332 = vmatpush.msra.mxu0 %v4331
      %v4333 = vand.u32 %v820, 4294901760
      %4334 = vmatpush.msra.mxu0 %v4333
      %v4335 = vand.u32 %v819, 4294901760
      %4336 = vmatpush.msra.mxu0 %v4335
      %v4337 = vand.u32 %v818, 4294901760
      %4338 = vmatpush.msra.mxu0 %v4337
      %v4339 = vand.u32 %v817, 4294901760
      %4340 = vmatpush.msra.mxu0 %v4339
      %v4341 = vand.u32 %v793, 4294901760
      %4342 = vmatmul.f32.gmra.mxu0 %v4341
      %v4343 = vpop.f32.mrf.mxu0
      %v4344 = vadd.f32 %v4263, %v4343
      %v4345 = vand.u32 %v794, 4294901760
      %4346 = vmatmul.f32.gmra.mxu0 %v4345
      %v4347 = vpop.f32.mrf.mxu0
      %v4348 = vadd.f32 %v4267, %v4347
      %v4349 = vand.u32 %v795, 4294901760
      %4350 = vmatmul.f32.gmra.mxu0 %v4349
      %v4351 = vpop.f32.mrf.mxu0
      %v4352 = vadd.f32 %v4271, %v4351
      %v4353 = vand.u32 %v796, 4294901760
      %4354 = vmatmul.f32.gmra.mxu0 %v4353
      %v4355 = vpop.f32.mrf.mxu0
      %v4356 = vadd.f32 %v4275, %v4355
      %v4357 = vand.u32 %v797, 4294901760
      %4358 = vmatmul.f32.gmra.mxu0 %v4357
      %v4359 = vpop.f32.mrf.mxu0
      %v4360 = vadd.f32 %v4279, %v4359
      %v4361 = vand.u32 %v798, 4294901760
      %4362 = vmatmul.f32.gmra.mxu0 %v4361
      %v4363 = vpop.f32.mrf.mxu0
      %v4364 = vadd.f32 %v4283, %v4363
      %v4365 = vand.u32 %v799, 4294901760
      %4366 = vmatmul.f32.gmra.mxu0 %v4365
      %v4367 = vpop.f32.mrf.mxu0
      %v4368 = vadd.f32 %v4287, %v4367
      %v4369 = vand.u32 %v800, 4294901760
      %4370 = vmatmul.f32.gmra.mxu0 %v4369
      %v4371 = vpop.f32.mrf.mxu0
      %v4372 = vadd.f32 %v4291, %v4371
      %v4373 = vand.u32 %v801, 4294901760
      %4374 = vmatmul.f32.gmra.mxu0 %v4373
      %v4375 = vpop.f32.mrf.mxu0
      %v4376 = vadd.f32 %v4295, %v4375
      %v4377 = vand.u32 %v802, 4294901760
      %4378 = vmatmul.f32.gmra.mxu0 %v4377
      %v4379 = vpop.f32.mrf.mxu0
      %v4380 = vadd.f32 %v4299, %v4379
      %v4381 = vand.u32 %v803, 4294901760
      %4382 = vmatmul.f32.gmra.mxu0 %v4381
      %v4383 = vpop.f32.mrf.mxu0
      %v4384 = vadd.f32 %v4303, %v4383
      %v4385 = vand.u32 %v804, 4294901760
      %4386 = vmatmul.f32.gmra.mxu0 %v4385
      %v4387 = vpop.f32.mrf.mxu0
      %v4388 = vadd.f32 %v4307, %v4387
      %4389 = vdwg.mxu0
      %s4390 = scalar_lea.vmem %s259, 384
      %v4391 = vld [vmem:[%s4390] sm:$0xff]
      %v4392 = vld [vmem:[%s4390 + $0x8] sm:$0xff]
      %v4393 = vld [vmem:[%s4390 + $0x10] sm:$0xff]
      %v4394 = vld [vmem:[%s4390 + $0x18] sm:$0xff]
      %v4395 = vld [vmem:[%s4390 + $0x20] sm:$0xff]
      %v4396 = vld [vmem:[%s4390 + $0x28] sm:$0xff]
      %v4397 = vld [vmem:[%s4390 + $0x30] sm:$0xff]
      %v4398 = vld [vmem:[%s4390 + $0x38] sm:$0xff]
      %v4399 = vld [vmem:[%s4390 + $0x40] sm:$0xff]
      %v4400 = vld [vmem:[%s4390 + $0x48] sm:$0xff]
      %v4401 = vld [vmem:[%s4390 + $0x50] sm:$0xff]
      %v4402 = vld [vmem:[%s4390 + $0x58] sm:$0xff]
      %v4403 = vadd.f32 %v4391, %v4344
      %v4404 = vadd.f32 %v4392, %v4348
      %v4405 = vadd.f32 %v4393, %v4352
      %v4406 = vadd.f32 %v4394, %v4356
      %v4407 = vadd.f32 %v4395, %v4360
      %v4408 = vadd.f32 %v4396, %v4364
      %v4409 = vadd.f32 %v4397, %v4368
      %v4410 = vadd.f32 %v4398, %v4372
      %v4411 = vadd.f32 %v4399, %v4376
      %v4412 = vadd.f32 %v4400, %v4380
      %v4413 = vadd.f32 %v4401, %v4384
      %v4414 = vadd.f32 %v4402, %v4388
      %4415 = vst [vmem:[%s4390] sm:$0xff] %v4403
      %4416 = vst [vmem:[%s4390 + $0x8] sm:$0xff] %v4404
      %4417 = vst [vmem:[%s4390 + $0x10] sm:$0xff] %v4405
      %4418 = vst [vmem:[%s4390 + $0x18] sm:$0xff] %v4406
      %4419 = vst [vmem:[%s4390 + $0x20] sm:$0xff] %v4407
      %4420 = vst [vmem:[%s4390 + $0x28] sm:$0xff] %v4408
      %4421 = vst [vmem:[%s4390 + $0x30] sm:$0xff] %v4409
      %4422 = vst [vmem:[%s4390 + $0x38] sm:$0xff] %v4410
      %4423 = vst [vmem:[%s4390 + $0x40] sm:$0xff] %v4411
      %4424 = vst [vmem:[%s4390 + $0x48] sm:$0xff] %v4412
      %4425 = vst [vmem:[%s4390 + $0x50] sm:$0xff] %v4413
      %4426 = vst [vmem:[%s4390 + $0x58] sm:$0xff] %v4414
      %v4427 = vld [vmem:[%s264] sm:$0xff]
      %v4428 = vld [vmem:[%s264 + $0x8] sm:$0xff]
      %v4429 = vand.u32 %v832, 4294901760
      %4430 = vmatpush.msra.mxu0 %v4429
      %v4431 = vand.u32 %v831, 4294901760
      %4432 = vmatpush.msra.mxu0 %v4431
      %v4433 = vand.u32 %v830, 4294901760
      %4434 = vmatpush.msra.mxu0 %v4433
      %v4435 = vand.u32 %v829, 4294901760
      %4436 = vmatpush.msra.mxu0 %v4435
      %v4437 = vand.u32 %v828, 4294901760
      %4438 = vmatpush.msra.mxu0 %v4437
      %v4439 = vand.u32 %v827, 4294901760
      %4440 = vmatpush.msra.mxu0 %v4439
      %v4441 = vand.u32 %v826, 4294901760
      %4442 = vmatpush.msra.mxu0 %v4441
      %v4443 = vand.u32 %v825, 4294901760
      %4444 = vmatpush.msra.mxu0 %v4443
      %v4445 = vand.u32 %v824, 4294901760
      %4446 = vmatpush.msra.mxu0 %v4445
      %v4447 = vand.u32 %v823, 4294901760
      %4448 = vmatpush.msra.mxu0 %v4447
      %v4449 = vand.u32 %v822, 4294901760
      %4450 = vmatpush.msra.mxu0 %v4449
      %v4451 = vand.u32 %v821, 4294901760
      %4452 = vmatpush.msra.mxu0 %v4451
      %v4453 = vand.u32 %v820, 4294901760
      %4454 = vmatpush.msra.mxu0 %v4453
      %v4455 = vand.u32 %v819, 4294901760
      %4456 = vmatpush.msra.mxu0 %v4455
      %v4457 = vand.u32 %v818, 4294901760
      %4458 = vmatpush.msra.mxu0 %v4457
      %v4459 = vand.u32 %v817, 4294901760
      %4460 = vmatpush.msra.mxu0 %v4459
      %v4461 = vand.u32 %v343, 4294901760
      %v4462 = vsub.f32 %v343, %v4461
      %v4463 = vand.u32 %v4462, 4294901760
      %v4464 = vsub.f32 %v4462, %v4463
      %v4465 = vand.u32 %v4464, 4294901760
      %4466 = vmatmul.f32.gmra.mxu0 %v4465
      %v4467 = vpop.f32.mrf.mxu0
      %v4468 = vadd.f32 0.0, %v4467
      %v4469 = vand.u32 %v344, 4294901760
      %v4470 = vsub.f32 %v344, %v4469
      %v4471 = vand.u32 %v4470, 4294901760
      %v4472 = vsub.f32 %v4470, %v4471
      %v4473 = vand.u32 %v4472, 4294901760
      %4474 = vmatmul.f32.gmra.mxu0 %v4473
      %v4475 = vpop.f32.mrf.mxu0
      %v4476 = vadd.f32 0.0, %v4475
      %4477 = vdwg.mxu0
      %v4478 = vand.u32 %v832, 4294901760
      %v4479 = vsub.f32 %v832, %v4478
      %v4480 = vand.u32 %v4479, 4294901760
      %v4481 = vsub.f32 %v4479, %v4480
      %v4482 = vand.u32 %v4481, 4294901760
      %4483 = vmatpush.msra.mxu0 %v4482
      %v4484 = vand.u32 %v831, 4294901760
      %v4485 = vsub.f32 %v831, %v4484
      %v4486 = vand.u32 %v4485, 4294901760
      %v4487 = vsub.f32 %v4485, %v4486
      %v4488 = vand.u32 %v4487, 4294901760
      %4489 = vmatpush.msra.mxu0 %v4488
      %v4490 = vand.u32 %v830, 4294901760
      %v4491 = vsub.f32 %v830, %v4490
      %v4492 = vand.u32 %v4491, 4294901760
      %v4493 = vsub.f32 %v4491, %v4492
      %v4494 = vand.u32 %v4493, 4294901760
      %4495 = vmatpush.msra.mxu0 %v4494
      %v4496 = vand.u32 %v829, 4294901760
      %v4497 = vsub.f32 %v829, %v4496
      %v4498 = vand.u32 %v4497, 4294901760
      %v4499 = vsub.f32 %v4497, %v4498
      %v4500 = vand.u32 %v4499, 4294901760
      %4501 = vmatpush.msra.mxu0 %v4500
      %v4502 = vand.u32 %v828, 4294901760
      %v4503 = vsub.f32 %v828, %v4502
      %v4504 = vand.u32 %v4503, 4294901760
      %v4505 = vsub.f32 %v4503, %v4504
      %v4506 = vand.u32 %v4505, 4294901760
      %4507 = vmatpush.msra.mxu0 %v4506
      %v4508 = vand.u32 %v827, 4294901760
      %v4509 = vsub.f32 %v827, %v4508
      %v4510 = vand.u32 %v4509, 4294901760
      %v4511 = vsub.f32 %v4509, %v4510
      %v4512 = vand.u32 %v4511, 4294901760
      %4513 = vmatpush.msra.mxu0 %v4512
      %v4514 = vand.u32 %v826, 4294901760
      %v4515 = vsub.f32 %v826, %v4514
      %v4516 = vand.u32 %v4515, 4294901760
      %v4517 = vsub.f32 %v4515, %v4516
      %v4518 = vand.u32 %v4517, 4294901760
      %4519 = vmatpush.msra.mxu0 %v4518
      %v4520 = vand.u32 %v825, 4294901760
      %v4521 = vsub.f32 %v825, %v4520
      %v4522 = vand.u32 %v4521, 4294901760
      %v4523 = vsub.f32 %v4521, %v4522
      %v4524 = vand.u32 %v4523, 4294901760
      %4525 = vmatpush.msra.mxu0 %v4524
      %v4526 = vand.u32 %v824, 4294901760
      %v4527 = vsub.f32 %v824, %v4526
      %v4528 = vand.u32 %v4527, 4294901760
      %v4529 = vsub.f32 %v4527, %v4528
      %v4530 = vand.u32 %v4529, 4294901760
      %4531 = vmatpush.msra.mxu0 %v4530
      %v4532 = vand.u32 %v823, 4294901760
      %v4533 = vsub.f32 %v823, %v4532
      %v4534 = vand.u32 %v4533, 4294901760
      %v4535 = vsub.f32 %v4533, %v4534
      %v4536 = vand.u32 %v4535, 4294901760
      %4537 = vmatpush.msra.mxu0 %v4536
      %v4538 = vand.u32 %v822, 4294901760
      %v4539 = vsub.f32 %v822, %v4538
      %v4540 = vand.u32 %v4539, 4294901760
      %v4541 = vsub.f32 %v4539, %v4540
      %v4542 = vand.u32 %v4541, 4294901760
      %4543 = vmatpush.msra.mxu0 %v4542
      %v4544 = vand.u32 %v821, 4294901760
      %v4545 = vsub.f32 %v821, %v4544
      %v4546 = vand.u32 %v4545, 4294901760
      %v4547 = vsub.f32 %v4545, %v4546
      %v4548 = vand.u32 %v4547, 4294901760
      %4549 = vmatpush.msra.mxu0 %v4548
      %v4550 = vand.u32 %v820, 4294901760
      %v4551 = vsub.f32 %v820, %v4550
      %v4552 = vand.u32 %v4551, 4294901760
      %v4553 = vsub.f32 %v4551, %v4552
      %v4554 = vand.u32 %v4553, 4294901760
      %4555 = vmatpush.msra.mxu0 %v4554
      %v4556 = vand.u32 %v819, 4294901760
      %v4557 = vsub.f32 %v819, %v4556
      %v4558 = vand.u32 %v4557, 4294901760
      %v4559 = vsub.f32 %v4557, %v4558
      %v4560 = vand.u32 %v4559, 4294901760
      %4561 = vmatpush.msra.mxu0 %v4560
      %v4562 = vand.u32 %v818, 4294901760
      %v4563 = vsub.f32 %v818, %v4562
      %v4564 = vand.u32 %v4563, 4294901760
      %v4565 = vsub.f32 %v4563, %v4564
      %v4566 = vand.u32 %v4565, 4294901760
      %4567 = vmatpush.msra.mxu0 %v4566
      %v4568 = vand.u32 %v817, 4294901760
      %v4569 = vsub.f32 %v817, %v4568
      %v4570 = vand.u32 %v4569, 4294901760
      %v4571 = vsub.f32 %v4569, %v4570
      %v4572 = vand.u32 %v4571, 4294901760
      %4573 = vmatpush.msra.mxu0 %v4572
      %v4574 = vand.u32 %v343, 4294901760
      %4575 = vmatmul.f32.gmra.mxu0 %v4574
      %v4576 = vpop.f32.mrf.mxu0
      %v4577 = vadd.f32 %v4468, %v4576
      %v4578 = vand.u32 %v344, 4294901760
      %4579 = vmatmul.f32.gmra.mxu0 %v4578
      %v4580 = vpop.f32.mrf.mxu0
      %v4581 = vadd.f32 %v4476, %v4580
      %4582 = vdwg.mxu0
      %v4583 = vand.u32 %v832, 4294901760
      %v4584 = vsub.f32 %v832, %v4583
      %4585 = vmatpush.msra.mxu0 %v4584
      %v4586 = vand.u32 %v831, 4294901760
      %v4587 = vsub.f32 %v831, %v4586
      %4588 = vmatpush.msra.mxu0 %v4587
      %v4589 = vand.u32 %v830, 4294901760
      %v4590 = vsub.f32 %v830, %v4589
      %4591 = vmatpush.msra.mxu0 %v4590
      %v4592 = vand.u32 %v829, 4294901760
      %v4593 = vsub.f32 %v829, %v4592
      %4594 = vmatpush.msra.mxu0 %v4593
      %v4595 = vand.u32 %v828, 4294901760
      %v4596 = vsub.f32 %v828, %v4595
      %4597 = vmatpush.msra.mxu0 %v4596
      %v4598 = vand.u32 %v827, 4294901760
      %v4599 = vsub.f32 %v827, %v4598
      %4600 = vmatpush.msra.mxu0 %v4599
      %v4601 = vand.u32 %v826, 4294901760
      %v4602 = vsub.f32 %v826, %v4601
      %4603 = vmatpush.msra.mxu0 %v4602
      %v4604 = vand.u32 %v825, 4294901760
      %v4605 = vsub.f32 %v825, %v4604
      %4606 = vmatpush.msra.mxu0 %v4605
      %v4607 = vand.u32 %v824, 4294901760
      %v4608 = vsub.f32 %v824, %v4607
      %4609 = vmatpush.msra.mxu0 %v4608
      %v4610 = vand.u32 %v823, 4294901760
      %v4611 = vsub.f32 %v823, %v4610
      %4612 = vmatpush.msra.mxu0 %v4611
      %v4613 = vand.u32 %v822, 4294901760
      %v4614 = vsub.f32 %v822, %v4613
      %4615 = vmatpush.msra.mxu0 %v4614
      %v4616 = vand.u32 %v821, 4294901760
      %v4617 = vsub.f32 %v821, %v4616
      %4618 = vmatpush.msra.mxu0 %v4617
      %v4619 = vand.u32 %v820, 4294901760
      %v4620 = vsub.f32 %v820, %v4619
      %4621 = vmatpush.msra.mxu0 %v4620
      %v4622 = vand.u32 %v819, 4294901760
      %v4623 = vsub.f32 %v819, %v4622
      %4624 = vmatpush.msra.mxu0 %v4623
      %v4625 = vand.u32 %v818, 4294901760
      %v4626 = vsub.f32 %v818, %v4625
      %4627 = vmatpush.msra.mxu0 %v4626
      %v4628 = vand.u32 %v817, 4294901760
      %v4629 = vsub.f32 %v817, %v4628
      %4630 = vmatpush.msra.mxu0 %v4629
      %v4631 = vand.u32 %v343, 4294901760
      %v4632 = vsub.f32 %v343, %v4631
      %4633 = vmatmul.f32.gmra.mxu0 %v4632
      %v4634 = vpop.f32.mrf.mxu0
      %v4635 = vadd.f32 %v4577, %v4634
      %v4636 = vand.u32 %v344, 4294901760
      %v4637 = vsub.f32 %v344, %v4636
      %4638 = vmatmul.f32.gmra.mxu0 %v4637
      %v4639 = vpop.f32.mrf.mxu0
      %v4640 = vadd.f32 %v4581, %v4639
      %4641 = vdwg.mxu0
      %v4642 = vand.u32 %v832, 4294901760
      %4643 = vmatpush.msra.mxu0 %v4642
      %v4644 = vand.u32 %v831, 4294901760
      %4645 = vmatpush.msra.mxu0 %v4644
      %v4646 = vand.u32 %v830, 4294901760
      %4647 = vmatpush.msra.mxu0 %v4646
      %v4648 = vand.u32 %v829, 4294901760
      %4649 = vmatpush.msra.mxu0 %v4648
      %v4650 = vand.u32 %v828, 4294901760
      %4651 = vmatpush.msra.mxu0 %v4650
      %v4652 = vand.u32 %v827, 4294901760
      %4653 = vmatpush.msra.mxu0 %v4652
      %v4654 = vand.u32 %v826, 4294901760
      %4655 = vmatpush.msra.mxu0 %v4654
      %v4656 = vand.u32 %v825, 4294901760
      %4657 = vmatpush.msra.mxu0 %v4656
      %v4658 = vand.u32 %v824, 4294901760
      %4659 = vmatpush.msra.mxu0 %v4658
      %v4660 = vand.u32 %v823, 4294901760
      %4661 = vmatpush.msra.mxu0 %v4660
      %v4662 = vand.u32 %v822, 4294901760
      %4663 = vmatpush.msra.mxu0 %v4662
      %v4664 = vand.u32 %v821, 4294901760
      %4665 = vmatpush.msra.mxu0 %v4664
      %v4666 = vand.u32 %v820, 4294901760
      %4667 = vmatpush.msra.mxu0 %v4666
      %v4668 = vand.u32 %v819, 4294901760
      %4669 = vmatpush.msra.mxu0 %v4668
      %v4670 = vand.u32 %v818, 4294901760
      %4671 = vmatpush.msra.mxu0 %v4670
      %v4672 = vand.u32 %v817, 4294901760
      %4673 = vmatpush.msra.mxu0 %v4672
      %v4674 = vand.u32 %v343, 4294901760
      %v4675 = vsub.f32 %v343, %v4674
      %v4676 = vand.u32 %v4675, 4294901760
      %4677 = vmatmul.f32.gmra.mxu0 %v4676
      %v4678 = vpop.f32.mrf.mxu0
      %v4679 = vadd.f32 %v4635, %v4678
      %v4680 = vand.u32 %v344, 4294901760
      %v4681 = vsub.f32 %v344, %v4680
      %v4682 = vand.u32 %v4681, 4294901760
      %4683 = vmatmul.f32.gmra.mxu0 %v4682
      %v4684 = vpop.f32.mrf.mxu0
      %v4685 = vadd.f32 %v4640, %v4684
      %4686 = vdwg.mxu0
      %v4687 = vand.u32 %v832, 4294901760
      %v4688 = vsub.f32 %v832, %v4687
      %v4689 = vand.u32 %v4688, 4294901760
      %4690 = vmatpush.msra.mxu0 %v4689
      %v4691 = vand.u32 %v831, 4294901760
      %v4692 = vsub.f32 %v831, %v4691
      %v4693 = vand.u32 %v4692, 4294901760
      %4694 = vmatpush.msra.mxu0 %v4693
      %v4695 = vand.u32 %v830, 4294901760
      %v4696 = vsub.f32 %v830, %v4695
      %v4697 = vand.u32 %v4696, 4294901760
      %4698 = vmatpush.msra.mxu0 %v4697
      %v4699 = vand.u32 %v829, 4294901760
      %v4700 = vsub.f32 %v829, %v4699
      %v4701 = vand.u32 %v4700, 4294901760
      %4702 = vmatpush.msra.mxu0 %v4701
      %v4703 = vand.u32 %v828, 4294901760
      %v4704 = vsub.f32 %v828, %v4703
      %v4705 = vand.u32 %v4704, 4294901760
      %4706 = vmatpush.msra.mxu0 %v4705
      %v4707 = vand.u32 %v827, 4294901760
      %v4708 = vsub.f32 %v827, %v4707
      %v4709 = vand.u32 %v4708, 4294901760
      %4710 = vmatpush.msra.mxu0 %v4709
      %v4711 = vand.u32 %v826, 4294901760
      %v4712 = vsub.f32 %v826, %v4711
      %v4713 = vand.u32 %v4712, 4294901760
      %4714 = vmatpush.msra.mxu0 %v4713
      %v4715 = vand.u32 %v825, 4294901760
      %v4716 = vsub.f32 %v825, %v4715
      %v4717 = vand.u32 %v4716, 4294901760
      %4718 = vmatpush.msra.mxu0 %v4717
      %v4719 = vand.u32 %v824, 4294901760
      %v4720 = vsub.f32 %v824, %v4719
      %v4721 = vand.u32 %v4720, 4294901760
      %4722 = vmatpush.msra.mxu0 %v4721
      %v4723 = vand.u32 %v823, 4294901760
      %v4724 = vsub.f32 %v823, %v4723
      %v4725 = vand.u32 %v4724, 4294901760
      %4726 = vmatpush.msra.mxu0 %v4725
      %v4727 = vand.u32 %v822, 4294901760
      %v4728 = vsub.f32 %v822, %v4727
      %v4729 = vand.u32 %v4728, 4294901760
      %4730 = vmatpush.msra.mxu0 %v4729
      %v4731 = vand.u32 %v821, 4294901760
      %v4732 = vsub.f32 %v821, %v4731
      %v4733 = vand.u32 %v4732, 4294901760
      %4734 = vmatpush.msra.mxu0 %v4733
      %v4735 = vand.u32 %v820, 4294901760
      %v4736 = vsub.f32 %v820, %v4735
      %v4737 = vand.u32 %v4736, 4294901760
      %4738 = vmatpush.msra.mxu0 %v4737
      %v4739 = vand.u32 %v819, 4294901760
      %v4740 = vsub.f32 %v819, %v4739
      %v4741 = vand.u32 %v4740, 4294901760
      %4742 = vmatpush.msra.mxu0 %v4741
      %v4743 = vand.u32 %v818, 4294901760
      %v4744 = vsub.f32 %v818, %v4743
      %v4745 = vand.u32 %v4744, 4294901760
      %4746 = vmatpush.msra.mxu0 %v4745
      %v4747 = vand.u32 %v817, 4294901760
      %v4748 = vsub.f32 %v817, %v4747
      %v4749 = vand.u32 %v4748, 4294901760
      %4750 = vmatpush.msra.mxu0 %v4749
      %v4751 = vand.u32 %v343, 4294901760
      %4752 = vmatmul.f32.gmra.mxu0 %v4751
      %v4753 = vpop.f32.mrf.mxu0
      %v4754 = vadd.f32 %v4679, %v4753
      %v4755 = vand.u32 %v344, 4294901760
      %4756 = vmatmul.f32.gmra.mxu0 %v4755
      %v4757 = vpop.f32.mrf.mxu0
      %v4758 = vadd.f32 %v4685, %v4757
      %4759 = vdwg.mxu0
      %v4760 = vand.u32 %v832, 4294901760
      %4761 = vmatpush.msra.mxu0 %v4760
      %v4762 = vand.u32 %v831, 4294901760
      %4763 = vmatpush.msra.mxu0 %v4762
      %v4764 = vand.u32 %v830, 4294901760
      %4765 = vmatpush.msra.mxu0 %v4764
      %v4766 = vand.u32 %v829, 4294901760
      %4767 = vmatpush.msra.mxu0 %v4766
      %v4768 = vand.u32 %v828, 4294901760
      %4769 = vmatpush.msra.mxu0 %v4768
      %v4770 = vand.u32 %v827, 4294901760
      %4771 = vmatpush.msra.mxu0 %v4770
      %v4772 = vand.u32 %v826, 4294901760
      %4773 = vmatpush.msra.mxu0 %v4772
      %v4774 = vand.u32 %v825, 4294901760
      %4775 = vmatpush.msra.mxu0 %v4774
      %v4776 = vand.u32 %v824, 4294901760
      %4777 = vmatpush.msra.mxu0 %v4776
      %v4778 = vand.u32 %v823, 4294901760
      %4779 = vmatpush.msra.mxu0 %v4778
      %v4780 = vand.u32 %v822, 4294901760
      %4781 = vmatpush.msra.mxu0 %v4780
      %v4782 = vand.u32 %v821, 4294901760
      %4783 = vmatpush.msra.mxu0 %v4782
      %v4784 = vand.u32 %v820, 4294901760
      %4785 = vmatpush.msra.mxu0 %v4784
      %v4786 = vand.u32 %v819, 4294901760
      %4787 = vmatpush.msra.mxu0 %v4786
      %v4788 = vand.u32 %v818, 4294901760
      %4789 = vmatpush.msra.mxu0 %v4788
      %v4790 = vand.u32 %v817, 4294901760
      %4791 = vmatpush.msra.mxu0 %v4790
      %v4792 = vand.u32 %v343, 4294901760
      %4793 = vmatmul.f32.gmra.mxu0 %v4792
      %v4794 = vpop.f32.mrf.mxu0
      %v4795 = vadd.f32 %v4754, %v4794
      %v4796 = vand.u32 %v344, 4294901760
      %4797 = vmatmul.f32.gmra.mxu0 %v4796
      %v4798 = vpop.f32.mrf.mxu0
      %v4799 = vadd.f32 %v4758, %v4798
      %4800 = vdwg.mxu0
      %v4801 = vadd.f32 %v4427, %v4795
      %v4802 = vadd.f32 %v4428, %v4799
      %4803 = vst [vmem:[%s264] sm:$0xff] %v4801
      %4804 = vst [vmem:[%s264 + $0x8] sm:$0xff] %v4802
      %p4805 = scmp.lt.s32.totalorder %s20, 1
      %s4806 = scalar_select %p4805, %s20, 1
      %s4807 = smul.addr %s4806, 60
      %s4808 = smul.addr %s4807, 8
      %s4809 = scalar_lea.vmem %s3, %s4808
      %p4810 = scmp.lt.s32.totalorder %s20, 1
      %s4811 = scalar_select %p4810, %s20, 1
      %s4812 = smul.addr %s4811, 2
      %s4813 = smul.addr %s4812, 8
      %s4814 = scalar_lea.vmem %s4, %s4813
      // Predicated region
      $region37: #{multistep_multimask_losses.1} parent=31 // pred_check
        %p4815 = pneg %p123
      $region38: #{multistep_multimask_losses.1} parent=31 // pred_check_branch
        %4817 = sbr.rel (%p4815) target = $region40
      $region39: #{multistep_multimask_losses.1} parent=31 // pred_region
        _
      $region40: #{multistep_multimask_losses.1} parent=31 // pred_fallthru
        _
      // Predicated region
      $region41: #{multistep_multimask_losses.1} parent=31 // pred_check
        %p4818 = pneg %p149
      $region42: #{multistep_multimask_losses.1} parent=31 // pred_check_branch
        %4820 = sbr.rel (%p4818) target = $region44
      $region43: #{multistep_multimask_losses.1} parent=31 // pred_region
        _
      $region44: #{multistep_multimask_losses.1} parent=31 // pred_fallthru
        _
    $region32: #{multistep_multimask_losses.1} parent=5 // pred_fallthru
      _
    %p4821 = scmp.le.s32.totalorder 2, %s11
    // Predicated region
    $region45: #{multistep_multimask_losses.1} parent=5 // pred_check
      %p4822 = pneg %p4821
    $region46: #{multistep_multimask_losses.1} parent=5 // pred_check_branch
      %4824 = sbr.rel (%p4822) target = $region48
    $region47: #{multistep_multimask_losses.1} parent=5 // pred_region
      %s4825 = ssub.s32 %s11, 2
      // Predicated region
      $region49: #{multistep_multimask_losses.1} parent=47 // pred_check
        %p4826 = pneg %p129
      $region50: #{multistep_multimask_losses.1} parent=47 // pred_check_branch
        %4828 = sbr.rel (%p4826) target = $region52
      $region51: #{multistep_multimask_losses.1} parent=47 // pred_region
        %p4829 = scmp.lt.s32.totalorder %s22, 1
        %s4830 = scalar_select %p4829, %s22, 1
        %s4831 = smul.addr %s4830, 60
        %s4832 = smul.addr %s4831, 8
        %s4833 = scalar_lea.vmem %s3, %s4832
      $region52: #{multistep_multimask_losses.1} parent=47 // pred_fallthru
        _
      // Predicated region
      $region53: #{multistep_multimask_losses.1} parent=47 // pred_check
        %p4834 = pneg %p155
      $region54: #{multistep_multimask_losses.1} parent=47 // pred_check_branch
        %4836 = sbr.rel (%p4834) target = $region56
      $region55: #{multistep_multimask_losses.1} parent=47 // pred_region
        %p4837 = scmp.lt.s32.totalorder %s22, 1
        %s4838 = scalar_select %p4837, %s22, 1
        %s4839 = smul.addr %s4838, 2
        %s4840 = smul.addr %s4839, 8
        %s4841 = scalar_lea.vmem %s4, %s4840
      $region56: #{multistep_multimask_losses.1} parent=47 // pred_fallthru
        _
    $region48: #{multistep_multimask_losses.1} parent=5 // pred_fallthru
      _
  $region6: #{multistep_multimask_losses.1} parent=0 // loop_footer
    %s15 = sadd.s32 1, %s11
  $region7: #{multistep_multimask_losses.1} parent=0 // loop_footer_branch
    %10 = sbr.rel target = $region3
  $region8: #{multistep_multimask_losses.1} parent=0 // loop_exit
    _

</llo_original>
